<compile_context>
chip_gen: v7x
topology: tpu7x:2x2x1
jax: 0.10.0
libtpu: 0.0.40
codegen_flags: <defaults>
</compile_context>

<pallas_src>
import jax
import jax.numpy as jnp
from jax import lax
from jax.experimental import pallas as pl
from jax.experimental.pallas import tpu as pltpu

# ---------------- config (small, deterministic) ----------------
B = 2              # batch
S = 8              # sequence length
D = 32             # hidden size (bert.config.hidden_size)
H = 2              # attention heads
DH = D // H        # head dim
FFN = 64           # intermediate size
LAYERS = 2         # encoder layers
VOCAB = 64
TYPE_VOCAB = 2
MAX_POS = 16
NUM_ASPECT = 5
NUM_ASPECT_QUERY = 2
OUTPUT_DIM = 3
LN_EPS = 1e-12
NEG_INF = -1e9
M = B * S

# ---------------- packed-slab layout constants ----------------
# matrix slab: (LAYERS, WSLAB_ROWS, WSLAB_LANES)
QKV_L = 128                       # qkv output lanes, padded 3*D=96 -> 128
WO_OFF = QKV_L                    # 128
W1_OFF = WO_OFF + D               # 160
W2_OFF = W1_OFF + FFN             # 224
WSLAB_LANES = W2_OFF + D          # 256
WSLAB_ROWS = max(D, FFN)          # 64

# bias / LN vector slab: (N_VEC_PAD, VEC_LANES), one vector per row
VEC_LANES = 128
V_EMB_G, V_EMB_B = 0, 1
V_LAYER0 = 2
VPL = 8                           # rows per layer: bqkv, bo, ln1g, ln1b, b1, b2, ln2g, ln2b
V_AGG_B = V_LAYER0 + LAYERS * VPL            # 18
V_CLF_B0 = V_AGG_B + 1
V_CLF_B1 = V_AGG_B + 2
V_CLF_B2 = V_AGG_B + 3
N_VEC = V_AGG_B + 4                           # 22
N_VEC_PAD = ((N_VEC + 7) // 8) * 8            # 24

# tail weights + aspect queries, packed along rows, lane dim = D
T_AGG = 0
T_CLF0 = D                         # 32  (clf_w0: 2D rows)
T_CLF1 = 3 * D                     # 96
T_CLF2 = 4 * D                     # 128 (clf_w2 padded to D lanes)
T_ASPQ = 5 * D                     # 160 (aspect queries, NQ*B rows)
TAILW_ROWS = ((T_ASPQ + NUM_ASPECT_QUERY * B + 7) // 8) * 8   # 168


# ---------------- in-kernel helpers ----------------
def _layernorm(x, g, b):
    # one-pass form: both cross-lane reductions issue back-to-back
    mu = jnp.mean(x, axis=-1, keepdims=True)
    mu2 = jnp.mean(x * x, axis=-1, keepdims=True)
    var = jnp.maximum(mu2 - mu * mu, 0.0)
    return (x - mu) * lax.rsqrt(var + LN_EPS) * g + b


def _softmax_last(s):
    mx = jnp.max(s, axis=-1, keepdims=True)
    p = jnp.exp(s - mx)
    return p / jnp.sum(p, axis=-1, keepdims=True)


# ---------------- the single fused kernel ----------------
def _fused_forward_kernel(emb_ref, maskf_ref, wslab_ref, vecs_ref, tailw_ref, o_ref):
    maskf = maskf_ref[...]                                     # (B, S)
    # additive key mask, built & broadcast ONCE for all layers x heads
    add_mask = (1.0 - maskf) * NEG_INF                         # (B, S)
    add_mask_hb = jnp.tile(add_mask, (H, 1))[:, None, :]       # (H*B, 1, S), h-major rows

    # ---- embeddings LayerNorm ----
    x = _layernorm(emb_ref[...],
                   vecs_ref[V_EMB_G:V_EMB_G + 1, :D],
                   vecs_ref[V_EMB_B:V_EMB_B + 1, :D])          # (M, D)

    for l in range(LAYERS):                                    # static unroll (LAYERS = 2)
        r = V_LAYER0 + l * VPL
        # merged QKV projection, Q pre-scaled by 1/sqrt(DH), padded to 128 lanes
        wqkv = wslab_ref[l, :D, 0:QKV_L]                       # (D, 128)
        qkv = jnp.dot(x, wqkv, preferred_element_type=jnp.float32) \
            + vecs_ref[r:r + 1, :QKV_L]                        # (M, 128)

        # batch the heads: stack along rows -> one attention over H*B "batches"
        q = jnp.concatenate(
            [qkv[:, h * DH:(h + 1) * DH] for h in range(H)], axis=0).reshape(H * B, S, DH)
        k = jnp.concatenate(
            [qkv[:, D + h * DH:D + (h + 1) * DH] for h in range(H)], axis=0).reshape(H * B, S, DH)
        v = jnp.concatenate(
            [qkv[:, 2 * D + h * DH:2 * D + (h + 1) * DH] for h in range(H)], axis=0).reshape(H * B, S, DH)

        s = jnp.einsum("xqd,xkd->xqk", q, k,
                       preferred_element_type=jnp.float32)     # (H*B, S, S), already scaled
        p = _softmax_last(s + add_mask_hb)
        ctx = jnp.einsum("xqk,xkd->xqd", p, v,
                         preferred_element_type=jnp.float32).reshape(H * M, DH)
        # merge heads back, head-major along lanes (matches torch permute+view)
        ctx = jnp.concatenate([ctx[h * M:(h + 1) * M] for h in range(H)], axis=-1)  # (M, D)

        attn_out = jnp.dot(ctx, wslab_ref[l, :D, WO_OFF:WO_OFF + D],
                           preferred_element_type=jnp.float32) + vecs_ref[r + 1:r + 2, :D]
        x = _layernorm(x + attn_out, vecs_ref[r + 2:r + 3, :D], vecs_ref[r + 3:r + 4, :D])

        ffn = jnp.dot(x, wslab_ref[l, :D, W1_OFF:W1_OFF + FFN],
                      preferred_element_type=jnp.float32) + vecs_ref[r + 4:r + 5, :FFN]
        # TODO(synk): HF BERT uses erf-GELU; tanh-approx gelu used for robust TPU lowering.
        ffn = jax.nn.gelu(ffn, approximate=True)
        ffn = jnp.dot(ffn, wslab_ref[l, :FFN, W2_OFF:W2_OFF + D],
                      preferred_element_type=jnp.float32) + vecs_ref[r + 5:r + 6, :D]
        x = _layernorm(x + ffn, vecs_ref[r + 6:r + 7, :D], vecs_ref[r + 7:r + 8, :D])

    # ---- attentive aggregation: k-projection computed ONCE, shared by both queries ----
    k_proj = jnp.tanh(jnp.dot(x, tailw_ref[T_AGG:T_AGG + D, :],
                              preferred_element_type=jnp.float32)
                      + vecs_ref[V_AGG_B:V_AGG_B + 1, :D])
    k3 = k_proj.reshape(B, S, D)
    v3 = x.reshape(B, S, D)
    aspq = tailw_ref[T_ASPQ:T_ASPQ + NUM_ASPECT_QUERY * B, :].reshape(NUM_ASPECT_QUERY, B, D)

    feats = []
    for qi in range(NUM_ASPECT_QUERY):                         # static unroll
        logits = jnp.sum(k3 * aspq[qi][:, None, :], axis=-1)   # (B, S)
        # masked_fill(mask==0, -inf) with large-negative constant (avoids NaN on
        # fully-masked rows; identical when >=1 token is unmasked).
        logits = jnp.where(maskf == 0.0, NEG_INF, logits)
        att = _softmax_last(logits)
        feats.append(jnp.sum(att[:, :, None] * v3, axis=1))    # (B, D)
    feat = jnp.concatenate(feats, axis=-1)                     # (B, NUM_ASPECT_QUERY * D)

    # ---- fused classifier (num_aspect_query > 1 branch; dropout = identity) ----
    h0 = jnp.maximum(
        jnp.dot(feat, tailw_ref[T_CLF0:T_CLF0 + 2 * D, :],
                preferred_element_type=jnp.float32)
        + vecs_ref[V_CLF_B0:V_CLF_B0 + 1, :D], 0.0)
    h1 = jnp.tanh(
        jnp.dot(h0, tailw_ref[T_CLF1:T_CLF1 + D, :],
                preferred_element_type=jnp.float32)
        + vecs_ref[V_CLF_B1:V_CLF_B1 + 1, :D])
    # padded output: first OUTPUT_DIM lanes are the real logits, rest are zero
    o_ref[...] = (jnp.dot(h1, tailw_ref[T_CLF2:T_CLF2 + D, :],
                          preferred_element_type=jnp.float32)
                  + vecs_ref[V_CLF_B2:V_CLF_B2 + 1, :D])


# ---------------- wrapper (gathers + slab packing stay in JAX) ----------------
def bert_for_absc(params, input_ids, attention_mask, token_type_ids, aspect_id):
    pe = params["embeddings"]
    emb_sum = (pe["word_emb"][input_ids]
               + pe["pos_emb"][jnp.arange(S)][None, :, :]
               + pe["type_emb"][token_type_ids]).reshape(M, D).astype(jnp.float32)
    maskf = attention_mask.astype(jnp.float32)

    scale = 1.0 / (DH ** 0.5)
    L = params["layers"]

    # ---- per-layer matrix slab (LAYERS, 64, 256): wqkv(pad 128) | wo | w1 | w2 ----
    wslab = jnp.zeros((LAYERS, WSLAB_ROWS, WSLAB_LANES), jnp.float32)
    for l, lp in enumerate(L):
        wqkv = jnp.concatenate([lp["wq"] * scale, lp["wk"], lp["wv"]], axis=1)  # (D, 3D)
        wslab = wslab.at[l, :D, :3 * D].set(wqkv)
        wslab = wslab.at[l, :D, WO_OFF:WO_OFF + D].set(lp["wo"])
        wslab = wslab.at[l, :D, W1_OFF:W1_OFF + FFN].set(lp["w1"])
        wslab = wslab.at[l, :FFN, W2_OFF:W2_OFF + D].set(lp["w2"])

    # ---- bias / LN vector slab (24, 128), one vector per row ----
    vecs = jnp.zeros((N_VEC_PAD, VEC_LANES), jnp.float32)
    vecs = vecs.at[V_EMB_G, :D].set(pe["emb_ln_g"])
    vecs = vecs.at[V_EMB_B, :D].set(pe["emb_ln_b"])
    for l, lp in enumerate(L):
        r = V_LAYER0 + l * VPL
        bqkv = jnp.concatenate([lp["bq"] * scale, lp["bk"], lp["bv"]])          # (3D,)
        vecs = vecs.at[r + 0, :3 * D].set(bqkv)
        vecs = vecs.at[r + 1, :D].set(lp["bo"])
        vecs = vecs.at[r + 2, :D].set(lp["ln1_g"])
        vecs = vecs.at[r + 3, :D].set(lp["ln1_b"])
        vecs = vecs.at[r + 4, :FFN].set(lp["b1"])
        vecs = vecs.at[r + 5, :D].set(lp["b2"])
        vecs = vecs.at[r + 6, :D].set(lp["ln2_g"])
        vecs = vecs.at[r + 7, :D].set(lp["ln2_b"])
    vecs = vecs.at[V_AGG_B, :D].set(params["agg_b"])
    vecs = vecs.at[V_CLF_B0, :D].set(params["clf_b0"])
    vecs = vecs.at[V_CLF_B1, :D].set(params["clf_b1"])
    vecs = vecs.at[V_CLF_B2, :OUTPUT_DIM].set(params["clf_b2"])

    # ---- tail slab (168, 32): agg_w | clf_w0 | clf_w1 | clf_w2(pad) | aspect queries ----
    aspq = jnp.stack([ae[aspect_id] for ae in params["aspect_embeddings"]], axis=0)  # (NQ,B,D)
    tailw = jnp.zeros((TAILW_ROWS, D), jnp.float32)
    tailw = tailw.at[T_AGG:T_AGG + D, :].set(params["agg_w"])
    tailw = tailw.at[T_CLF0:T_CLF0 + 2 * D, :].set(params["clf_w0"])
    tailw = tailw.at[T_CLF1:T_CLF1 + D, :].set(params["clf_w1"])
    tailw = tailw.at[T_CLF2:T_CLF2 + D, :OUTPUT_DIM].set(params["clf_w2"])
    tailw = tailw.at[T_ASPQ:T_ASPQ + NUM_ASPECT_QUERY * B, :].set(aspq.reshape(-1, D))

    out = pl.pallas_call(
        _fused_forward_kernel,
        out_shape=jax.ShapeDtypeStruct((B, D), jnp.float32),     # lane-padded logits
        in_specs=[pl.BlockSpec(memory_space=pltpu.MemorySpace.VMEM)] * 5,
        out_specs=pl.BlockSpec(memory_space=pltpu.MemorySpace.VMEM),
    )(emb_sum, maskf, wslab, vecs, tailw)
    return out[:, :OUTPUT_DIM]


# ---------------- deterministic parameter init ----------------
def init_params(key):
    ks = iter(jax.random.split(key, 64))

    def nrm(shape, scale=0.02):
        return (scale * jax.random.normal(next(ks), shape)).astype(jnp.float32)

    zeros = lambda n: jnp.zeros((n,), jnp.float32)
    ones = lambda n: jnp.ones((n,), jnp.float32)

    params = {
        "embeddings": {
            "word_emb": nrm((VOCAB, D)),
            "pos_emb": nrm((MAX_POS, D)),
            "type_emb": nrm((TYPE_VOCAB, D)),
            "emb_ln_g": ones(D),
            "emb_ln_b": zeros(D),
        },
        "layers": [],
    }
    for _ in range(LAYERS):
        params["layers"].append({
            "wq": nrm((D, D)), "bq": zeros(D),
            "wk": nrm((D, D)), "bk": zeros(D),
            "wv": nrm((D, D)), "bv": zeros(D),
            "wo": nrm((D, D)), "bo": zeros(D),
            "ln1_g": ones(D), "ln1_b": zeros(D),
            "w1": nrm((D, FFN)), "b1": zeros(FFN),
            "w2": nrm((FFN, D)), "b2": zeros(D),
            "ln2_g": ones(D), "ln2_b": zeros(D),
        })
    params["aspect_embeddings"] = [nrm((NUM_ASPECT, D)) for _ in range(NUM_ASPECT_QUERY)]
    params["agg_w"] = nrm((D, D))
    params["agg_b"] = zeros(D)
    params["clf_w0"] = nrm((D * NUM_ASPECT_QUERY, D))
    params["clf_b0"] = zeros(D)
    params["clf_w1"] = nrm((D, D))
    params["clf_b1"] = zeros(D)
    params["clf_w2"] = nrm((D, OUTPUT_DIM))
    params["clf_b2"] = zeros(OUTPUT_DIM)
    return params


if __name__ == "__main__":
    key = jax.random.PRNGKey(0)
    kp, ki, _ = jax.random.split(key, 3)

    params = init_params(kp)
    # TODO(synk): pretrained 'bert-base-uncased' weights replaced with synthetic init.
    input_ids = jax.random.randint(ki, (B, S), 0, VOCAB, dtype=jnp.int32)
    attention_mask = jnp.array([[1, 1, 1, 1, 1, 1, 1, 1],
                                [1, 1, 1, 1, 1, 0, 0, 0]], dtype=jnp.int32)
    token_type_ids = jnp.zeros((B, S), dtype=jnp.int32)
    aspect_id = jnp.array([1, 3], dtype=jnp.int32)

    forward = jax.jit(bert_for_absc)
    logits = forward(params, input_ids, attention_mask, token_type_ids, aspect_id)
    logits = jax.block_until_ready(logits)
    assert logits.shape == (B, OUTPUT_DIM)
    assert bool(jnp.all(jnp.isfinite(logits)))
    print("KERNEL_OK")
</pallas_src>

<mosaic_0001>
module attributes {stable_mosaic.version = 11 : i64} {
  func.func @_fused_forward_kernel(%arg0: memref<16x32xf32, #tpu.memory_space<vmem>>, %arg1: memref<2x8xf32, #tpu.memory_space<vmem>>, %arg2: memref<2x64x256xf32, #tpu.memory_space<vmem>>, %arg3: memref<24x128xf32, #tpu.memory_space<vmem>>, %arg4: memref<168x32xf32, #tpu.memory_space<vmem>>, %arg5: memref<2x32xf32, #tpu.memory_space<vmem>>) attributes {dimension_semantics = [], scalar_prefetch = 0 : i64, scratch_operands = 0 : i64, tpu.core_type = #tpu.core_type<tc>} {
    %c0 = arith.constant 0 : index
    %c0_0 = arith.constant 0 : index
    %0 = vector.load %arg1[%c0, %c0_0] : memref<2x8xf32, #tpu.memory_space<vmem>>, vector<2x8xf32>
    %cst = arith.constant 1.000000e+00 : f32
    %1 = vector.broadcast %cst : f32 to vector<2x8xf32>
    %2 = arith.subf %1, %0 : vector<2x8xf32>
    %cst_1 = arith.constant -1.000000e+09 : f32
    %3 = vector.broadcast %cst_1 : f32 to vector<2x8xf32>
    %4 = arith.mulf %2, %3 : vector<2x8xf32>
    %5 = tpu.concatenate %4, %4 in 0 : vector<2x8xf32>, vector<2x8xf32> -> vector<4x8xf32>
    %6 = vector.shape_cast %5 : vector<4x8xf32> to vector<4x1x8xf32>
    %c0_2 = arith.constant 0 : index
    %c0_3 = arith.constant 0 : index
    %7 = vector.load %arg0[%c0_2, %c0_3] : memref<16x32xf32, #tpu.memory_space<vmem>>, vector<16x32xf32>
    %c0_4 = arith.constant 0 : index
    %c0_5 = arith.constant 0 : index
    %8 = vector.load %arg3[%c0_4, %c0_5] : memref<24x128xf32, #tpu.memory_space<vmem>>, vector<1x32xf32>
    %c1 = arith.constant 1 : index
    %c0_6 = arith.constant 0 : index
    %9 = vector.load %arg3[%c1, %c0_6] : memref<24x128xf32, #tpu.memory_space<vmem>>, vector<1x32xf32>
    %cst_7 = arith.constant dense<0.000000e+00> : vector<16xf32>
    %10 = vector.multi_reduction <add>, %7, %cst_7 [1] : vector<16x32xf32> to vector<16xf32>
    %11 = vector.shape_cast %10 : vector<16xf32> to vector<16x1xf32>
    %cst_8 = arith.constant 3.200000e+01 : f32
    %12 = vector.broadcast %cst_8 : f32 to vector<16x1xf32>
    %13 = arith.divf %11, %12 : vector<16x1xf32>
    %14 = arith.mulf %7, %7 : vector<16x32xf32>
    %cst_9 = arith.constant dense<0.000000e+00> : vector<16xf32>
    %15 = vector.multi_reduction <add>, %14, %cst_9 [1] : vector<16x32xf32> to vector<16xf32>
    %16 = vector.shape_cast %15 : vector<16xf32> to vector<16x1xf32>
    %cst_10 = arith.constant 3.200000e+01 : f32
    %17 = vector.broadcast %cst_10 : f32 to vector<16x1xf32>
    %18 = arith.divf %16, %17 : vector<16x1xf32>
    %19 = arith.mulf %13, %13 : vector<16x1xf32>
    %20 = arith.subf %18, %19 : vector<16x1xf32>
    %cst_11 = arith.constant 0.000000e+00 : f32
    %21 = vector.broadcast %cst_11 : f32 to vector<16x1xf32>
    %22 = arith.maximumf %20, %21 : vector<16x1xf32>
    %23 = vector.broadcast %13 : vector<16x1xf32> to vector<16x32xf32>
    %24 = arith.subf %7, %23 : vector<16x32xf32>
    %cst_12 = arith.constant 9.99999996E-13 : f32
    %25 = vector.broadcast %cst_12 : f32 to vector<16x1xf32>
    %26 = arith.addf %22, %25 : vector<16x1xf32>
    %27 = math.rsqrt %26 : vector<16x1xf32>
    %28 = vector.broadcast %27 : vector<16x1xf32> to vector<16x32xf32>
    %29 = arith.mulf %24, %28 : vector<16x32xf32>
    %30 = vector.broadcast %8 : vector<1x32xf32> to vector<16x32xf32>
    %31 = arith.mulf %29, %30 : vector<16x32xf32>
    %32 = vector.broadcast %9 : vector<1x32xf32> to vector<16x32xf32>
    %33 = arith.addf %31, %32 : vector<16x32xf32>
    %c0_13 = arith.constant 0 : index
    %c0_14 = arith.constant 0 : index
    %c0_15 = arith.constant 0 : index
    %34 = vector.load %arg2[%c0_13, %c0_14, %c0_15] : memref<2x64x256xf32, #tpu.memory_space<vmem>>, vector<1x32x128xf32>
    %35 = vector.shape_cast %34 : vector<1x32x128xf32> to vector<32x128xf32>
    %cst_16 = arith.constant dense<0.000000e+00> : vector<16x128xf32>
    %36 = tpu.matmul %33, %35, %cst_16 {dimension_numbers = #tpu.dot_dimension_numbers<[1], [0], [0], [1], [0, 0, 1, 1], [], []>} : vector<16x32xf32>, vector<32x128xf32>, vector<16x128xf32> -> vector<16x128xf32>
    %c2 = arith.constant 2 : index
    %c0_17 = arith.constant 0 : index
    %37 = vector.load %arg3[%c2, %c0_17] : memref<24x128xf32, #tpu.memory_space<vmem>>, vector<1x128xf32>
    %38 = vector.broadcast %37 : vector<1x128xf32> to vector<16x128xf32>
    %39 = arith.addf %36, %38 : vector<16x128xf32>
    %40 = vector.extract_strided_slice %39 {offsets = [0, 0], sizes = [16, 16], strides = [1, 1]} : vector<16x128xf32> to vector<16x16xf32>
    %41 = vector.extract_strided_slice %39 {offsets = [0, 16], sizes = [16, 16], strides = [1, 1]} : vector<16x128xf32> to vector<16x16xf32>
    %42 = tpu.concatenate %40, %41 in 0 : vector<16x16xf32>, vector<16x16xf32> -> vector<32x16xf32>
    %43 = vector.shape_cast %42 : vector<32x16xf32> to vector<4x8x16xf32>
    %44 = vector.extract_strided_slice %39 {offsets = [0, 32], sizes = [16, 16], strides = [1, 1]} : vector<16x128xf32> to vector<16x16xf32>
    %45 = vector.extract_strided_slice %39 {offsets = [0, 48], sizes = [16, 16], strides = [1, 1]} : vector<16x128xf32> to vector<16x16xf32>
    %46 = tpu.concatenate %44, %45 in 0 : vector<16x16xf32>, vector<16x16xf32> -> vector<32x16xf32>
    %47 = vector.shape_cast %46 : vector<32x16xf32> to vector<4x8x16xf32>
    %48 = vector.extract_strided_slice %39 {offsets = [0, 64], sizes = [16, 16], strides = [1, 1]} : vector<16x128xf32> to vector<16x16xf32>
    %49 = vector.extract_strided_slice %39 {offsets = [0, 80], sizes = [16, 16], strides = [1, 1]} : vector<16x128xf32> to vector<16x16xf32>
    %50 = tpu.concatenate %48, %49 in 0 : vector<16x16xf32>, vector<16x16xf32> -> vector<32x16xf32>
    %51 = vector.shape_cast %50 : vector<32x16xf32> to vector<4x8x16xf32>
    "tpu.trace_start"() <{level = 10 : i32, message = "xqd,xkd->xqk"}> : () -> ()
    %cst_18 = arith.constant dense<0.000000e+00> : vector<4x8x8xf32>
    %52 = tpu.matmul %43, %47, %cst_18 {dimension_numbers = #tpu.dot_dimension_numbers<[2], [2], [1], [1], [0, 0, 0, 1, 1, 1], [0], [0]>} : vector<4x8x16xf32>, vector<4x8x16xf32>, vector<4x8x8xf32> -> vector<4x8x8xf32>
    "tpu.trace_stop"() : () -> ()
    %53 = vector.broadcast %6 : vector<4x1x8xf32> to vector<4x8x8xf32>
    %54 = arith.addf %52, %53 : vector<4x8x8xf32>
    %cst_19 = arith.constant dense<0xFF800000> : vector<4x8xf32>
    %55 = vector.multi_reduction <maximumf>, %54, %cst_19 [2] : vector<4x8x8xf32> to vector<4x8xf32>
    %56 = vector.shape_cast %55 : vector<4x8xf32> to vector<4x8x1xf32>
    %57 = vector.broadcast %56 : vector<4x8x1xf32> to vector<4x8x8xf32>
    %58 = arith.subf %54, %57 : vector<4x8x8xf32>
    %59 = math.exp %58 : vector<4x8x8xf32>
    %cst_20 = arith.constant dense<0.000000e+00> : vector<4x8xf32>
    %60 = vector.multi_reduction <add>, %59, %cst_20 [2] : vector<4x8x8xf32> to vector<4x8xf32>
    %61 = vector.shape_cast %60 : vector<4x8xf32> to vector<4x8x1xf32>
    %62 = vector.broadcast %61 : vector<4x8x1xf32> to vector<4x8x8xf32>
    %63 = arith.divf %59, %62 : vector<4x8x8xf32>
    "tpu.trace_start"() <{level = 10 : i32, message = "xqk,xkd->xqd"}> : () -> ()
    %cst_21 = arith.constant dense<0.000000e+00> : vector<4x8x16xf32>
    %64 = tpu.matmul %63, %51, %cst_21 {dimension_numbers = #tpu.dot_dimension_numbers<[2], [1], [1], [2], [0, 0, 0, 1, 1, 2], [0], [0]>} : vector<4x8x8xf32>, vector<4x8x16xf32>, vector<4x8x16xf32> -> vector<4x8x16xf32>
    "tpu.trace_stop"() : () -> ()
    %65 = vector.shape_cast %64 : vector<4x8x16xf32> to vector<32x16xf32>
    %66 = vector.extract_strided_slice %65 {offsets = [0, 0], sizes = [16, 16], strides = [1, 1]} : vector<32x16xf32> to vector<16x16xf32>
    %67 = vector.extract_strided_slice %65 {offsets = [16, 0], sizes = [16, 16], strides = [1, 1]} : vector<32x16xf32> to vector<16x16xf32>
    %68 = tpu.concatenate %66, %67 in 1 : vector<16x16xf32>, vector<16x16xf32> -> vector<16x32xf32>
    %c0_22 = arith.constant 0 : index
    %c0_23 = arith.constant 0 : index
    %c128 = arith.constant 128 : index
    %69 = vector.load %arg2[%c0_22, %c0_23, %c128] : memref<2x64x256xf32, #tpu.memory_space<vmem>>, vector<1x32x32xf32>
    %70 = vector.shape_cast %69 : vector<1x32x32xf32> to vector<32x32xf32>
    %cst_24 = arith.constant dense<0.000000e+00> : vector<16x32xf32>
    %71 = tpu.matmul %68, %70, %cst_24 {dimension_numbers = #tpu.dot_dimension_numbers<[1], [0], [0], [1], [0, 0, 1, 1], [], []>} : vector<16x32xf32>, vector<32x32xf32>, vector<16x32xf32> -> vector<16x32xf32>
    %c3 = arith.constant 3 : index
    %c0_25 = arith.constant 0 : index
    %72 = vector.load %arg3[%c3, %c0_25] : memref<24x128xf32, #tpu.memory_space<vmem>>, vector<1x32xf32>
    %73 = vector.broadcast %72 : vector<1x32xf32> to vector<16x32xf32>
    %74 = arith.addf %71, %73 : vector<16x32xf32>
    %75 = arith.addf %33, %74 : vector<16x32xf32>
    %c4 = arith.constant 4 : index
    %c0_26 = arith.constant 0 : index
    %76 = vector.load %arg3[%c4, %c0_26] : memref<24x128xf32, #tpu.memory_space<vmem>>, vector<1x32xf32>
    %c5 = arith.constant 5 : index
    %c0_27 = arith.constant 0 : index
    %77 = vector.load %arg3[%c5, %c0_27] : memref<24x128xf32, #tpu.memory_space<vmem>>, vector<1x32xf32>
    %cst_28 = arith.constant dense<0.000000e+00> : vector<16xf32>
    %78 = vector.multi_reduction <add>, %75, %cst_28 [1] : vector<16x32xf32> to vector<16xf32>
    %79 = vector.shape_cast %78 : vector<16xf32> to vector<16x1xf32>
    %cst_29 = arith.constant 3.200000e+01 : f32
    %80 = vector.broadcast %cst_29 : f32 to vector<16x1xf32>
    %81 = arith.divf %79, %80 : vector<16x1xf32>
    %82 = arith.mulf %75, %75 : vector<16x32xf32>
    %cst_30 = arith.constant dense<0.000000e+00> : vector<16xf32>
    %83 = vector.multi_reduction <add>, %82, %cst_30 [1] : vector<16x32xf32> to vector<16xf32>
    %84 = vector.shape_cast %83 : vector<16xf32> to vector<16x1xf32>
    %cst_31 = arith.constant 3.200000e+01 : f32
    %85 = vector.broadcast %cst_31 : f32 to vector<16x1xf32>
    %86 = arith.divf %84, %85 : vector<16x1xf32>
    %87 = arith.mulf %81, %81 : vector<16x1xf32>
    %88 = arith.subf %86, %87 : vector<16x1xf32>
    %cst_32 = arith.constant 0.000000e+00 : f32
    %89 = vector.broadcast %cst_32 : f32 to vector<16x1xf32>
    %90 = arith.maximumf %88, %89 : vector<16x1xf32>
    %91 = vector.broadcast %81 : vector<16x1xf32> to vector<16x32xf32>
    %92 = arith.subf %75, %91 : vector<16x32xf32>
    %cst_33 = arith.constant 9.99999996E-13 : f32
    %93 = vector.broadcast %cst_33 : f32 to vector<16x1xf32>
    %94 = arith.addf %90, %93 : vector<16x1xf32>
    %95 = math.rsqrt %94 : vector<16x1xf32>
    %96 = vector.broadcast %95 : vector<16x1xf32> to vector<16x32xf32>
    %97 = arith.mulf %92, %96 : vector<16x32xf32>
    %98 = vector.broadcast %76 : vector<1x32xf32> to vector<16x32xf32>
    %99 = arith.mulf %97, %98 : vector<16x32xf32>
    %100 = vector.broadcast %77 : vector<1x32xf32> to vector<16x32xf32>
    %101 = arith.addf %99, %100 : vector<16x32xf32>
    %c0_34 = arith.constant 0 : index
    %c0_35 = arith.constant 0 : index
    %c160 = arith.constant 160 : index
    %102 = vector.load %arg2[%c0_34, %c0_35, %c160] : memref<2x64x256xf32, #tpu.memory_space<vmem>>, vector<1x32x64xf32>
    %103 = vector.shape_cast %102 : vector<1x32x64xf32> to vector<32x64xf32>
    %cst_36 = arith.constant dense<0.000000e+00> : vector<16x64xf32>
    %104 = tpu.matmul %101, %103, %cst_36 {dimension_numbers = #tpu.dot_dimension_numbers<[1], [0], [0], [1], [0, 0, 1, 1], [], []>} : vector<16x32xf32>, vector<32x64xf32>, vector<16x64xf32> -> vector<16x64xf32>
    %c6 = arith.constant 6 : index
    %c0_37 = arith.constant 0 : index
    %105 = vector.load %arg3[%c6, %c0_37] : memref<24x128xf32, #tpu.memory_space<vmem>>, vector<1x64xf32>
    %106 = vector.broadcast %105 : vector<1x64xf32> to vector<16x64xf32>
    %107 = arith.addf %104, %106 : vector<16x64xf32>
    %108 = arith.mulf %107, %107 : vector<16x64xf32>
    %109 = arith.mulf %107, %108 : vector<16x64xf32>
    %cst_38 = arith.constant 4.471500e-02 : f32
    %110 = vector.broadcast %cst_38 : f32 to vector<16x64xf32>
    %111 = arith.mulf %110, %109 : vector<16x64xf32>
    %112 = arith.addf %107, %111 : vector<16x64xf32>
    %cst_39 = arith.constant 0.797884583 : f32
    %113 = vector.broadcast %cst_39 : f32 to vector<16x64xf32>
    %114 = arith.mulf %113, %112 : vector<16x64xf32>
    %115 = math.tanh %114 : vector<16x64xf32>
    %cst_40 = arith.constant 1.000000e+00 : f32
    %116 = vector.broadcast %cst_40 : f32 to vector<16x64xf32>
    %117 = arith.addf %116, %115 : vector<16x64xf32>
    %cst_41 = arith.constant 5.000000e-01 : f32
    %118 = vector.broadcast %cst_41 : f32 to vector<16x64xf32>
    %119 = arith.mulf %118, %117 : vector<16x64xf32>
    %120 = arith.mulf %107, %119 : vector<16x64xf32>
    %c0_42 = arith.constant 0 : index
    %c0_43 = arith.constant 0 : index
    %c224 = arith.constant 224 : index
    %121 = vector.load %arg2[%c0_42, %c0_43, %c224] : memref<2x64x256xf32, #tpu.memory_space<vmem>>, vector<1x64x32xf32>
    %122 = vector.shape_cast %121 : vector<1x64x32xf32> to vector<64x32xf32>
    %cst_44 = arith.constant dense<0.000000e+00> : vector<16x32xf32>
    %123 = tpu.matmul %120, %122, %cst_44 {dimension_numbers = #tpu.dot_dimension_numbers<[1], [0], [0], [1], [0, 0, 1, 1], [], []>} : vector<16x64xf32>, vector<64x32xf32>, vector<16x32xf32> -> vector<16x32xf32>
    %c7 = arith.constant 7 : index
    %c0_45 = arith.constant 0 : index
    %124 = vector.load %arg3[%c7, %c0_45] : memref<24x128xf32, #tpu.memory_space<vmem>>, vector<1x32xf32>
    %125 = vector.broadcast %124 : vector<1x32xf32> to vector<16x32xf32>
    %126 = arith.addf %123, %125 : vector<16x32xf32>
    %127 = arith.addf %101, %126 : vector<16x32xf32>
    %c8 = arith.constant 8 : index
    %c0_46 = arith.constant 0 : index
    %128 = vector.load %arg3[%c8, %c0_46] : memref<24x128xf32, #tpu.memory_space<vmem>>, vector<1x32xf32>
    %c9 = arith.constant 9 : index
    %c0_47 = arith.constant 0 : index
    %129 = vector.load %arg3[%c9, %c0_47] : memref<24x128xf32, #tpu.memory_space<vmem>>, vector<1x32xf32>
    %cst_48 = arith.constant dense<0.000000e+00> : vector<16xf32>
    %130 = vector.multi_reduction <add>, %127, %cst_48 [1] : vector<16x32xf32> to vector<16xf32>
    %131 = vector.shape_cast %130 : vector<16xf32> to vector<16x1xf32>
    %cst_49 = arith.constant 3.200000e+01 : f32
    %132 = vector.broadcast %cst_49 : f32 to vector<16x1xf32>
    %133 = arith.divf %131, %132 : vector<16x1xf32>
    %134 = arith.mulf %127, %127 : vector<16x32xf32>
    %cst_50 = arith.constant dense<0.000000e+00> : vector<16xf32>
    %135 = vector.multi_reduction <add>, %134, %cst_50 [1] : vector<16x32xf32> to vector<16xf32>
    %136 = vector.shape_cast %135 : vector<16xf32> to vector<16x1xf32>
    %cst_51 = arith.constant 3.200000e+01 : f32
    %137 = vector.broadcast %cst_51 : f32 to vector<16x1xf32>
    %138 = arith.divf %136, %137 : vector<16x1xf32>
    %139 = arith.mulf %133, %133 : vector<16x1xf32>
    %140 = arith.subf %138, %139 : vector<16x1xf32>
    %cst_52 = arith.constant 0.000000e+00 : f32
    %141 = vector.broadcast %cst_52 : f32 to vector<16x1xf32>
    %142 = arith.maximumf %140, %141 : vector<16x1xf32>
    %143 = vector.broadcast %133 : vector<16x1xf32> to vector<16x32xf32>
    %144 = arith.subf %127, %143 : vector<16x32xf32>
    %cst_53 = arith.constant 9.99999996E-13 : f32
    %145 = vector.broadcast %cst_53 : f32 to vector<16x1xf32>
    %146 = arith.addf %142, %145 : vector<16x1xf32>
    %147 = math.rsqrt %146 : vector<16x1xf32>
    %148 = vector.broadcast %147 : vector<16x1xf32> to vector<16x32xf32>
    %149 = arith.mulf %144, %148 : vector<16x32xf32>
    %150 = vector.broadcast %128 : vector<1x32xf32> to vector<16x32xf32>
    %151 = arith.mulf %149, %150 : vector<16x32xf32>
    %152 = vector.broadcast %129 : vector<1x32xf32> to vector<16x32xf32>
    %153 = arith.addf %151, %152 : vector<16x32xf32>
    %c1_54 = arith.constant 1 : index
    %c0_55 = arith.constant 0 : index
    %c0_56 = arith.constant 0 : index
    %154 = vector.load %arg2[%c1_54, %c0_55, %c0_56] : memref<2x64x256xf32, #tpu.memory_space<vmem>>, vector<1x32x128xf32>
    %155 = vector.shape_cast %154 : vector<1x32x128xf32> to vector<32x128xf32>
    %cst_57 = arith.constant dense<0.000000e+00> : vector<16x128xf32>
    %156 = tpu.matmul %153, %155, %cst_57 {dimension_numbers = #tpu.dot_dimension_numbers<[1], [0], [0], [1], [0, 0, 1, 1], [], []>} : vector<16x32xf32>, vector<32x128xf32>, vector<16x128xf32> -> vector<16x128xf32>
    %c10 = arith.constant 10 : index
    %c0_58 = arith.constant 0 : index
    %157 = vector.load %arg3[%c10, %c0_58] : memref<24x128xf32, #tpu.memory_space<vmem>>, vector<1x128xf32>
    %158 = vector.broadcast %157 : vector<1x128xf32> to vector<16x128xf32>
    %159 = arith.addf %156, %158 : vector<16x128xf32>
    %160 = vector.extract_strided_slice %159 {offsets = [0, 0], sizes = [16, 16], strides = [1, 1]} : vector<16x128xf32> to vector<16x16xf32>
    %161 = vector.extract_strided_slice %159 {offsets = [0, 16], sizes = [16, 16], strides = [1, 1]} : vector<16x128xf32> to vector<16x16xf32>
    %162 = tpu.concatenate %160, %161 in 0 : vector<16x16xf32>, vector<16x16xf32> -> vector<32x16xf32>
    %163 = vector.shape_cast %162 : vector<32x16xf32> to vector<4x8x16xf32>
    %164 = vector.extract_strided_slice %159 {offsets = [0, 32], sizes = [16, 16], strides = [1, 1]} : vector<16x128xf32> to vector<16x16xf32>
    %165 = vector.extract_strided_slice %159 {offsets = [0, 48], sizes = [16, 16], strides = [1, 1]} : vector<16x128xf32> to vector<16x16xf32>
    %166 = tpu.concatenate %164, %165 in 0 : vector<16x16xf32>, vector<16x16xf32> -> vector<32x16xf32>
    %167 = vector.shape_cast %166 : vector<32x16xf32> to vector<4x8x16xf32>
    %168 = vector.extract_strided_slice %159 {offsets = [0, 64], sizes = [16, 16], strides = [1, 1]} : vector<16x128xf32> to vector<16x16xf32>
    %169 = vector.extract_strided_slice %159 {offsets = [0, 80], sizes = [16, 16], strides = [1, 1]} : vector<16x128xf32> to vector<16x16xf32>
    %170 = tpu.concatenate %168, %169 in 0 : vector<16x16xf32>, vector<16x16xf32> -> vector<32x16xf32>
    %171 = vector.shape_cast %170 : vector<32x16xf32> to vector<4x8x16xf32>
    "tpu.trace_start"() <{level = 10 : i32, message = "xqd,xkd->xqk"}> : () -> ()
    %cst_59 = arith.constant dense<0.000000e+00> : vector<4x8x8xf32>
    %172 = tpu.matmul %163, %167, %cst_59 {dimension_numbers = #tpu.dot_dimension_numbers<[2], [2], [1], [1], [0, 0, 0, 1, 1, 1], [0], [0]>} : vector<4x8x16xf32>, vector<4x8x16xf32>, vector<4x8x8xf32> -> vector<4x8x8xf32>
    "tpu.trace_stop"() : () -> ()
    %173 = vector.broadcast %6 : vector<4x1x8xf32> to vector<4x8x8xf32>
    %174 = arith.addf %172, %173 : vector<4x8x8xf32>
    %cst_60 = arith.constant dense<0xFF800000> : vector<4x8xf32>
    %175 = vector.multi_reduction <maximumf>, %174, %cst_60 [2] : vector<4x8x8xf32> to vector<4x8xf32>
    %176 = vector.shape_cast %175 : vector<4x8xf32> to vector<4x8x1xf32>
    %177 = vector.broadcast %176 : vector<4x8x1xf32> to vector<4x8x8xf32>
    %178 = arith.subf %174, %177 : vector<4x8x8xf32>
    %179 = math.exp %178 : vector<4x8x8xf32>
    %cst_61 = arith.constant dense<0.000000e+00> : vector<4x8xf32>
    %180 = vector.multi_reduction <add>, %179, %cst_61 [2] : vector<4x8x8xf32> to vector<4x8xf32>
    %181 = vector.shape_cast %180 : vector<4x8xf32> to vector<4x8x1xf32>
    %182 = vector.broadcast %181 : vector<4x8x1xf32> to vector<4x8x8xf32>
    %183 = arith.divf %179, %182 : vector<4x8x8xf32>
    "tpu.trace_start"() <{level = 10 : i32, message = "xqk,xkd->xqd"}> : () -> ()
    %cst_62 = arith.constant dense<0.000000e+00> : vector<4x8x16xf32>
    %184 = tpu.matmul %183, %171, %cst_62 {dimension_numbers = #tpu.dot_dimension_numbers<[2], [1], [1], [2], [0, 0, 0, 1, 1, 2], [0], [0]>} : vector<4x8x8xf32>, vector<4x8x16xf32>, vector<4x8x16xf32> -> vector<4x8x16xf32>
    "tpu.trace_stop"() : () -> ()
    %185 = vector.shape_cast %184 : vector<4x8x16xf32> to vector<32x16xf32>
    %186 = vector.extract_strided_slice %185 {offsets = [0, 0], sizes = [16, 16], strides = [1, 1]} : vector<32x16xf32> to vector<16x16xf32>
    %187 = vector.extract_strided_slice %185 {offsets = [16, 0], sizes = [16, 16], strides = [1, 1]} : vector<32x16xf32> to vector<16x16xf32>
    %188 = tpu.concatenate %186, %187 in 1 : vector<16x16xf32>, vector<16x16xf32> -> vector<16x32xf32>
    %c1_63 = arith.constant 1 : index
    %c0_64 = arith.constant 0 : index
    %c128_65 = arith.constant 128 : index
    %189 = vector.load %arg2[%c1_63, %c0_64, %c128_65] : memref<2x64x256xf32, #tpu.memory_space<vmem>>, vector<1x32x32xf32>
    %190 = vector.shape_cast %189 : vector<1x32x32xf32> to vector<32x32xf32>
    %cst_66 = arith.constant dense<0.000000e+00> : vector<16x32xf32>
    %191 = tpu.matmul %188, %190, %cst_66 {dimension_numbers = #tpu.dot_dimension_numbers<[1], [0], [0], [1], [0, 0, 1, 1], [], []>} : vector<16x32xf32>, vector<32x32xf32>, vector<16x32xf32> -> vector<16x32xf32>
    %c11 = arith.constant 11 : index
    %c0_67 = arith.constant 0 : index
    %192 = vector.load %arg3[%c11, %c0_67] : memref<24x128xf32, #tpu.memory_space<vmem>>, vector<1x32xf32>
    %193 = vector.broadcast %192 : vector<1x32xf32> to vector<16x32xf32>
    %194 = arith.addf %191, %193 : vector<16x32xf32>
    %195 = arith.addf %153, %194 : vector<16x32xf32>
    %c12 = arith.constant 12 : index
    %c0_68 = arith.constant 0 : index
    %196 = vector.load %arg3[%c12, %c0_68] : memref<24x128xf32, #tpu.memory_space<vmem>>, vector<1x32xf32>
    %c13 = arith.constant 13 : index
    %c0_69 = arith.constant 0 : index
    %197 = vector.load %arg3[%c13, %c0_69] : memref<24x128xf32, #tpu.memory_space<vmem>>, vector<1x32xf32>
    %cst_70 = arith.constant dense<0.000000e+00> : vector<16xf32>
    %198 = vector.multi_reduction <add>, %195, %cst_70 [1] : vector<16x32xf32> to vector<16xf32>
    %199 = vector.shape_cast %198 : vector<16xf32> to vector<16x1xf32>
    %cst_71 = arith.constant 3.200000e+01 : f32
    %200 = vector.broadcast %cst_71 : f32 to vector<16x1xf32>
    %201 = arith.divf %199, %200 : vector<16x1xf32>
    %202 = arith.mulf %195, %195 : vector<16x32xf32>
    %cst_72 = arith.constant dense<0.000000e+00> : vector<16xf32>
    %203 = vector.multi_reduction <add>, %202, %cst_72 [1] : vector<16x32xf32> to vector<16xf32>
    %204 = vector.shape_cast %203 : vector<16xf32> to vector<16x1xf32>
    %cst_73 = arith.constant 3.200000e+01 : f32
    %205 = vector.broadcast %cst_73 : f32 to vector<16x1xf32>
    %206 = arith.divf %204, %205 : vector<16x1xf32>
    %207 = arith.mulf %201, %201 : vector<16x1xf32>
    %208 = arith.subf %206, %207 : vector<16x1xf32>
    %cst_74 = arith.constant 0.000000e+00 : f32
    %209 = vector.broadcast %cst_74 : f32 to vector<16x1xf32>
    %210 = arith.maximumf %208, %209 : vector<16x1xf32>
    %211 = vector.broadcast %201 : vector<16x1xf32> to vector<16x32xf32>
    %212 = arith.subf %195, %211 : vector<16x32xf32>
    %cst_75 = arith.constant 9.99999996E-13 : f32
    %213 = vector.broadcast %cst_75 : f32 to vector<16x1xf32>
    %214 = arith.addf %210, %213 : vector<16x1xf32>
    %215 = math.rsqrt %214 : vector<16x1xf32>
    %216 = vector.broadcast %215 : vector<16x1xf32> to vector<16x32xf32>
    %217 = arith.mulf %212, %216 : vector<16x32xf32>
    %218 = vector.broadcast %196 : vector<1x32xf32> to vector<16x32xf32>
    %219 = arith.mulf %217, %218 : vector<16x32xf32>
    %220 = vector.broadcast %197 : vector<1x32xf32> to vector<16x32xf32>
    %221 = arith.addf %219, %220 : vector<16x32xf32>
    %c1_76 = arith.constant 1 : index
    %c0_77 = arith.constant 0 : index
    %c160_78 = arith.constant 160 : index
    %222 = vector.load %arg2[%c1_76, %c0_77, %c160_78] : memref<2x64x256xf32, #tpu.memory_space<vmem>>, vector<1x32x64xf32>
    %223 = vector.shape_cast %222 : vector<1x32x64xf32> to vector<32x64xf32>
    %cst_79 = arith.constant dense<0.000000e+00> : vector<16x64xf32>
    %224 = tpu.matmul %221, %223, %cst_79 {dimension_numbers = #tpu.dot_dimension_numbers<[1], [0], [0], [1], [0, 0, 1, 1], [], []>} : vector<16x32xf32>, vector<32x64xf32>, vector<16x64xf32> -> vector<16x64xf32>
    %c14 = arith.constant 14 : index
    %c0_80 = arith.constant 0 : index
    %225 = vector.load %arg3[%c14, %c0_80] : memref<24x128xf32, #tpu.memory_space<vmem>>, vector<1x64xf32>
    %226 = vector.broadcast %225 : vector<1x64xf32> to vector<16x64xf32>
    %227 = arith.addf %224, %226 : vector<16x64xf32>
    %228 = arith.mulf %227, %227 : vector<16x64xf32>
    %229 = arith.mulf %227, %228 : vector<16x64xf32>
    %cst_81 = arith.constant 4.471500e-02 : f32
    %230 = vector.broadcast %cst_81 : f32 to vector<16x64xf32>
    %231 = arith.mulf %230, %229 : vector<16x64xf32>
    %232 = arith.addf %227, %231 : vector<16x64xf32>
    %cst_82 = arith.constant 0.797884583 : f32
    %233 = vector.broadcast %cst_82 : f32 to vector<16x64xf32>
    %234 = arith.mulf %233, %232 : vector<16x64xf32>
    %235 = math.tanh %234 : vector<16x64xf32>
    %cst_83 = arith.constant 1.000000e+00 : f32
    %236 = vector.broadcast %cst_83 : f32 to vector<16x64xf32>
    %237 = arith.addf %236, %235 : vector<16x64xf32>
    %cst_84 = arith.constant 5.000000e-01 : f32
    %238 = vector.broadcast %cst_84 : f32 to vector<16x64xf32>
    %239 = arith.mulf %238, %237 : vector<16x64xf32>
    %240 = arith.mulf %227, %239 : vector<16x64xf32>
    %c1_85 = arith.constant 1 : index
    %c0_86 = arith.constant 0 : index
    %c224_87 = arith.constant 224 : index
    %241 = vector.load %arg2[%c1_85, %c0_86, %c224_87] : memref<2x64x256xf32, #tpu.memory_space<vmem>>, vector<1x64x32xf32>
    %242 = vector.shape_cast %241 : vector<1x64x32xf32> to vector<64x32xf32>
    %cst_88 = arith.constant dense<0.000000e+00> : vector<16x32xf32>
    %243 = tpu.matmul %240, %242, %cst_88 {dimension_numbers = #tpu.dot_dimension_numbers<[1], [0], [0], [1], [0, 0, 1, 1], [], []>} : vector<16x64xf32>, vector<64x32xf32>, vector<16x32xf32> -> vector<16x32xf32>
    %c15 = arith.constant 15 : index
    %c0_89 = arith.constant 0 : index
    %244 = vector.load %arg3[%c15, %c0_89] : memref<24x128xf32, #tpu.memory_space<vmem>>, vector<1x32xf32>
    %245 = vector.broadcast %244 : vector<1x32xf32> to vector<16x32xf32>
    %246 = arith.addf %243, %245 : vector<16x32xf32>
    %247 = arith.addf %221, %246 : vector<16x32xf32>
    %c16 = arith.constant 16 : index
    %c0_90 = arith.constant 0 : index
    %248 = vector.load %arg3[%c16, %c0_90] : memref<24x128xf32, #tpu.memory_space<vmem>>, vector<1x32xf32>
    %c17 = arith.constant 17 : index
    %c0_91 = arith.constant 0 : index
    %249 = vector.load %arg3[%c17, %c0_91] : memref<24x128xf32, #tpu.memory_space<vmem>>, vector<1x32xf32>
    %cst_92 = arith.constant dense<0.000000e+00> : vector<16xf32>
    %250 = vector.multi_reduction <add>, %247, %cst_92 [1] : vector<16x32xf32> to vector<16xf32>
    %251 = vector.shape_cast %250 : vector<16xf32> to vector<16x1xf32>
    %cst_93 = arith.constant 3.200000e+01 : f32
    %252 = vector.broadcast %cst_93 : f32 to vector<16x1xf32>
    %253 = arith.divf %251, %252 : vector<16x1xf32>
    %254 = arith.mulf %247, %247 : vector<16x32xf32>
    %cst_94 = arith.constant dense<0.000000e+00> : vector<16xf32>
    %255 = vector.multi_reduction <add>, %254, %cst_94 [1] : vector<16x32xf32> to vector<16xf32>
    %256 = vector.shape_cast %255 : vector<16xf32> to vector<16x1xf32>
    %cst_95 = arith.constant 3.200000e+01 : f32
    %257 = vector.broadcast %cst_95 : f32 to vector<16x1xf32>
    %258 = arith.divf %256, %257 : vector<16x1xf32>
    %259 = arith.mulf %253, %253 : vector<16x1xf32>
    %260 = arith.subf %258, %259 : vector<16x1xf32>
    %cst_96 = arith.constant 0.000000e+00 : f32
    %261 = vector.broadcast %cst_96 : f32 to vector<16x1xf32>
    %262 = arith.maximumf %260, %261 : vector<16x1xf32>
    %263 = vector.broadcast %253 : vector<16x1xf32> to vector<16x32xf32>
    %264 = arith.subf %247, %263 : vector<16x32xf32>
    %cst_97 = arith.constant 9.99999996E-13 : f32
    %265 = vector.broadcast %cst_97 : f32 to vector<16x1xf32>
    %266 = arith.addf %262, %265 : vector<16x1xf32>
    %267 = math.rsqrt %266 : vector<16x1xf32>
    %268 = vector.broadcast %267 : vector<16x1xf32> to vector<16x32xf32>
    %269 = arith.mulf %264, %268 : vector<16x32xf32>
    %270 = vector.broadcast %248 : vector<1x32xf32> to vector<16x32xf32>
    %271 = arith.mulf %269, %270 : vector<16x32xf32>
    %272 = vector.broadcast %249 : vector<1x32xf32> to vector<16x32xf32>
    %273 = arith.addf %271, %272 : vector<16x32xf32>
    %c0_98 = arith.constant 0 : index
    %c0_99 = arith.constant 0 : index
    %274 = vector.load %arg4[%c0_98, %c0_99] : memref<168x32xf32, #tpu.memory_space<vmem>>, vector<32x32xf32>
    %cst_100 = arith.constant dense<0.000000e+00> : vector<16x32xf32>
    %275 = tpu.matmul %273, %274, %cst_100 {dimension_numbers = #tpu.dot_dimension_numbers<[1], [0], [0], [1], [0, 0, 1, 1], [], []>} : vector<16x32xf32>, vector<32x32xf32>, vector<16x32xf32> -> vector<16x32xf32>
    %c18 = arith.constant 18 : index
    %c0_101 = arith.constant 0 : index
    %276 = vector.load %arg3[%c18, %c0_101] : memref<24x128xf32, #tpu.memory_space<vmem>>, vector<1x32xf32>
    %277 = vector.broadcast %276 : vector<1x32xf32> to vector<16x32xf32>
    %278 = arith.addf %275, %277 : vector<16x32xf32>
    %279 = math.tanh %278 : vector<16x32xf32>
    %280 = vector.shape_cast %279 : vector<16x32xf32> to vector<2x8x32xf32>
    %281 = vector.shape_cast %273 : vector<16x32xf32> to vector<2x8x32xf32>
    %c160_102 = arith.constant 160 : index
    %c0_103 = arith.constant 0 : index
    %282 = vector.load %arg4[%c160_102, %c0_103] : memref<168x32xf32, #tpu.memory_space<vmem>>, vector<4x32xf32>
    %283 = vector.shape_cast %282 : vector<4x32xf32> to vector<2x2x32xf32>
    %284 = vector.extract_strided_slice %283 {offsets = [0, 0, 0], sizes = [1, 2, 32], strides = [1, 1, 1]} : vector<2x2x32xf32> to vector<1x2x32xf32>
    %285 = vector.shape_cast %284 : vector<1x2x32xf32> to vector<2x32xf32>
    %286 = vector.shape_cast %285 : vector<2x32xf32> to vector<2x1x32xf32>
    %287 = vector.broadcast %286 : vector<2x1x32xf32> to vector<2x8x32xf32>
    %288 = arith.mulf %280, %287 : vector<2x8x32xf32>
    %cst_104 = arith.constant dense<0.000000e+00> : vector<2x8xf32>
    %289 = vector.multi_reduction <add>, %288, %cst_104 [2] : vector<2x8x32xf32> to vector<2x8xf32>
    %cst_105 = arith.constant 0.000000e+00 : f32
    %290 = vector.broadcast %cst_105 : f32 to vector<2x8xf32>
    %291 = arith.cmpf oeq, %0, %290 : vector<2x8xf32>
    %cst_106 = arith.constant -1.000000e+09 : f32
    %292 = vector.broadcast %cst_106 : f32 to vector<2x8xf32>
    %293 = arith.select %291, %292, %289 : vector<2x8xi1>, vector<2x8xf32>
    %cst_107 = arith.constant dense<0xFF800000> : vector<2xf32>
    %294 = vector.multi_reduction <maximumf>, %293, %cst_107 [1] : vector<2x8xf32> to vector<2xf32>
    %295 = vector.shape_cast %294 : vector<2xf32> to vector<2x1xf32>
    %296 = vector.broadcast %295 : vector<2x1xf32> to vector<2x8xf32>
    %297 = arith.subf %293, %296 : vector<2x8xf32>
    %298 = math.exp %297 : vector<2x8xf32>
    %cst_108 = arith.constant dense<0.000000e+00> : vector<2xf32>
    %299 = vector.multi_reduction <add>, %298, %cst_108 [1] : vector<2x8xf32> to vector<2xf32>
    %300 = vector.shape_cast %299 : vector<2xf32> to vector<2x1xf32>
    %301 = vector.broadcast %300 : vector<2x1xf32> to vector<2x8xf32>
    %302 = arith.divf %298, %301 : vector<2x8xf32>
    %303 = vector.shape_cast %302 : vector<2x8xf32> to vector<2x8x1xf32>
    %304 = vector.broadcast %303 : vector<2x8x1xf32> to vector<2x8x32xf32>
    %305 = arith.mulf %304, %281 : vector<2x8x32xf32>
    %cst_109 = arith.constant dense<0.000000e+00> : vector<2x32xf32>
    %306 = vector.multi_reduction <add>, %305, %cst_109 [1] : vector<2x8x32xf32> to vector<2x32xf32>
    %307 = vector.extract_strided_slice %283 {offsets = [1, 0, 0], sizes = [1, 2, 32], strides = [1, 1, 1]} : vector<2x2x32xf32> to vector<1x2x32xf32>
    %308 = vector.shape_cast %307 : vector<1x2x32xf32> to vector<2x32xf32>
    %309 = vector.shape_cast %308 : vector<2x32xf32> to vector<2x1x32xf32>
    %310 = vector.broadcast %309 : vector<2x1x32xf32> to vector<2x8x32xf32>
    %311 = arith.mulf %280, %310 : vector<2x8x32xf32>
    %cst_110 = arith.constant dense<0.000000e+00> : vector<2x8xf32>
    %312 = vector.multi_reduction <add>, %311, %cst_110 [2] : vector<2x8x32xf32> to vector<2x8xf32>
    %cst_111 = arith.constant 0.000000e+00 : f32
    %313 = vector.broadcast %cst_111 : f32 to vector<2x8xf32>
    %314 = arith.cmpf oeq, %0, %313 : vector<2x8xf32>
    %cst_112 = arith.constant -1.000000e+09 : f32
    %315 = vector.broadcast %cst_112 : f32 to vector<2x8xf32>
    %316 = arith.select %314, %315, %312 : vector<2x8xi1>, vector<2x8xf32>
    %cst_113 = arith.constant dense<0xFF800000> : vector<2xf32>
    %317 = vector.multi_reduction <maximumf>, %316, %cst_113 [1] : vector<2x8xf32> to vector<2xf32>
    %318 = vector.shape_cast %317 : vector<2xf32> to vector<2x1xf32>
    %319 = vector.broadcast %318 : vector<2x1xf32> to vector<2x8xf32>
    %320 = arith.subf %316, %319 : vector<2x8xf32>
    %321 = math.exp %320 : vector<2x8xf32>
    %cst_114 = arith.constant dense<0.000000e+00> : vector<2xf32>
    %322 = vector.multi_reduction <add>, %321, %cst_114 [1] : vector<2x8xf32> to vector<2xf32>
    %323 = vector.shape_cast %322 : vector<2xf32> to vector<2x1xf32>
    %324 = vector.broadcast %323 : vector<2x1xf32> to vector<2x8xf32>
    %325 = arith.divf %321, %324 : vector<2x8xf32>
    %326 = vector.shape_cast %325 : vector<2x8xf32> to vector<2x8x1xf32>
    %327 = vector.broadcast %326 : vector<2x8x1xf32> to vector<2x8x32xf32>
    %328 = arith.mulf %327, %281 : vector<2x8x32xf32>
    %cst_115 = arith.constant dense<0.000000e+00> : vector<2x32xf32>
    %329 = vector.multi_reduction <add>, %328, %cst_115 [1] : vector<2x8x32xf32> to vector<2x32xf32>
    %330 = tpu.concatenate %306, %329 in 1 : vector<2x32xf32>, vector<2x32xf32> -> vector<2x64xf32>
    %c32 = arith.constant 32 : index
    %c0_116 = arith.constant 0 : index
    %331 = vector.load %arg4[%c32, %c0_116] : memref<168x32xf32, #tpu.memory_space<vmem>>, vector<64x32xf32>
    %cst_117 = arith.constant dense<0.000000e+00> : vector<2x32xf32>
    %332 = tpu.matmul %330, %331, %cst_117 {dimension_numbers = #tpu.dot_dimension_numbers<[1], [0], [0], [1], [0, 0, 1, 1], [], []>} : vector<2x64xf32>, vector<64x32xf32>, vector<2x32xf32> -> vector<2x32xf32>
    %c19 = arith.constant 19 : index
    %c0_118 = arith.constant 0 : index
    %333 = vector.load %arg3[%c19, %c0_118] : memref<24x128xf32, #tpu.memory_space<vmem>>, vector<1x32xf32>
    %334 = vector.broadcast %333 : vector<1x32xf32> to vector<2x32xf32>
    %335 = arith.addf %332, %334 : vector<2x32xf32>
    %cst_119 = arith.constant 0.000000e+00 : f32
    %336 = vector.broadcast %cst_119 : f32 to vector<2x32xf32>
    %337 = arith.maximumf %335, %336 : vector<2x32xf32>
    %c96 = arith.constant 96 : index
    %c0_120 = arith.constant 0 : index
    %338 = vector.load %arg4[%c96, %c0_120] : memref<168x32xf32, #tpu.memory_space<vmem>>, vector<32x32xf32>
    %cst_121 = arith.constant dense<0.000000e+00> : vector<2x32xf32>
    %339 = tpu.matmul %337, %338, %cst_121 {dimension_numbers = #tpu.dot_dimension_numbers<[1], [0], [0], [1], [0, 0, 1, 1], [], []>} : vector<2x32xf32>, vector<32x32xf32>, vector<2x32xf32> -> vector<2x32xf32>
    %c20 = arith.constant 20 : index
    %c0_122 = arith.constant 0 : index
    %340 = vector.load %arg3[%c20, %c0_122] : memref<24x128xf32, #tpu.memory_space<vmem>>, vector<1x32xf32>
    %341 = vector.broadcast %340 : vector<1x32xf32> to vector<2x32xf32>
    %342 = arith.addf %339, %341 : vector<2x32xf32>
    %343 = math.tanh %342 : vector<2x32xf32>
    %c128_123 = arith.constant 128 : index
    %c0_124 = arith.constant 0 : index
    %344 = vector.load %arg4[%c128_123, %c0_124] : memref<168x32xf32, #tpu.memory_space<vmem>>, vector<32x32xf32>
    %cst_125 = arith.constant dense<0.000000e+00> : vector<2x32xf32>
    %345 = tpu.matmul %343, %344, %cst_125 {dimension_numbers = #tpu.dot_dimension_numbers<[1], [0], [0], [1], [0, 0, 1, 1], [], []>} : vector<2x32xf32>, vector<32x32xf32>, vector<2x32xf32> -> vector<2x32xf32>
    %c21 = arith.constant 21 : index
    %c0_126 = arith.constant 0 : index
    %346 = vector.load %arg3[%c21, %c0_126] : memref<24x128xf32, #tpu.memory_space<vmem>>, vector<1x32xf32>
    %347 = vector.broadcast %346 : vector<1x32xf32> to vector<2x32xf32>
    %348 = arith.addf %345, %347 : vector<2x32xf32>
    %c0_127 = arith.constant 0 : index
    %c0_128 = arith.constant 0 : index
    %349 = vector.load %arg5[%c0_127, %c0_128] : memref<2x32xf32, #tpu.memory_space<vmem>>, vector<2x32xf32>
    tpu.vector_store %arg5[%c0_127, %c0_128], %348 {strides = array<i32>} : memref<2x32xf32, #tpu.memory_space<vmem>>, vector<2x32xf32>,
    return
  }
}

</mosaic_0001>

<llo_original>
// kernel: bert_for_absc.1
$region0: #{bert_for_absc.1}
  #allocation0 [shape = 'u32[]', space=smem, size = 0x4, offset = 0x4, fixed_abs, tag = 'smem constant byte address 0x4 - core index']
  #allocation1 [shape = 'u32[144,128]{1,0:T(1,128)}', space=vmem, size = 0x12000, scoped, tag = 'internal scratch']
  %s0 = inlined_call_operand.vmem [shape: f32[16,32], index: 0, kind: input, shape index: {}]
  %s1 = inlined_call_operand.vmem [shape: f32[2,8], index: 1, kind: input, shape index: {}]
  %s2 = inlined_call_operand.vmem [shape: f32[2,64,256], index: 2, kind: input, shape index: {}]
  %s3 = inlined_call_operand.vmem [shape: f32[24,128], index: 3, kind: input, shape index: {}]
  %s4 = inlined_call_operand.vmem [shape: f32[168,32], index: 4, kind: input, shape index: {}]
  %s5 = inlined_call_operand.hbm [shape: f32[2,32], index: 5, kind: output, shape index: {}]
  %s6 = sld [smem:[#allocation0]]
  $region30: #{bert_for_absc.1} parent=0
    _
  %s8 = ssub.s32 1, %s6
  %s9 = scalar_select 0, %s8, %s6
  $region1: #{bert_for_absc.1} parent=0
    #allocation2 [shape = 'u8[1024]{0}', space=vmem, size = 0x400, scoped, tag = 'output window, operand 0, single buffered']
    #allocation3 [shape = 's32[1]{0}', space=sflag, size = 0x4, scoped, tag = 'scoped memory for bert_for_absc.1']
    %10 = vsyncpa [#allocation3], 0
    // Predicated region
    $region2: #{bert_for_absc.1} parent=1 // pred_check
      _
    $region3: #{bert_for_absc.1} parent=1 // pred_check_branch
      %12 = sbr.rel (0) target = $region5
    $region4: #{bert_for_absc.1} parent=1 // pred_region
      _
    $region5: #{bert_for_absc.1} parent=1 // pred_fallthru
      _
    // Predicated region
    $region6: #{bert_for_absc.1} parent=1 // pred_check
      _
    $region7: #{bert_for_absc.1} parent=1 // pred_check_branch
      %14 = sbr.rel (0) target = $region9
    $region8: #{bert_for_absc.1} parent=1 // pred_region
      _
    $region9: #{bert_for_absc.1} parent=1 // pred_fallthru
      _
    // Predicated region
    $region10: #{bert_for_absc.1} parent=1 // pred_check
      _
    $region11: #{bert_for_absc.1} parent=1 // pred_check_branch
      %16 = sbr.rel (0) target = $region13
    $region12: #{bert_for_absc.1} parent=1 // pred_region
      _
    $region13: #{bert_for_absc.1} parent=1 // pred_fallthru
      _
    // Predicated region
    $region14: #{bert_for_absc.1} parent=1 // pred_check
      _
    $region15: #{bert_for_absc.1} parent=1 // pred_check_branch
      %18 = sbr.rel (0) target = $region17
    $region16: #{bert_for_absc.1} parent=1 // pred_region
      _
    $region17: #{bert_for_absc.1} parent=1 // pred_fallthru
      _
    // Predicated region
    $region18: #{bert_for_absc.1} parent=1 // pred_check
      _
    $region19: #{bert_for_absc.1} parent=1 // pred_check_branch
      %20 = sbr.rel (0) target = $region21
    $region20: #{bert_for_absc.1} parent=1 // pred_region
      _
    $region21: #{bert_for_absc.1} parent=1 // pred_fallthru
      _
    %v21 = vld [vmem:[%s1] sm:$0x3]
    %v22 = vsub.f32 1.0, %v21
    %v23 = vmul.f32 %v22, -1e+09
    %v25 = vrot.slane %v23, 6
    %vm27 = vcmask 1041408
    %v28 = vsel %vm27, %v23, %v25
    %v31 = vunpack.c.l.s4 1966171168
    %v32 = vunpack.c.0.s8 %v31
    %v33 = vlaneseq
    %v34 = vshrl.u32 %v33, 7
    %v35 = vsub.s32 %v32, %v34
    %v36 = vrot.slane %v28, %v35
    %v37 = vcombine.high %v36, %v36
    %v39 = vunpack.c.l.s4 1966171168
    %v40 = vunpack.c.0.s8 %v39
    %v41 = vlaneseq
    %v42 = vshrl.u32 %v41, 7
    %v43 = vsub.s32 %v40, %v42
    %v44 = vrot.slane %v36, %v43
    %v46 = vunpack.c.l.s4 1966171168
    %v47 = vunpack.c.0.s8 %v46
    %v48 = vlaneseq
    %v49 = vshrl.u32 %v48, 7
    %v50 = vsub.s32 %v47, %v49
    %v51 = vrot.slane %v37, %v50
    %v52 = vcombine.high %v44, %v44
    %v53 = vcombine.high %v51, %v51
    %v54 = vld [vmem:[%s0] sm:$0xff]
    %v55 = vld [vmem:[%s0 + $0x8] sm:$0xff]
    %v56 = vld [vmem:[%s3] sm:$0x1]
    %v57 = vld [vmem:[%s3 + $0x1] sm:$0x1]
    %vm58 = vcmask 261120
    %v59 = vsel %vm58, %v54, 0.0
    %60 = vadd.xlane.f32.xlu0 %v59
    %v61 = vpop.xlane.xlu0 %60
    %v62 = vsel %vm58, %v55, 0.0
    %63 = vadd.xlane.f32.xlu0 %v62
    %v64 = vpop.xlane.xlu0 %63
    %v65 = vrcp.pop 32.0
    %v66 = vmul.f32 %v61, %v65
    %v67 = vmul.f32 %v64, %v65
    %v68 = vmul.f32 %v54, %v54
    %v69 = vmul.f32 %v55, %v55
    %v70 = vsel %vm58, %v68, 0.0
    %71 = vadd.xlane.f32.xlu0 %v70
    %v72 = vpop.xlane.xlu0 %71
    %v73 = vsel %vm58, %v69, 0.0
    %74 = vadd.xlane.f32.xlu0 %v73
    %v75 = vpop.xlane.xlu0 %74
    %v76 = vmul.f32 %v72, %v65
    %v77 = vmul.f32 %v75, %v65
    %v78 = vmul.f32 %v66, %v66
    %v79 = vmul.f32 %v67, %v67
    %v80 = vsub.f32 %v76, %v78
    %v81 = vsub.f32 %v77, %v79
    %v82 = vmax.f32 %v80, 0.0
    %v83 = vmax.f32 %v81, 0.0
    %v84 = vsub.f32 %v54, %v66
    %v85 = vsub.f32 %v55, %v67
    %v86 = vadd.f32 %v82, 1e-12
    %v87 = vadd.f32 %v83, 1e-12
    %v88 = vrsqrt.pop %v86
    %v89 = vrsqrt.pop %v87
    %v90 = vmul.f32 %v84, %v88
    %v91 = vmul.f32 %v85, %v89
    %v92 = vlaneseq
    %v93 = vshrl.u32 %v92, 7
    %v94 = vsub.s32 0, %v93
    %v95 = vrot.slane %v56, %v94
    %v96 = vmul.f32 %v90, %v95
    %v97 = vmul.f32 %v91, %v95
    %v98 = vlaneseq
    %v99 = vshrl.u32 %v98, 7
    %v100 = vsub.s32 0, %v99
    %v101 = vrot.slane %v57, %v100
    %v102 = vadd.f32 %v96, %v101
    %v103 = vadd.f32 %v97, %v101
    %v104 = vld [vmem:[%s2] sm:$0xff]
    %v105 = vld [vmem:[%s2 + $0x10] sm:$0xff]
    %v106 = vld [vmem:[%s2 + $0x20] sm:$0xff]
    %v107 = vld [vmem:[%s2 + $0x30] sm:$0xff]
    %v108 = vld [vmem:[%s3 + $0x2] sm:$0x1]
    %v109 = vlaneseq
    %v110 = vshrl.u32 %v109, 7
    %v111 = vsub.s32 0, %v110
    %v112 = vrot.slane %v108, %v111
    %v114 = vsel %vm58, %v102, 0
    %v117 = vsel %vm58, %v103, 0
    %119 = vmatprep.subr.mxu0 0.0
    %120 = vmatpush1.msra.mxu0 %v104
    %121 = vmatprep.subr.mxu0 0.0
    %122 = vmatpush1.msra.mxu0 %v105
    %123 = vmatprep.subr.mxu0 0.0
    %124 = vmatpush1.msra.mxu0 %v106
    %125 = vmatprep.subr.mxu0 0.0
    %126 = vmatpush1.msra.mxu0 %v107
    %127 = vmatprep.subr.mxu0 0.0
    %128 = vmatpush1.msra.mxu0 0.0
    %129 = vmatprep.subr.mxu0 0.0
    %130 = vmatpush1.msra.mxu0 0.0
    %131 = vmatprep.subr.mxu0 0.0
    %132 = vmatpush1.msra.mxu0 0.0
    %133 = vmatprep.subr.mxu0 0.0
    %134 = vmatpush1.msra.mxu0 0.0
    %135 = vmatprep.subr.mxu0 0.0
    %136 = vmatpush1.msra.mxu0 0.0
    %137 = vmatprep.subr.mxu0 0.0
    %138 = vmatpush1.msra.mxu0 0.0
    %139 = vmatprep.subr.mxu0 0.0
    %140 = vmatpush1.msra.mxu0 0.0
    %141 = vmatprep.subr.mxu0 0.0
    %142 = vmatpush1.msra.mxu0 0.0
    %143 = vmatprep.subr.mxu0 0.0
    %144 = vmatpush1.msra.mxu0 0.0
    %145 = vmatprep.subr.mxu0 0.0
    %146 = vmatpush1.msra.mxu0 0.0
    %147 = vmatprep.subr.mxu0 0.0
    %148 = vmatpush1.msra.mxu0 0.0
    %149 = vmatprep.subr.mxu0 0.0
    %150 = vmatpush1.msra.mxu0 0.0
    %151 = vmatprep.subr.mxu0 0.0
    %152 = vmatpush1.msra.mxu0 0.0
    %153 = vmatprep.subr.mxu0 0.0
    %154 = vmatpush1.msra.mxu0 0.0
    %155 = vmatprep.subr.mxu0 0.0
    %156 = vmatpush1.msra.mxu0 0.0
    %157 = vmatprep.subr.mxu0 0.0
    %158 = vmatpush1.msra.mxu0 0.0
    %159 = vmatprep.subr.mxu0 0.0
    %160 = vmatpush1.msra.mxu0 0.0
    %161 = vmatprep.subr.mxu0 0.0
    %162 = vmatpush1.msra.mxu0 0.0
    %163 = vmatprep.subr.mxu0 0.0
    %164 = vmatpush1.msra.mxu0 0.0
    %165 = vmatprep.subr.mxu0 0.0
    %166 = vmatpush1.msra.mxu0 0.0
    %167 = vmatprep.subr.mxu0 0.0
    %168 = vmatpush1.msra.mxu0 0.0
    %169 = vmatprep.subr.mxu0 0.0
    %170 = vmatpush1.msra.mxu0 0.0
    %171 = vmatprep.subr.mxu0 0.0
    %172 = vmatpush1.msra.mxu0 0.0
    %173 = vmatprep.subr.mxu0 0.0
    %174 = vmatpush1.msra.mxu0 0.0
    %175 = vmatprep.subr.mxu0 0.0
    %176 = vmatpush1.msra.mxu0 0.0
    %177 = vmatprep.subr.mxu0 0.0
    %178 = vmatpush1.msra.mxu0 0.0
    %179 = vmatprep.subr.mxu0 0.0
    %180 = vmatpush1.msra.mxu0 0.0
    %181 = vmatprep.subr.mxu0 0.0
    %182 = vmatpush1.msra.mxu0 0.0
    %183 = vmatprep.mubr.f32.mxu0 0.0
    %184 = vmatmul.mubr.f32.gmra.mrb[0].mxu0 %v114
    %v185 = vpop.f32.mrb[0].mxu0
    %v186 = vadd.f32 %v112, %v185
    %v187 = vpop.f32.mrb[0].mxu0
    %188 = vmatprep.mubr.f32.mxu0 0.0
    %189 = vmatmul.mubr.f32.gmra.mrb[0].mxu0 %v117
    %v190 = vpop.f32.mrb[0].mxu0
    %v191 = vadd.f32 %v112, %v190
    %v192 = vpop.f32.mrb[0].mxu0
    %193 = vdwg.mxu0
    %196 = vrot.lane.b32.xlu0 %v186, 112
    %v197 = vpop.permute.xlu0 %196
    %198 = vrot.lane.b32.xlu0 %v191, 112
    %v199 = vpop.permute.xlu0 %198
    %v200 = vlaneseq
    %v201 = vshrl.u32 %v200, 7
    %v202 = vsub.s32 0, %v201
    %v203 = vrot.slane %v44, %v202
    %v204 = vlaneseq
    %v205 = vshrl.u32 %v204, 7
    %v206 = vsub.s32 0, %v205
    %v207 = vrot.slane %v51, %v206
    %v208 = vlaneseq
    %v209 = vshrl.u32 %v208, 7
    %v210 = vsub.s32 0, %v209
    %v211 = vrot.slane %v52, %v210
    %v212 = vlaneseq
    %v213 = vshrl.u32 %v212, 7
    %v214 = vsub.s32 0, %v213
    %v215 = vrot.slane %v53, %v214
    %220 = vrot.lane.b32.xlu0 %v186, 96
    %v221 = vpop.permute.xlu0 %220
    %vm222 = vcmask 130048
    %v223 = vsel %vm222, %v186, 0
    %v225 = vsel %vm222, %v221, 0
    %227 = vmatprep.subr.mxu0 0.0
    %228 = vmatpush1.xpose.msra.mxu0 %v225
    %229 = vmatprep.subr.mxu0 0.0
    %230 = vmatpush1.xpose.msra.mxu0 0.0
    %231 = vmatprep.subr.mxu0 0.0
    %232 = vmatpush1.xpose.msra.mxu0 0.0
    %233 = vmatprep.subr.mxu0 0.0
    %234 = vmatpush1.xpose.msra.mxu0 0.0
    %235 = vmatprep.subr.mxu0 0.0
    %236 = vmatpush1.xpose.msra.mxu0 0.0
    %237 = vmatprep.subr.mxu0 0.0
    %238 = vmatpush1.xpose.msra.mxu0 0.0
    %239 = vmatprep.subr.mxu0 0.0
    %240 = vmatpush1.xpose.msra.mxu0 0.0
    %241 = vmatprep.subr.mxu0 0.0
    %242 = vmatpush1.xpose.msra.mxu0 0.0
    %243 = vmatprep.subr.mxu0 0.0
    %244 = vmatpush1.xpose.msra.mxu0 0.0
    %245 = vmatprep.subr.mxu0 0.0
    %246 = vmatpush1.xpose.msra.mxu0 0.0
    %247 = vmatprep.subr.mxu0 0.0
    %248 = vmatpush1.xpose.msra.mxu0 0.0
    %249 = vmatprep.subr.mxu0 0.0
    %250 = vmatpush1.xpose.msra.mxu0 0.0
    %251 = vmatprep.subr.mxu0 0.0
    %252 = vmatpush1.xpose.msra.mxu0 0.0
    %253 = vmatprep.subr.mxu0 0.0
    %254 = vmatpush1.xpose.msra.mxu0 0.0
    %255 = vmatprep.subr.mxu0 0.0
    %256 = vmatpush1.xpose.msra.mxu0 0.0
    %257 = vmatprep.subr.mxu0 0.0
    %258 = vmatpush1.xpose.msra.mxu0 0.0
    %259 = vmatprep.subr.mxu0 0.0
    %260 = vmatpush1.xpose.msra.mxu0 0.0
    %261 = vmatprep.subr.mxu0 0.0
    %262 = vmatpush1.xpose.msra.mxu0 0.0
    %263 = vmatprep.subr.mxu0 0.0
    %264 = vmatpush1.xpose.msra.mxu0 0.0
    %265 = vmatprep.subr.mxu0 0.0
    %266 = vmatpush1.xpose.msra.mxu0 0.0
    %267 = vmatprep.subr.mxu0 0.0
    %268 = vmatpush1.xpose.msra.mxu0 0.0
    %269 = vmatprep.subr.mxu0 0.0
    %270 = vmatpush1.xpose.msra.mxu0 0.0
    %271 = vmatprep.subr.mxu0 0.0
    %272 = vmatpush1.xpose.msra.mxu0 0.0
    %273 = vmatprep.subr.mxu0 0.0
    %274 = vmatpush1.xpose.msra.mxu0 0.0
    %275 = vmatprep.subr.mxu0 0.0
    %276 = vmatpush1.xpose.msra.mxu0 0.0
    %277 = vmatprep.subr.mxu0 0.0
    %278 = vmatpush1.xpose.msra.mxu0 0.0
    %279 = vmatprep.subr.mxu0 0.0
    %280 = vmatpush1.xpose.msra.mxu0 0.0
    %281 = vmatprep.subr.mxu0 0.0
    %282 = vmatpush1.xpose.msra.mxu0 0.0
    %283 = vmatprep.subr.mxu0 0.0
    %284 = vmatpush1.xpose.msra.mxu0 0.0
    %285 = vmatprep.subr.mxu0 0.0
    %286 = vmatpush1.xpose.msra.mxu0 0.0
    %287 = vmatprep.subr.mxu0 0.0
    %288 = vmatpush1.xpose.msra.mxu0 0.0
    %289 = vmatprep.subr.mxu0 0.0
    %290 = vmatpush1.xpose.msra.mxu0 0.0
    %291 = vmatprep.mubr.f32.mxu0 0.0
    %292 = vmatmul.mubr.f32.gmra.mrb[0].mxu0 %v223
    %v293 = vpop.f32.mrb[0].mxu0
    %v294 = vadd.f32 %v203, %v293
    %v295 = vpop.f32.mrb[0].mxu0
    %296 = vdwg.mxu0
    %297 = vrot.lane.b32.xlu0 %v191, 96
    %v298 = vpop.permute.xlu0 %297
    %v299 = vsel %vm222, %v191, 0
    %v301 = vsel %vm222, %v298, 0
    %303 = vmatprep.subr.mxu0 0.0
    %304 = vmatpush1.xpose.msra.mxu0 %v301
    %305 = vmatprep.subr.mxu0 0.0
    %306 = vmatpush1.xpose.msra.mxu0 0.0
    %307 = vmatprep.subr.mxu0 0.0
    %308 = vmatpush1.xpose.msra.mxu0 0.0
    %309 = vmatprep.subr.mxu0 0.0
    %310 = vmatpush1.xpose.msra.mxu0 0.0
    %311 = vmatprep.subr.mxu0 0.0
    %312 = vmatpush1.xpose.msra.mxu0 0.0
    %313 = vmatprep.subr.mxu0 0.0
    %314 = vmatpush1.xpose.msra.mxu0 0.0
    %315 = vmatprep.subr.mxu0 0.0
    %316 = vmatpush1.xpose.msra.mxu0 0.0
    %317 = vmatprep.subr.mxu0 0.0
    %318 = vmatpush1.xpose.msra.mxu0 0.0
    %319 = vmatprep.subr.mxu0 0.0
    %320 = vmatpush1.xpose.msra.mxu0 0.0
    %321 = vmatprep.subr.mxu0 0.0
    %322 = vmatpush1.xpose.msra.mxu0 0.0
    %323 = vmatprep.subr.mxu0 0.0
    %324 = vmatpush1.xpose.msra.mxu0 0.0
    %325 = vmatprep.subr.mxu0 0.0
    %326 = vmatpush1.xpose.msra.mxu0 0.0
    %327 = vmatprep.subr.mxu0 0.0
    %328 = vmatpush1.xpose.msra.mxu0 0.0
    %329 = vmatprep.subr.mxu0 0.0
    %330 = vmatpush1.xpose.msra.mxu0 0.0
    %331 = vmatprep.subr.mxu0 0.0
    %332 = vmatpush1.xpose.msra.mxu0 0.0
    %333 = vmatprep.subr.mxu0 0.0
    %334 = vmatpush1.xpose.msra.mxu0 0.0
    %335 = vmatprep.subr.mxu0 0.0
    %336 = vmatpush1.xpose.msra.mxu0 0.0
    %337 = vmatprep.subr.mxu0 0.0
    %338 = vmatpush1.xpose.msra.mxu0 0.0
    %339 = vmatprep.subr.mxu0 0.0
    %340 = vmatpush1.xpose.msra.mxu0 0.0
    %341 = vmatprep.subr.mxu0 0.0
    %342 = vmatpush1.xpose.msra.mxu0 0.0
    %343 = vmatprep.subr.mxu0 0.0
    %344 = vmatpush1.xpose.msra.mxu0 0.0
    %345 = vmatprep.subr.mxu0 0.0
    %346 = vmatpush1.xpose.msra.mxu0 0.0
    %347 = vmatprep.subr.mxu0 0.0
    %348 = vmatpush1.xpose.msra.mxu0 0.0
    %349 = vmatprep.subr.mxu0 0.0
    %350 = vmatpush1.xpose.msra.mxu0 0.0
    %351 = vmatprep.subr.mxu0 0.0
    %352 = vmatpush1.xpose.msra.mxu0 0.0
    %353 = vmatprep.subr.mxu0 0.0
    %354 = vmatpush1.xpose.msra.mxu0 0.0
    %355 = vmatprep.subr.mxu0 0.0
    %356 = vmatpush1.xpose.msra.mxu0 0.0
    %357 = vmatprep.subr.mxu0 0.0
    %358 = vmatpush1.xpose.msra.mxu0 0.0
    %359 = vmatprep.subr.mxu0 0.0
    %360 = vmatpush1.xpose.msra.mxu0 0.0
    %361 = vmatprep.subr.mxu0 0.0
    %362 = vmatpush1.xpose.msra.mxu0 0.0
    %363 = vmatprep.subr.mxu0 0.0
    %364 = vmatpush1.xpose.msra.mxu0 0.0
    %365 = vmatprep.subr.mxu0 0.0
    %366 = vmatpush1.xpose.msra.mxu0 0.0
    %367 = vmatprep.mubr.f32.mxu0 0.0
    %368 = vmatmul.mubr.f32.gmra.mrb[0].mxu0 %v299
    %v369 = vpop.f32.mrb[0].mxu0
    %v370 = vadd.f32 %v207, %v369
    %v371 = vpop.f32.mrb[0].mxu0
    %372 = vdwg.mxu0
    %373 = vrot.lane.b32.xlu0 %v197, 96
    %v374 = vpop.permute.xlu0 %373
    %v375 = vsel %vm222, %v197, 0
    %v377 = vsel %vm222, %v374, 0
    %379 = vmatprep.subr.mxu0 0.0
    %380 = vmatpush1.xpose.msra.mxu0 %v377
    %381 = vmatprep.subr.mxu0 0.0
    %382 = vmatpush1.xpose.msra.mxu0 0.0
    %383 = vmatprep.subr.mxu0 0.0
    %384 = vmatpush1.xpose.msra.mxu0 0.0
    %385 = vmatprep.subr.mxu0 0.0
    %386 = vmatpush1.xpose.msra.mxu0 0.0
    %387 = vmatprep.subr.mxu0 0.0
    %388 = vmatpush1.xpose.msra.mxu0 0.0
    %389 = vmatprep.subr.mxu0 0.0
    %390 = vmatpush1.xpose.msra.mxu0 0.0
    %391 = vmatprep.subr.mxu0 0.0
    %392 = vmatpush1.xpose.msra.mxu0 0.0
    %393 = vmatprep.subr.mxu0 0.0
    %394 = vmatpush1.xpose.msra.mxu0 0.0
    %395 = vmatprep.subr.mxu0 0.0
    %396 = vmatpush1.xpose.msra.mxu0 0.0
    %397 = vmatprep.subr.mxu0 0.0
    %398 = vmatpush1.xpose.msra.mxu0 0.0
    %399 = vmatprep.subr.mxu0 0.0
    %400 = vmatpush1.xpose.msra.mxu0 0.0
    %401 = vmatprep.subr.mxu0 0.0
    %402 = vmatpush1.xpose.msra.mxu0 0.0
    %403 = vmatprep.subr.mxu0 0.0
    %404 = vmatpush1.xpose.msra.mxu0 0.0
    %405 = vmatprep.subr.mxu0 0.0
    %406 = vmatpush1.xpose.msra.mxu0 0.0
    %407 = vmatprep.subr.mxu0 0.0
    %408 = vmatpush1.xpose.msra.mxu0 0.0
    %409 = vmatprep.subr.mxu0 0.0
    %410 = vmatpush1.xpose.msra.mxu0 0.0
    %411 = vmatprep.subr.mxu0 0.0
    %412 = vmatpush1.xpose.msra.mxu0 0.0
    %413 = vmatprep.subr.mxu0 0.0
    %414 = vmatpush1.xpose.msra.mxu0 0.0
    %415 = vmatprep.subr.mxu0 0.0
    %416 = vmatpush1.xpose.msra.mxu0 0.0
    %417 = vmatprep.subr.mxu0 0.0
    %418 = vmatpush1.xpose.msra.mxu0 0.0
    %419 = vmatprep.subr.mxu0 0.0
    %420 = vmatpush1.xpose.msra.mxu0 0.0
    %421 = vmatprep.subr.mxu0 0.0
    %422 = vmatpush1.xpose.msra.mxu0 0.0
    %423 = vmatprep.subr.mxu0 0.0
    %424 = vmatpush1.xpose.msra.mxu0 0.0
    %425 = vmatprep.subr.mxu0 0.0
    %426 = vmatpush1.xpose.msra.mxu0 0.0
    %427 = vmatprep.subr.mxu0 0.0
    %428 = vmatpush1.xpose.msra.mxu0 0.0
    %429 = vmatprep.subr.mxu0 0.0
    %430 = vmatpush1.xpose.msra.mxu0 0.0
    %431 = vmatprep.subr.mxu0 0.0
    %432 = vmatpush1.xpose.msra.mxu0 0.0
    %433 = vmatprep.subr.mxu0 0.0
    %434 = vmatpush1.xpose.msra.mxu0 0.0
    %435 = vmatprep.subr.mxu0 0.0
    %436 = vmatpush1.xpose.msra.mxu0 0.0
    %437 = vmatprep.subr.mxu0 0.0
    %438 = vmatpush1.xpose.msra.mxu0 0.0
    %439 = vmatprep.subr.mxu0 0.0
    %440 = vmatpush1.xpose.msra.mxu0 0.0
    %441 = vmatprep.subr.mxu0 0.0
    %442 = vmatpush1.xpose.msra.mxu0 0.0
    %443 = vmatprep.mubr.f32.mxu0 0.0
    %444 = vmatmul.mubr.f32.gmra.mrb[0].mxu0 %v375
    %v445 = vpop.f32.mrb[0].mxu0
    %v446 = vadd.f32 %v211, %v445
    %v447 = vpop.f32.mrb[0].mxu0
    %448 = vdwg.mxu0
    %449 = vrot.lane.b32.xlu0 %v199, 96
    %v450 = vpop.permute.xlu0 %449
    %v451 = vsel %vm222, %v199, 0
    %v453 = vsel %vm222, %v450, 0
    %455 = vmatprep.subr.mxu0 0.0
    %456 = vmatpush1.xpose.msra.mxu0 %v453
    %457 = vmatprep.subr.mxu0 0.0
    %458 = vmatpush1.xpose.msra.mxu0 0.0
    %459 = vmatprep.subr.mxu0 0.0
    %460 = vmatpush1.xpose.msra.mxu0 0.0
    %461 = vmatprep.subr.mxu0 0.0
    %462 = vmatpush1.xpose.msra.mxu0 0.0
    %463 = vmatprep.subr.mxu0 0.0
    %464 = vmatpush1.xpose.msra.mxu0 0.0
    %465 = vmatprep.subr.mxu0 0.0
    %466 = vmatpush1.xpose.msra.mxu0 0.0
    %467 = vmatprep.subr.mxu0 0.0
    %468 = vmatpush1.xpose.msra.mxu0 0.0
    %469 = vmatprep.subr.mxu0 0.0
    %470 = vmatpush1.xpose.msra.mxu0 0.0
    %471 = vmatprep.subr.mxu0 0.0
    %472 = vmatpush1.xpose.msra.mxu0 0.0
    %473 = vmatprep.subr.mxu0 0.0
    %474 = vmatpush1.xpose.msra.mxu0 0.0
    %475 = vmatprep.subr.mxu0 0.0
    %476 = vmatpush1.xpose.msra.mxu0 0.0
    %477 = vmatprep.subr.mxu0 0.0
    %478 = vmatpush1.xpose.msra.mxu0 0.0
    %479 = vmatprep.subr.mxu0 0.0
    %480 = vmatpush1.xpose.msra.mxu0 0.0
    %481 = vmatprep.subr.mxu0 0.0
    %482 = vmatpush1.xpose.msra.mxu0 0.0
    %483 = vmatprep.subr.mxu0 0.0
    %484 = vmatpush1.xpose.msra.mxu0 0.0
    %485 = vmatprep.subr.mxu0 0.0
    %486 = vmatpush1.xpose.msra.mxu0 0.0
    %487 = vmatprep.subr.mxu0 0.0
    %488 = vmatpush1.xpose.msra.mxu0 0.0
    %489 = vmatprep.subr.mxu0 0.0
    %490 = vmatpush1.xpose.msra.mxu0 0.0
    %491 = vmatprep.subr.mxu0 0.0
    %492 = vmatpush1.xpose.msra.mxu0 0.0
    %493 = vmatprep.subr.mxu0 0.0
    %494 = vmatpush1.xpose.msra.mxu0 0.0
    %495 = vmatprep.subr.mxu0 0.0
    %496 = vmatpush1.xpose.msra.mxu0 0.0
    %497 = vmatprep.subr.mxu0 0.0
    %498 = vmatpush1.xpose.msra.mxu0 0.0
    %499 = vmatprep.subr.mxu0 0.0
    %500 = vmatpush1.xpose.msra.mxu0 0.0
    %501 = vmatprep.subr.mxu0 0.0
    %502 = vmatpush1.xpose.msra.mxu0 0.0
    %503 = vmatprep.subr.mxu0 0.0
    %504 = vmatpush1.xpose.msra.mxu0 0.0
    %505 = vmatprep.subr.mxu0 0.0
    %506 = vmatpush1.xpose.msra.mxu0 0.0
    %507 = vmatprep.subr.mxu0 0.0
    %508 = vmatpush1.xpose.msra.mxu0 0.0
    %509 = vmatprep.subr.mxu0 0.0
    %510 = vmatpush1.xpose.msra.mxu0 0.0
    %511 = vmatprep.subr.mxu0 0.0
    %512 = vmatpush1.xpose.msra.mxu0 0.0
    %513 = vmatprep.subr.mxu0 0.0
    %514 = vmatpush1.xpose.msra.mxu0 0.0
    %515 = vmatprep.subr.mxu0 0.0
    %516 = vmatpush1.xpose.msra.mxu0 0.0
    %517 = vmatprep.subr.mxu0 0.0
    %518 = vmatpush1.xpose.msra.mxu0 0.0
    %519 = vmatprep.mubr.f32.mxu0 0.0
    %520 = vmatmul.mubr.f32.gmra.mrb[0].mxu0 %v451
    %v521 = vpop.f32.mrb[0].mxu0
    %v522 = vadd.f32 %v215, %v521
    %v523 = vpop.f32.mrb[0].mxu0
    %524 = vdwg.mxu0
    %vm525 = vcmask 64512
    %v526 = vsel %vm525, %v294, -inf
    %527 = vmax.xlane.f32.xlu0 %v526
    %v528 = vpop.xlane.xlu0 %527
    %v529 = vsel %vm525, %v370, -inf
    %530 = vmax.xlane.f32.xlu0 %v529
    %v531 = vpop.xlane.xlu0 %530
    %v532 = vsel %vm525, %v446, -inf
    %533 = vmax.xlane.f32.xlu0 %v532
    %v534 = vpop.xlane.xlu0 %533
    %v535 = vsel %vm525, %v522, -inf
    %536 = vmax.xlane.f32.xlu0 %v535
    %v537 = vpop.xlane.xlu0 %536
    %v538 = vsub.f32 %v294, %v528
    %v539 = vsub.f32 %v370, %v531
    %v540 = vsub.f32 %v446, %v534
    %v541 = vsub.f32 %v522, %v537
    %v542 = vmul.f32 %v538, 1.442695
    %v543 = vpow.pop %v542
    %v544 = vmul.f32 %v539, 1.442695
    %v545 = vpow.pop %v544
    %v546 = vmul.f32 %v540, 1.442695
    %v547 = vpow.pop %v546
    %v548 = vmul.f32 %v541, 1.442695
    %v549 = vpow.pop %v548
    %v550 = vsel %vm525, %v543, 0.0
    %551 = vadd.xlane.f32.xlu0 %v550
    %v552 = vpop.xlane.xlu0 %551
    %v553 = vsel %vm525, %v545, 0.0
    %554 = vadd.xlane.f32.xlu0 %v553
    %v555 = vpop.xlane.xlu0 %554
    %v556 = vsel %vm525, %v547, 0.0
    %557 = vadd.xlane.f32.xlu0 %v556
    %v558 = vpop.xlane.xlu0 %557
    %v559 = vsel %vm525, %v549, 0.0
    %560 = vadd.xlane.f32.xlu0 %v559
    %v561 = vpop.xlane.xlu0 %560
    %v562 = vrcp.pop %v552
    %v563 = vmul.f32 %v543, %v562
    %v564 = vrcp.pop %v555
    %v565 = vmul.f32 %v545, %v564
    %v566 = vrcp.pop %v558
    %v567 = vmul.f32 %v547, %v566
    %v568 = vrcp.pop %v561
    %v569 = vmul.f32 %v549, %v568
    %570 = vrot.lane.b32.xlu0 %v186, 64
    %v571 = vpop.permute.xlu0 %570
    %v574 = vsel %vm525, %v563, 0
    %576 = vmatprep.subr.mxu0 0.0
    %577 = vmatpush1.msra.mxu0 %v571
    %578 = vmatprep.subr.mxu0 0.0
    %579 = vmatpush1.msra.mxu0 0.0
    %580 = vmatprep.subr.mxu0 0.0
    %581 = vmatpush1.msra.mxu0 0.0
    %582 = vmatprep.subr.mxu0 0.0
    %583 = vmatpush1.msra.mxu0 0.0
    %584 = vmatprep.subr.mxu0 0.0
    %585 = vmatpush1.msra.mxu0 0.0
    %586 = vmatprep.subr.mxu0 0.0
    %587 = vmatpush1.msra.mxu0 0.0
    %588 = vmatprep.subr.mxu0 0.0
    %589 = vmatpush1.msra.mxu0 0.0
    %590 = vmatprep.subr.mxu0 0.0
    %591 = vmatpush1.msra.mxu0 0.0
    %592 = vmatprep.subr.mxu0 0.0
    %593 = vmatpush1.msra.mxu0 0.0
    %594 = vmatprep.subr.mxu0 0.0
    %595 = vmatpush1.msra.mxu0 0.0
    %596 = vmatprep.subr.mxu0 0.0
    %597 = vmatpush1.msra.mxu0 0.0
    %598 = vmatprep.subr.mxu0 0.0
    %599 = vmatpush1.msra.mxu0 0.0
    %600 = vmatprep.subr.mxu0 0.0
    %601 = vmatpush1.msra.mxu0 0.0
    %602 = vmatprep.subr.mxu0 0.0
    %603 = vmatpush1.msra.mxu0 0.0
    %604 = vmatprep.subr.mxu0 0.0
    %605 = vmatpush1.msra.mxu0 0.0
    %606 = vmatprep.subr.mxu0 0.0
    %607 = vmatpush1.msra.mxu0 0.0
    %608 = vmatprep.subr.mxu0 0.0
    %609 = vmatpush1.msra.mxu0 0.0
    %610 = vmatprep.subr.mxu0 0.0
    %611 = vmatpush1.msra.mxu0 0.0
    %612 = vmatprep.subr.mxu0 0.0
    %613 = vmatpush1.msra.mxu0 0.0
    %614 = vmatprep.subr.mxu0 0.0
    %615 = vmatpush1.msra.mxu0 0.0
    %616 = vmatprep.subr.mxu0 0.0
    %617 = vmatpush1.msra.mxu0 0.0
    %618 = vmatprep.subr.mxu0 0.0
    %619 = vmatpush1.msra.mxu0 0.0
    %620 = vmatprep.subr.mxu0 0.0
    %621 = vmatpush1.msra.mxu0 0.0
    %622 = vmatprep.subr.mxu0 0.0
    %623 = vmatpush1.msra.mxu0 0.0
    %624 = vmatprep.subr.mxu0 0.0
    %625 = vmatpush1.msra.mxu0 0.0
    %626 = vmatprep.subr.mxu0 0.0
    %627 = vmatpush1.msra.mxu0 0.0
    %628 = vmatprep.subr.mxu0 0.0
    %629 = vmatpush1.msra.mxu0 0.0
    %630 = vmatprep.subr.mxu0 0.0
    %631 = vmatpush1.msra.mxu0 0.0
    %632 = vmatprep.subr.mxu0 0.0
    %633 = vmatpush1.msra.mxu0 0.0
    %634 = vmatprep.subr.mxu0 0.0
    %635 = vmatpush1.msra.mxu0 0.0
    %636 = vmatprep.subr.mxu0 0.0
    %637 = vmatpush1.msra.mxu0 0.0
    %638 = vmatprep.subr.mxu0 0.0
    %639 = vmatpush1.msra.mxu0 0.0
    %640 = vmatprep.mubr.f32.mxu0 0.0
    %641 = vmatmul.mubr.f32.gmra.mrb[0].mxu0 %v574
    %v642 = vpop.f32.mrb[0].mxu0
    %v643 = vadd.f32 0.0, %v642
    %v644 = vpop.f32.mrb[0].mxu0
    %645 = vdwg.mxu0
    %646 = vrot.lane.b32.xlu0 %v191, 64
    %v647 = vpop.permute.xlu0 %646
    %v650 = vsel %vm525, %v565, 0
    %652 = vmatprep.subr.mxu0 0.0
    %653 = vmatpush1.msra.mxu0 %v647
    %654 = vmatprep.subr.mxu0 0.0
    %655 = vmatpush1.msra.mxu0 0.0
    %656 = vmatprep.subr.mxu0 0.0
    %657 = vmatpush1.msra.mxu0 0.0
    %658 = vmatprep.subr.mxu0 0.0
    %659 = vmatpush1.msra.mxu0 0.0
    %660 = vmatprep.subr.mxu0 0.0
    %661 = vmatpush1.msra.mxu0 0.0
    %662 = vmatprep.subr.mxu0 0.0
    %663 = vmatpush1.msra.mxu0 0.0
    %664 = vmatprep.subr.mxu0 0.0
    %665 = vmatpush1.msra.mxu0 0.0
    %666 = vmatprep.subr.mxu0 0.0
    %667 = vmatpush1.msra.mxu0 0.0
    %668 = vmatprep.subr.mxu0 0.0
    %669 = vmatpush1.msra.mxu0 0.0
    %670 = vmatprep.subr.mxu0 0.0
    %671 = vmatpush1.msra.mxu0 0.0
    %672 = vmatprep.subr.mxu0 0.0
    %673 = vmatpush1.msra.mxu0 0.0
    %674 = vmatprep.subr.mxu0 0.0
    %675 = vmatpush1.msra.mxu0 0.0
    %676 = vmatprep.subr.mxu0 0.0
    %677 = vmatpush1.msra.mxu0 0.0
    %678 = vmatprep.subr.mxu0 0.0
    %679 = vmatpush1.msra.mxu0 0.0
    %680 = vmatprep.subr.mxu0 0.0
    %681 = vmatpush1.msra.mxu0 0.0
    %682 = vmatprep.subr.mxu0 0.0
    %683 = vmatpush1.msra.mxu0 0.0
    %684 = vmatprep.subr.mxu0 0.0
    %685 = vmatpush1.msra.mxu0 0.0
    %686 = vmatprep.subr.mxu0 0.0
    %687 = vmatpush1.msra.mxu0 0.0
    %688 = vmatprep.subr.mxu0 0.0
    %689 = vmatpush1.msra.mxu0 0.0
    %690 = vmatprep.subr.mxu0 0.0
    %691 = vmatpush1.msra.mxu0 0.0
    %692 = vmatprep.subr.mxu0 0.0
    %693 = vmatpush1.msra.mxu0 0.0
    %694 = vmatprep.subr.mxu0 0.0
    %695 = vmatpush1.msra.mxu0 0.0
    %696 = vmatprep.subr.mxu0 0.0
    %697 = vmatpush1.msra.mxu0 0.0
    %698 = vmatprep.subr.mxu0 0.0
    %699 = vmatpush1.msra.mxu0 0.0
    %700 = vmatprep.subr.mxu0 0.0
    %701 = vmatpush1.msra.mxu0 0.0
    %702 = vmatprep.subr.mxu0 0.0
    %703 = vmatpush1.msra.mxu0 0.0
    %704 = vmatprep.subr.mxu0 0.0
    %705 = vmatpush1.msra.mxu0 0.0
    %706 = vmatprep.subr.mxu0 0.0
    %707 = vmatpush1.msra.mxu0 0.0
    %708 = vmatprep.subr.mxu0 0.0
    %709 = vmatpush1.msra.mxu0 0.0
    %710 = vmatprep.subr.mxu0 0.0
    %711 = vmatpush1.msra.mxu0 0.0
    %712 = vmatprep.subr.mxu0 0.0
    %713 = vmatpush1.msra.mxu0 0.0
    %714 = vmatprep.subr.mxu0 0.0
    %715 = vmatpush1.msra.mxu0 0.0
    %716 = vmatprep.mubr.f32.mxu0 0.0
    %717 = vmatmul.mubr.f32.gmra.mrb[0].mxu0 %v650
    %v718 = vpop.f32.mrb[0].mxu0
    %v719 = vadd.f32 0.0, %v718
    %v720 = vpop.f32.mrb[0].mxu0
    %721 = vdwg.mxu0
    %722 = vrot.lane.b32.xlu0 %v197, 64
    %v723 = vpop.permute.xlu0 %722
    %v726 = vsel %vm525, %v567, 0
    %728 = vmatprep.subr.mxu0 0.0
    %729 = vmatpush1.msra.mxu0 %v723
    %730 = vmatprep.subr.mxu0 0.0
    %731 = vmatpush1.msra.mxu0 0.0
    %732 = vmatprep.subr.mxu0 0.0
    %733 = vmatpush1.msra.mxu0 0.0
    %734 = vmatprep.subr.mxu0 0.0
    %735 = vmatpush1.msra.mxu0 0.0
    %736 = vmatprep.subr.mxu0 0.0
    %737 = vmatpush1.msra.mxu0 0.0
    %738 = vmatprep.subr.mxu0 0.0
    %739 = vmatpush1.msra.mxu0 0.0
    %740 = vmatprep.subr.mxu0 0.0
    %741 = vmatpush1.msra.mxu0 0.0
    %742 = vmatprep.subr.mxu0 0.0
    %743 = vmatpush1.msra.mxu0 0.0
    %744 = vmatprep.subr.mxu0 0.0
    %745 = vmatpush1.msra.mxu0 0.0
    %746 = vmatprep.subr.mxu0 0.0
    %747 = vmatpush1.msra.mxu0 0.0
    %748 = vmatprep.subr.mxu0 0.0
    %749 = vmatpush1.msra.mxu0 0.0
    %750 = vmatprep.subr.mxu0 0.0
    %751 = vmatpush1.msra.mxu0 0.0
    %752 = vmatprep.subr.mxu0 0.0
    %753 = vmatpush1.msra.mxu0 0.0
    %754 = vmatprep.subr.mxu0 0.0
    %755 = vmatpush1.msra.mxu0 0.0
    %756 = vmatprep.subr.mxu0 0.0
    %757 = vmatpush1.msra.mxu0 0.0
    %758 = vmatprep.subr.mxu0 0.0
    %759 = vmatpush1.msra.mxu0 0.0
    %760 = vmatprep.subr.mxu0 0.0
    %761 = vmatpush1.msra.mxu0 0.0
    %762 = vmatprep.subr.mxu0 0.0
    %763 = vmatpush1.msra.mxu0 0.0
    %764 = vmatprep.subr.mxu0 0.0
    %765 = vmatpush1.msra.mxu0 0.0
    %766 = vmatprep.subr.mxu0 0.0
    %767 = vmatpush1.msra.mxu0 0.0
    %768 = vmatprep.subr.mxu0 0.0
    %769 = vmatpush1.msra.mxu0 0.0
    %770 = vmatprep.subr.mxu0 0.0
    %771 = vmatpush1.msra.mxu0 0.0
    %772 = vmatprep.subr.mxu0 0.0
    %773 = vmatpush1.msra.mxu0 0.0
    %774 = vmatprep.subr.mxu0 0.0
    %775 = vmatpush1.msra.mxu0 0.0
    %776 = vmatprep.subr.mxu0 0.0
    %777 = vmatpush1.msra.mxu0 0.0
    %778 = vmatprep.subr.mxu0 0.0
    %779 = vmatpush1.msra.mxu0 0.0
    %780 = vmatprep.subr.mxu0 0.0
    %781 = vmatpush1.msra.mxu0 0.0
    %782 = vmatprep.subr.mxu0 0.0
    %783 = vmatpush1.msra.mxu0 0.0
    %784 = vmatprep.subr.mxu0 0.0
    %785 = vmatpush1.msra.mxu0 0.0
    %786 = vmatprep.subr.mxu0 0.0
    %787 = vmatpush1.msra.mxu0 0.0
    %788 = vmatprep.subr.mxu0 0.0
    %789 = vmatpush1.msra.mxu0 0.0
    %790 = vmatprep.subr.mxu0 0.0
    %791 = vmatpush1.msra.mxu0 0.0
    %792 = vmatprep.mubr.f32.mxu0 0.0
    %793 = vmatmul.mubr.f32.gmra.mrb[0].mxu0 %v726
    %v794 = vpop.f32.mrb[0].mxu0
    %v795 = vadd.f32 0.0, %v794
    %v796 = vpop.f32.mrb[0].mxu0
    %797 = vdwg.mxu0
    %798 = vrot.lane.b32.xlu0 %v199, 64
    %v799 = vpop.permute.xlu0 %798
    %v802 = vsel %vm525, %v569, 0
    %804 = vmatprep.subr.mxu0 0.0
    %805 = vmatpush1.msra.mxu0 %v799
    %806 = vmatprep.subr.mxu0 0.0
    %807 = vmatpush1.msra.mxu0 0.0
    %808 = vmatprep.subr.mxu0 0.0
    %809 = vmatpush1.msra.mxu0 0.0
    %810 = vmatprep.subr.mxu0 0.0
    %811 = vmatpush1.msra.mxu0 0.0
    %812 = vmatprep.subr.mxu0 0.0
    %813 = vmatpush1.msra.mxu0 0.0
    %814 = vmatprep.subr.mxu0 0.0
    %815 = vmatpush1.msra.mxu0 0.0
    %816 = vmatprep.subr.mxu0 0.0
    %817 = vmatpush1.msra.mxu0 0.0
    %818 = vmatprep.subr.mxu0 0.0
    %819 = vmatpush1.msra.mxu0 0.0
    %820 = vmatprep.subr.mxu0 0.0
    %821 = vmatpush1.msra.mxu0 0.0
    %822 = vmatprep.subr.mxu0 0.0
    %823 = vmatpush1.msra.mxu0 0.0
    %824 = vmatprep.subr.mxu0 0.0
    %825 = vmatpush1.msra.mxu0 0.0
    %826 = vmatprep.subr.mxu0 0.0
    %827 = vmatpush1.msra.mxu0 0.0
    %828 = vmatprep.subr.mxu0 0.0
    %829 = vmatpush1.msra.mxu0 0.0
    %830 = vmatprep.subr.mxu0 0.0
    %831 = vmatpush1.msra.mxu0 0.0
    %832 = vmatprep.subr.mxu0 0.0
    %833 = vmatpush1.msra.mxu0 0.0
    %834 = vmatprep.subr.mxu0 0.0
    %835 = vmatpush1.msra.mxu0 0.0
    %836 = vmatprep.subr.mxu0 0.0
    %837 = vmatpush1.msra.mxu0 0.0
    %838 = vmatprep.subr.mxu0 0.0
    %839 = vmatpush1.msra.mxu0 0.0
    %840 = vmatprep.subr.mxu0 0.0
    %841 = vmatpush1.msra.mxu0 0.0
    %842 = vmatprep.subr.mxu0 0.0
    %843 = vmatpush1.msra.mxu0 0.0
    %844 = vmatprep.subr.mxu0 0.0
    %845 = vmatpush1.msra.mxu0 0.0
    %846 = vmatprep.subr.mxu0 0.0
    %847 = vmatpush1.msra.mxu0 0.0
    %848 = vmatprep.subr.mxu0 0.0
    %849 = vmatpush1.msra.mxu0 0.0
    %850 = vmatprep.subr.mxu0 0.0
    %851 = vmatpush1.msra.mxu0 0.0
    %852 = vmatprep.subr.mxu0 0.0
    %853 = vmatpush1.msra.mxu0 0.0
    %854 = vmatprep.subr.mxu0 0.0
    %855 = vmatpush1.msra.mxu0 0.0
    %856 = vmatprep.subr.mxu0 0.0
    %857 = vmatpush1.msra.mxu0 0.0
    %858 = vmatprep.subr.mxu0 0.0
    %859 = vmatpush1.msra.mxu0 0.0
    %860 = vmatprep.subr.mxu0 0.0
    %861 = vmatpush1.msra.mxu0 0.0
    %862 = vmatprep.subr.mxu0 0.0
    %863 = vmatpush1.msra.mxu0 0.0
    %864 = vmatprep.subr.mxu0 0.0
    %865 = vmatpush1.msra.mxu0 0.0
    %866 = vmatprep.subr.mxu0 0.0
    %867 = vmatpush1.msra.mxu0 0.0
    %868 = vmatprep.mubr.f32.mxu0 0.0
    %869 = vmatmul.mubr.f32.gmra.mrb[0].mxu0 %v802
    %v870 = vpop.f32.mrb[0].mxu0
    %v871 = vadd.f32 0.0, %v870
    %v872 = vpop.f32.mrb[0].mxu0
    %873 = vdwg.mxu0
    %876 = vrot.lane.b32.xlu0 %v795, 16
    %v877 = vpop.permute.xlu0 %876
    %878 = vrot.lane.b32.xlu0 %v871, 16
    %v879 = vpop.permute.xlu0 %878
    %v882 = vsel %vm222, %v643, %v877
    %v883 = vsel %vm222, %v719, %v879
    %v884 = vld [vmem:[%s2 + $0x8] sm:$0xff]
    %v885 = vld [vmem:[%s2 + $0x18] sm:$0xff]
    %v886 = vld [vmem:[%s2 + $0x28] sm:$0xff]
    %v887 = vld [vmem:[%s2 + $0x38] sm:$0xff]
    %v888 = vld [vmem:[%s3 + $0x3] sm:$0x1]
    %v889 = vlaneseq
    %v890 = vshrl.u32 %v889, 7
    %v891 = vsub.s32 0, %v890
    %v892 = vrot.slane %v888, %v891
    %v894 = vsel %vm58, %v882, 0
    %v897 = vsel %vm58, %v883, 0
    %899 = vmatprep.subr.mxu0 0.0
    %900 = vmatpush1.msra.mxu0 %v884
    %901 = vmatprep.subr.mxu0 0.0
    %902 = vmatpush1.msra.mxu0 %v885
    %903 = vmatprep.subr.mxu0 0.0
    %904 = vmatpush1.msra.mxu0 %v886
    %905 = vmatprep.subr.mxu0 0.0
    %906 = vmatpush1.msra.mxu0 %v887
    %907 = vmatprep.subr.mxu0 0.0
    %908 = vmatpush1.msra.mxu0 0.0
    %909 = vmatprep.subr.mxu0 0.0
    %910 = vmatpush1.msra.mxu0 0.0
    %911 = vmatprep.subr.mxu0 0.0
    %912 = vmatpush1.msra.mxu0 0.0
    %913 = vmatprep.subr.mxu0 0.0
    %914 = vmatpush1.msra.mxu0 0.0
    %915 = vmatprep.subr.mxu0 0.0
    %916 = vmatpush1.msra.mxu0 0.0
    %917 = vmatprep.subr.mxu0 0.0
    %918 = vmatpush1.msra.mxu0 0.0
    %919 = vmatprep.subr.mxu0 0.0
    %920 = vmatpush1.msra.mxu0 0.0
    %921 = vmatprep.subr.mxu0 0.0
    %922 = vmatpush1.msra.mxu0 0.0
    %923 = vmatprep.subr.mxu0 0.0
    %924 = vmatpush1.msra.mxu0 0.0
    %925 = vmatprep.subr.mxu0 0.0
    %926 = vmatpush1.msra.mxu0 0.0
    %927 = vmatprep.subr.mxu0 0.0
    %928 = vmatpush1.msra.mxu0 0.0
    %929 = vmatprep.subr.mxu0 0.0
    %930 = vmatpush1.msra.mxu0 0.0
    %931 = vmatprep.subr.mxu0 0.0
    %932 = vmatpush1.msra.mxu0 0.0
    %933 = vmatprep.subr.mxu0 0.0
    %934 = vmatpush1.msra.mxu0 0.0
    %935 = vmatprep.subr.mxu0 0.0
    %936 = vmatpush1.msra.mxu0 0.0
    %937 = vmatprep.subr.mxu0 0.0
    %938 = vmatpush1.msra.mxu0 0.0
    %939 = vmatprep.subr.mxu0 0.0
    %940 = vmatpush1.msra.mxu0 0.0
    %941 = vmatprep.subr.mxu0 0.0
    %942 = vmatpush1.msra.mxu0 0.0
    %943 = vmatprep.subr.mxu0 0.0
    %944 = vmatpush1.msra.mxu0 0.0
    %945 = vmatprep.subr.mxu0 0.0
    %946 = vmatpush1.msra.mxu0 0.0
    %947 = vmatprep.subr.mxu0 0.0
    %948 = vmatpush1.msra.mxu0 0.0
    %949 = vmatprep.subr.mxu0 0.0
    %950 = vmatpush1.msra.mxu0 0.0
    %951 = vmatprep.subr.mxu0 0.0
    %952 = vmatpush1.msra.mxu0 0.0
    %953 = vmatprep.subr.mxu0 0.0
    %954 = vmatpush1.msra.mxu0 0.0
    %955 = vmatprep.subr.mxu0 0.0
    %956 = vmatpush1.msra.mxu0 0.0
    %957 = vmatprep.subr.mxu0 0.0
    %958 = vmatpush1.msra.mxu0 0.0
    %959 = vmatprep.subr.mxu0 0.0
    %960 = vmatpush1.msra.mxu0 0.0
    %961 = vmatprep.subr.mxu0 0.0
    %962 = vmatpush1.msra.mxu0 0.0
    %963 = vmatprep.mubr.f32.mxu0 0.0
    %964 = vmatmul.mubr.f32.gmra.mrb[0].mxu0 %v894
    %v965 = vpop.f32.mrb[0].mxu0
    %v966 = vadd.f32 %v892, %v965
    %v967 = vpop.f32.mrb[0].mxu0
    %968 = vmatprep.mubr.f32.mxu0 0.0
    %969 = vmatmul.mubr.f32.gmra.mrb[0].mxu0 %v897
    %v970 = vpop.f32.mrb[0].mxu0
    %v971 = vadd.f32 %v892, %v970
    %v972 = vpop.f32.mrb[0].mxu0
    %973 = vdwg.mxu0
    %v974 = vadd.f32 %v102, %v966
    %v975 = vadd.f32 %v103, %v971
    %v976 = vld [vmem:[%s3 + $0x4] sm:$0x1]
    %v977 = vld [vmem:[%s3 + $0x5] sm:$0x1]
    %v978 = vsel %vm58, %v974, 0.0
    %979 = vadd.xlane.f32.xlu0 %v978
    %v980 = vpop.xlane.xlu0 %979
    %v981 = vsel %vm58, %v975, 0.0
    %982 = vadd.xlane.f32.xlu0 %v981
    %v983 = vpop.xlane.xlu0 %982
    %v984 = vmul.f32 %v980, %v65
    %v985 = vmul.f32 %v983, %v65
    %v986 = vmul.f32 %v974, %v974
    %v987 = vmul.f32 %v975, %v975
    %v988 = vsel %vm58, %v986, 0.0
    %989 = vadd.xlane.f32.xlu0 %v988
    %v990 = vpop.xlane.xlu0 %989
    %v991 = vsel %vm58, %v987, 0.0
    %992 = vadd.xlane.f32.xlu0 %v991
    %v993 = vpop.xlane.xlu0 %992
    %v994 = vmul.f32 %v990, %v65
    %v995 = vmul.f32 %v993, %v65
    %v996 = vmul.f32 %v984, %v984
    %v997 = vmul.f32 %v985, %v985
    %v998 = vsub.f32 %v994, %v996
    %v999 = vsub.f32 %v995, %v997
    %v1000 = vmax.f32 %v998, 0.0
    %v1001 = vmax.f32 %v999, 0.0
    %v1002 = vsub.f32 %v974, %v984
    %v1003 = vsub.f32 %v975, %v985
    %v1004 = vadd.f32 %v1000, 1e-12
    %v1005 = vadd.f32 %v1001, 1e-12
    %v1006 = vrsqrt.pop %v1004
    %v1007 = vrsqrt.pop %v1005
    %v1008 = vmul.f32 %v1002, %v1006
    %v1009 = vmul.f32 %v1003, %v1007
    %v1010 = vlaneseq
    %v1011 = vshrl.u32 %v1010, 7
    %v1012 = vsub.s32 0, %v1011
    %v1013 = vrot.slane %v976, %v1012
    %v1014 = vmul.f32 %v1008, %v1013
    %v1015 = vmul.f32 %v1009, %v1013
    %v1016 = vlaneseq
    %v1017 = vshrl.u32 %v1016, 7
    %v1018 = vsub.s32 0, %v1017
    %v1019 = vrot.slane %v977, %v1018
    %v1020 = vadd.f32 %v1014, %v1019
    %v1021 = vadd.f32 %v1015, %v1019
    %v1022 = vld [vmem:[%s3 + $0x6] sm:$0x1]
    %v1023 = vlaneseq
    %v1024 = vshrl.u32 %v1023, 7
    %v1025 = vsub.s32 0, %v1024
    %v1026 = vrot.slane %v1022, %v1025
    %1031 = vrot.lane.b32.xlu0 %v884, 96
    %v1032 = vpop.permute.xlu0 %1031
    %1033 = vrot.lane.b32.xlu0 %v885, 96
    %v1034 = vpop.permute.xlu0 %1033
    %1035 = vrot.lane.b32.xlu0 %v886, 96
    %v1036 = vpop.permute.xlu0 %1035
    %1037 = vrot.lane.b32.xlu0 %v887, 96
    %v1038 = vpop.permute.xlu0 %1037
    %v1044 = vsel %vm58, %v1020, 0
    %v1047 = vsel %vm58, %v1021, 0
    %1049 = vmatprep.subr.mxu0 0.0
    %1050 = vmatpush1.msra.mxu0 %v1032
    %1051 = vmatprep.subr.mxu0 0.0
    %1052 = vmatpush1.msra.mxu0 %v1034
    %1053 = vmatprep.subr.mxu0 0.0
    %1054 = vmatpush1.msra.mxu0 %v1036
    %1055 = vmatprep.subr.mxu0 0.0
    %1056 = vmatpush1.msra.mxu0 %v1038
    %1057 = vmatprep.subr.mxu0 0.0
    %1058 = vmatpush1.msra.mxu0 0.0
    %1059 = vmatprep.subr.mxu0 0.0
    %1060 = vmatpush1.msra.mxu0 0.0
    %1061 = vmatprep.subr.mxu0 0.0
    %1062 = vmatpush1.msra.mxu0 0.0
    %1063 = vmatprep.subr.mxu0 0.0
    %1064 = vmatpush1.msra.mxu0 0.0
    %1065 = vmatprep.subr.mxu0 0.0
    %1066 = vmatpush1.msra.mxu0 0.0
    %1067 = vmatprep.subr.mxu0 0.0
    %1068 = vmatpush1.msra.mxu0 0.0
    %1069 = vmatprep.subr.mxu0 0.0
    %1070 = vmatpush1.msra.mxu0 0.0
    %1071 = vmatprep.subr.mxu0 0.0
    %1072 = vmatpush1.msra.mxu0 0.0
    %1073 = vmatprep.subr.mxu0 0.0
    %1074 = vmatpush1.msra.mxu0 0.0
    %1075 = vmatprep.subr.mxu0 0.0
    %1076 = vmatpush1.msra.mxu0 0.0
    %1077 = vmatprep.subr.mxu0 0.0
    %1078 = vmatpush1.msra.mxu0 0.0
    %1079 = vmatprep.subr.mxu0 0.0
    %1080 = vmatpush1.msra.mxu0 0.0
    %1081 = vmatprep.subr.mxu0 0.0
    %1082 = vmatpush1.msra.mxu0 0.0
    %1083 = vmatprep.subr.mxu0 0.0
    %1084 = vmatpush1.msra.mxu0 0.0
    %1085 = vmatprep.subr.mxu0 0.0
    %1086 = vmatpush1.msra.mxu0 0.0
    %1087 = vmatprep.subr.mxu0 0.0
    %1088 = vmatpush1.msra.mxu0 0.0
    %1089 = vmatprep.subr.mxu0 0.0
    %1090 = vmatpush1.msra.mxu0 0.0
    %1091 = vmatprep.subr.mxu0 0.0
    %1092 = vmatpush1.msra.mxu0 0.0
    %1093 = vmatprep.subr.mxu0 0.0
    %1094 = vmatpush1.msra.mxu0 0.0
    %1095 = vmatprep.subr.mxu0 0.0
    %1096 = vmatpush1.msra.mxu0 0.0
    %1097 = vmatprep.subr.mxu0 0.0
    %1098 = vmatpush1.msra.mxu0 0.0
    %1099 = vmatprep.subr.mxu0 0.0
    %1100 = vmatpush1.msra.mxu0 0.0
    %1101 = vmatprep.subr.mxu0 0.0
    %1102 = vmatpush1.msra.mxu0 0.0
    %1103 = vmatprep.subr.mxu0 0.0
    %1104 = vmatpush1.msra.mxu0 0.0
    %1105 = vmatprep.subr.mxu0 0.0
    %1106 = vmatpush1.msra.mxu0 0.0
    %1107 = vmatprep.subr.mxu0 0.0
    %1108 = vmatpush1.msra.mxu0 0.0
    %1109 = vmatprep.subr.mxu0 0.0
    %1110 = vmatpush1.msra.mxu0 0.0
    %1111 = vmatprep.subr.mxu0 0.0
    %1112 = vmatpush1.msra.mxu0 0.0
    %1113 = vmatprep.mubr.f32.mxu0 0.0
    %1114 = vmatmul.mubr.f32.gmra.mrb[0].mxu0 %v1044
    %v1115 = vpop.f32.mrb[0].mxu0
    %v1116 = vadd.f32 %v1026, %v1115
    %v1117 = vpop.f32.mrb[0].mxu0
    %1118 = vmatprep.mubr.f32.mxu0 0.0
    %1119 = vmatmul.mubr.f32.gmra.mrb[0].mxu0 %v1047
    %v1120 = vpop.f32.mrb[0].mxu0
    %v1121 = vadd.f32 %v1026, %v1120
    %v1122 = vpop.f32.mrb[0].mxu0
    %1123 = vdwg.mxu0
    %v1124 = vmul.f32 %v1116, %v1116
    %v1125 = vmul.f32 %v1121, %v1121
    %v1126 = vmul.f32 %v1116, %v1124
    %v1127 = vmul.f32 %v1121, %v1125
    %v1128 = vmul.f32 %v1126, 0.044715
    %v1129 = vmul.f32 %v1127, 0.044715
    %v1130 = vadd.f32 %v1116, %v1128
    %v1131 = vadd.f32 %v1121, %v1129
    %v1132 = vmul.f32 %v1130, 0.7978846
    %v1133 = vmul.f32 %v1131, 0.7978846
    %v1134 = vtanh.pop %v1132
    %v1135 = vtanh.pop %v1133
    %v1136 = vadd.f32 %v1134, 1.0
    %v1137 = vadd.f32 %v1135, 1.0
    %v1138 = vmul.f32 %v1136, 0.5
    %v1139 = vmul.f32 %v1137, 0.5
    %v1140 = vmul.f32 %v1116, %v1138
    %v1141 = vmul.f32 %v1121, %v1139
    %v1142 = vld [vmem:[%s2 + $0x8] sm:$0xff]
    %v1143 = vld [vmem:[%s2 + $0x18] sm:$0xff]
    %v1144 = vld [vmem:[%s2 + $0x28] sm:$0xff]
    %v1145 = vld [vmem:[%s2 + $0x38] sm:$0xff]
    %v1146 = vld [vmem:[%s2 + $0x48] sm:$0xff]
    %v1147 = vld [vmem:[%s2 + $0x58] sm:$0xff]
    %v1148 = vld [vmem:[%s2 + $0x68] sm:$0xff]
    %v1149 = vld [vmem:[%s2 + $0x78] sm:$0xff]
    %v1150 = vld [vmem:[%s3 + $0x7] sm:$0x1]
    %v1151 = vlaneseq
    %v1152 = vshrl.u32 %v1151, 7
    %v1153 = vsub.s32 0, %v1152
    %v1154 = vrot.slane %v1150, %v1153
    %1163 = vrot.lane.b32.xlu0 %v1142, 32
    %v1164 = vpop.permute.xlu0 %1163
    %1165 = vrot.lane.b32.xlu0 %v1143, 32
    %v1166 = vpop.permute.xlu0 %1165
    %1167 = vrot.lane.b32.xlu0 %v1144, 32
    %v1168 = vpop.permute.xlu0 %1167
    %1169 = vrot.lane.b32.xlu0 %v1145, 32
    %v1170 = vpop.permute.xlu0 %1169
    %1171 = vrot.lane.b32.xlu0 %v1146, 32
    %v1172 = vpop.permute.xlu0 %1171
    %1173 = vrot.lane.b32.xlu0 %v1147, 32
    %v1174 = vpop.permute.xlu0 %1173
    %1175 = vrot.lane.b32.xlu0 %v1148, 32
    %v1176 = vpop.permute.xlu0 %1175
    %1177 = vrot.lane.b32.xlu0 %v1149, 32
    %v1178 = vpop.permute.xlu0 %1177
    %vm1187 = vcmask 523264
    %v1189 = vsel %vm1187, %v1140, 0
    %v1192 = vsel %vm1187, %v1141, 0
    %1194 = vmatprep.subr.mxu0 0.0
    %1195 = vmatpush1.msra.mxu0 %v1164
    %1196 = vmatprep.subr.mxu0 0.0
    %1197 = vmatpush1.msra.mxu0 %v1166
    %1198 = vmatprep.subr.mxu0 0.0
    %1199 = vmatpush1.msra.mxu0 %v1168
    %1200 = vmatprep.subr.mxu0 0.0
    %1201 = vmatpush1.msra.mxu0 %v1170
    %1202 = vmatprep.subr.mxu0 0.0
    %1203 = vmatpush1.msra.mxu0 %v1172
    %1204 = vmatprep.subr.mxu0 0.0
    %1205 = vmatpush1.msra.mxu0 %v1174
    %1206 = vmatprep.subr.mxu0 0.0
    %1207 = vmatpush1.msra.mxu0 %v1176
    %1208 = vmatprep.subr.mxu0 0.0
    %1209 = vmatpush1.msra.mxu0 %v1178
    %1210 = vmatprep.subr.mxu0 0.0
    %1211 = vmatpush1.msra.mxu0 0.0
    %1212 = vmatprep.subr.mxu0 0.0
    %1213 = vmatpush1.msra.mxu0 0.0
    %1214 = vmatprep.subr.mxu0 0.0
    %1215 = vmatpush1.msra.mxu0 0.0
    %1216 = vmatprep.subr.mxu0 0.0
    %1217 = vmatpush1.msra.mxu0 0.0
    %1218 = vmatprep.subr.mxu0 0.0
    %1219 = vmatpush1.msra.mxu0 0.0
    %1220 = vmatprep.subr.mxu0 0.0
    %1221 = vmatpush1.msra.mxu0 0.0
    %1222 = vmatprep.subr.mxu0 0.0
    %1223 = vmatpush1.msra.mxu0 0.0
    %1224 = vmatprep.subr.mxu0 0.0
    %1225 = vmatpush1.msra.mxu0 0.0
    %1226 = vmatprep.subr.mxu0 0.0
    %1227 = vmatpush1.msra.mxu0 0.0
    %1228 = vmatprep.subr.mxu0 0.0
    %1229 = vmatpush1.msra.mxu0 0.0
    %1230 = vmatprep.subr.mxu0 0.0
    %1231 = vmatpush1.msra.mxu0 0.0
    %1232 = vmatprep.subr.mxu0 0.0
    %1233 = vmatpush1.msra.mxu0 0.0
    %1234 = vmatprep.subr.mxu0 0.0
    %1235 = vmatpush1.msra.mxu0 0.0
    %1236 = vmatprep.subr.mxu0 0.0
    %1237 = vmatpush1.msra.mxu0 0.0
    %1238 = vmatprep.subr.mxu0 0.0
    %1239 = vmatpush1.msra.mxu0 0.0
    %1240 = vmatprep.subr.mxu0 0.0
    %1241 = vmatpush1.msra.mxu0 0.0
    %1242 = vmatprep.subr.mxu0 0.0
    %1243 = vmatpush1.msra.mxu0 0.0
    %1244 = vmatprep.subr.mxu0 0.0
    %1245 = vmatpush1.msra.mxu0 0.0
    %1246 = vmatprep.subr.mxu0 0.0
    %1247 = vmatpush1.msra.mxu0 0.0
    %1248 = vmatprep.subr.mxu0 0.0
    %1249 = vmatpush1.msra.mxu0 0.0
    %1250 = vmatprep.subr.mxu0 0.0
    %1251 = vmatpush1.msra.mxu0 0.0
    %1252 = vmatprep.subr.mxu0 0.0
    %1253 = vmatpush1.msra.mxu0 0.0
    %1254 = vmatprep.subr.mxu0 0.0
    %1255 = vmatpush1.msra.mxu0 0.0
    %1256 = vmatprep.subr.mxu0 0.0
    %1257 = vmatpush1.msra.mxu0 0.0
    %1258 = vmatprep.mubr.f32.mxu0 0.0
    %1259 = vmatmul.mubr.f32.gmra.mrb[0].mxu0 %v1189
    %v1260 = vpop.f32.mrb[0].mxu0
    %v1261 = vadd.f32 %v1154, %v1260
    %v1262 = vpop.f32.mrb[0].mxu0
    %1263 = vmatprep.mubr.f32.mxu0 0.0
    %1264 = vmatmul.mubr.f32.gmra.mrb[0].mxu0 %v1192
    %v1265 = vpop.f32.mrb[0].mxu0
    %v1266 = vadd.f32 %v1154, %v1265
    %v1267 = vpop.f32.mrb[0].mxu0
    %1268 = vdwg.mxu0
    %v1269 = vadd.f32 %v1020, %v1261
    %v1270 = vadd.f32 %v1021, %v1266
    %v1271 = vld [vmem:[%s3 + $0x8] sm:$0x1]
    %v1272 = vld [vmem:[%s3 + $0x9] sm:$0x1]
    %v1273 = vsel %vm58, %v1269, 0.0
    %1274 = vadd.xlane.f32.xlu0 %v1273
    %v1275 = vpop.xlane.xlu0 %1274
    %v1276 = vsel %vm58, %v1270, 0.0
    %1277 = vadd.xlane.f32.xlu0 %v1276
    %v1278 = vpop.xlane.xlu0 %1277
    %v1279 = vmul.f32 %v1275, %v65
    %v1280 = vmul.f32 %v1278, %v65
    %v1281 = vmul.f32 %v1269, %v1269
    %v1282 = vmul.f32 %v1270, %v1270
    %v1283 = vsel %vm58, %v1281, 0.0
    %1284 = vadd.xlane.f32.xlu0 %v1283
    %v1285 = vpop.xlane.xlu0 %1284
    %v1286 = vsel %vm58, %v1282, 0.0
    %1287 = vadd.xlane.f32.xlu0 %v1286
    %v1288 = vpop.xlane.xlu0 %1287
    %v1289 = vmul.f32 %v1285, %v65
    %v1290 = vmul.f32 %v1288, %v65
    %v1291 = vmul.f32 %v1279, %v1279
    %v1292 = vmul.f32 %v1280, %v1280
    %v1293 = vsub.f32 %v1289, %v1291
    %v1294 = vsub.f32 %v1290, %v1292
    %v1295 = vmax.f32 %v1293, 0.0
    %v1296 = vmax.f32 %v1294, 0.0
    %v1297 = vsub.f32 %v1269, %v1279
    %v1298 = vsub.f32 %v1270, %v1280
    %v1299 = vadd.f32 %v1295, 1e-12
    %v1300 = vadd.f32 %v1296, 1e-12
    %v1301 = vrsqrt.pop %v1299
    %v1302 = vrsqrt.pop %v1300
    %v1303 = vmul.f32 %v1297, %v1301
    %v1304 = vmul.f32 %v1298, %v1302
    %v1305 = vlaneseq
    %v1306 = vshrl.u32 %v1305, 7
    %v1307 = vsub.s32 0, %v1306
    %v1308 = vrot.slane %v1271, %v1307
    %v1309 = vmul.f32 %v1303, %v1308
    %v1310 = vmul.f32 %v1304, %v1308
    %v1311 = vlaneseq
    %v1312 = vshrl.u32 %v1311, 7
    %v1313 = vsub.s32 0, %v1312
    %v1314 = vrot.slane %v1272, %v1313
    %v1315 = vadd.f32 %v1309, %v1314
    %v1316 = vadd.f32 %v1310, %v1314
    %s1317 = scalar_lea.vmem %s2, 128
    %v1318 = vld [vmem:[%s1317] sm:$0xff]
    %v1319 = vld [vmem:[%s1317 + $0x10] sm:$0xff]
    %v1320 = vld [vmem:[%s1317 + $0x20] sm:$0xff]
    %v1321 = vld [vmem:[%s1317 + $0x30] sm:$0xff]
    %v1322 = vld [vmem:[%s3 + $0xa] sm:$0x1]
    %v1323 = vlaneseq
    %v1324 = vshrl.u32 %v1323, 7
    %v1325 = vsub.s32 0, %v1324
    %v1326 = vrot.slane %v1322, %v1325
    %v1328 = vsel %vm58, %v1315, 0
    %v1331 = vsel %vm58, %v1316, 0
    %1333 = vmatprep.subr.mxu0 0.0
    %1334 = vmatpush1.msra.mxu0 %v1318
    %1335 = vmatprep.subr.mxu0 0.0
    %1336 = vmatpush1.msra.mxu0 %v1319
    %1337 = vmatprep.subr.mxu0 0.0
    %1338 = vmatpush1.msra.mxu0 %v1320
    %1339 = vmatprep.subr.mxu0 0.0
    %1340 = vmatpush1.msra.mxu0 %v1321
    %1341 = vmatprep.subr.mxu0 0.0
    %1342 = vmatpush1.msra.mxu0 0.0
    %1343 = vmatprep.subr.mxu0 0.0
    %1344 = vmatpush1.msra.mxu0 0.0
    %1345 = vmatprep.subr.mxu0 0.0
    %1346 = vmatpush1.msra.mxu0 0.0
    %1347 = vmatprep.subr.mxu0 0.0
    %1348 = vmatpush1.msra.mxu0 0.0
    %1349 = vmatprep.subr.mxu0 0.0
    %1350 = vmatpush1.msra.mxu0 0.0
    %1351 = vmatprep.subr.mxu0 0.0
    %1352 = vmatpush1.msra.mxu0 0.0
    %1353 = vmatprep.subr.mxu0 0.0
    %1354 = vmatpush1.msra.mxu0 0.0
    %1355 = vmatprep.subr.mxu0 0.0
    %1356 = vmatpush1.msra.mxu0 0.0
    %1357 = vmatprep.subr.mxu0 0.0
    %1358 = vmatpush1.msra.mxu0 0.0
    %1359 = vmatprep.subr.mxu0 0.0
    %1360 = vmatpush1.msra.mxu0 0.0
    %1361 = vmatprep.subr.mxu0 0.0
    %1362 = vmatpush1.msra.mxu0 0.0
    %1363 = vmatprep.subr.mxu0 0.0
    %1364 = vmatpush1.msra.mxu0 0.0
    %1365 = vmatprep.subr.mxu0 0.0
    %1366 = vmatpush1.msra.mxu0 0.0
    %1367 = vmatprep.subr.mxu0 0.0
    %1368 = vmatpush1.msra.mxu0 0.0
    %1369 = vmatprep.subr.mxu0 0.0
    %1370 = vmatpush1.msra.mxu0 0.0
    %1371 = vmatprep.subr.mxu0 0.0
    %1372 = vmatpush1.msra.mxu0 0.0
    %1373 = vmatprep.subr.mxu0 0.0
    %1374 = vmatpush1.msra.mxu0 0.0
    %1375 = vmatprep.subr.mxu0 0.0
    %1376 = vmatpush1.msra.mxu0 0.0
    %1377 = vmatprep.subr.mxu0 0.0
    %1378 = vmatpush1.msra.mxu0 0.0
    %1379 = vmatprep.subr.mxu0 0.0
    %1380 = vmatpush1.msra.mxu0 0.0
    %1381 = vmatprep.subr.mxu0 0.0
    %1382 = vmatpush1.msra.mxu0 0.0
    %1383 = vmatprep.subr.mxu0 0.0
    %1384 = vmatpush1.msra.mxu0 0.0
    %1385 = vmatprep.subr.mxu0 0.0
    %1386 = vmatpush1.msra.mxu0 0.0
    %1387 = vmatprep.subr.mxu0 0.0
    %1388 = vmatpush1.msra.mxu0 0.0
    %1389 = vmatprep.subr.mxu0 0.0
    %1390 = vmatpush1.msra.mxu0 0.0
    %1391 = vmatprep.subr.mxu0 0.0
    %1392 = vmatpush1.msra.mxu0 0.0
    %1393 = vmatprep.subr.mxu0 0.0
    %1394 = vmatpush1.msra.mxu0 0.0
    %1395 = vmatprep.subr.mxu0 0.0
    %1396 = vmatpush1.msra.mxu0 0.0
    %1397 = vmatprep.mubr.f32.mxu0 0.0
    %1398 = vmatmul.mubr.f32.gmra.mrb[0].mxu0 %v1328
    %v1399 = vpop.f32.mrb[0].mxu0
    %v1400 = vadd.f32 %v1326, %v1399
    %v1401 = vpop.f32.mrb[0].mxu0
    %1402 = vmatprep.mubr.f32.mxu0 0.0
    %1403 = vmatmul.mubr.f32.gmra.mrb[0].mxu0 %v1331
    %v1404 = vpop.f32.mrb[0].mxu0
    %v1405 = vadd.f32 %v1326, %v1404
    %v1406 = vpop.f32.mrb[0].mxu0
    %1407 = vdwg.mxu0
    %1410 = vrot.lane.b32.xlu0 %v1400, 112
    %v1411 = vpop.permute.xlu0 %1410
    %1412 = vrot.lane.b32.xlu0 %v1405, 112
    %v1413 = vpop.permute.xlu0 %1412
    %1414 = vrot.lane.b32.xlu0 %v1400, 96
    %v1415 = vpop.permute.xlu0 %1414
    %v1416 = vsel %vm222, %v1400, 0
    %v1418 = vsel %vm222, %v1415, 0
    %1420 = vmatprep.subr.mxu0 0.0
    %1421 = vmatpush1.xpose.msra.mxu0 %v1418
    %1422 = vmatprep.subr.mxu0 0.0
    %1423 = vmatpush1.xpose.msra.mxu0 0.0
    %1424 = vmatprep.subr.mxu0 0.0
    %1425 = vmatpush1.xpose.msra.mxu0 0.0
    %1426 = vmatprep.subr.mxu0 0.0
    %1427 = vmatpush1.xpose.msra.mxu0 0.0
    %1428 = vmatprep.subr.mxu0 0.0
    %1429 = vmatpush1.xpose.msra.mxu0 0.0
    %1430 = vmatprep.subr.mxu0 0.0
    %1431 = vmatpush1.xpose.msra.mxu0 0.0
    %1432 = vmatprep.subr.mxu0 0.0
    %1433 = vmatpush1.xpose.msra.mxu0 0.0
    %1434 = vmatprep.subr.mxu0 0.0
    %1435 = vmatpush1.xpose.msra.mxu0 0.0
    %1436 = vmatprep.subr.mxu0 0.0
    %1437 = vmatpush1.xpose.msra.mxu0 0.0
    %1438 = vmatprep.subr.mxu0 0.0
    %1439 = vmatpush1.xpose.msra.mxu0 0.0
    %1440 = vmatprep.subr.mxu0 0.0
    %1441 = vmatpush1.xpose.msra.mxu0 0.0
    %1442 = vmatprep.subr.mxu0 0.0
    %1443 = vmatpush1.xpose.msra.mxu0 0.0
    %1444 = vmatprep.subr.mxu0 0.0
    %1445 = vmatpush1.xpose.msra.mxu0 0.0
    %1446 = vmatprep.subr.mxu0 0.0
    %1447 = vmatpush1.xpose.msra.mxu0 0.0
    %1448 = vmatprep.subr.mxu0 0.0
    %1449 = vmatpush1.xpose.msra.mxu0 0.0
    %1450 = vmatprep.subr.mxu0 0.0
    %1451 = vmatpush1.xpose.msra.mxu0 0.0
    %1452 = vmatprep.subr.mxu0 0.0
    %1453 = vmatpush1.xpose.msra.mxu0 0.0
    %1454 = vmatprep.subr.mxu0 0.0
    %1455 = vmatpush1.xpose.msra.mxu0 0.0
    %1456 = vmatprep.subr.mxu0 0.0
    %1457 = vmatpush1.xpose.msra.mxu0 0.0
    %1458 = vmatprep.subr.mxu0 0.0
    %1459 = vmatpush1.xpose.msra.mxu0 0.0
    %1460 = vmatprep.subr.mxu0 0.0
    %1461 = vmatpush1.xpose.msra.mxu0 0.0
    %1462 = vmatprep.subr.mxu0 0.0
    %1463 = vmatpush1.xpose.msra.mxu0 0.0
    %1464 = vmatprep.subr.mxu0 0.0
    %1465 = vmatpush1.xpose.msra.mxu0 0.0
    %1466 = vmatprep.subr.mxu0 0.0
    %1467 = vmatpush1.xpose.msra.mxu0 0.0
    %1468 = vmatprep.subr.mxu0 0.0
    %1469 = vmatpush1.xpose.msra.mxu0 0.0
    %1470 = vmatprep.subr.mxu0 0.0
    %1471 = vmatpush1.xpose.msra.mxu0 0.0
    %1472 = vmatprep.subr.mxu0 0.0
    %1473 = vmatpush1.xpose.msra.mxu0 0.0
    %1474 = vmatprep.subr.mxu0 0.0
    %1475 = vmatpush1.xpose.msra.mxu0 0.0
    %1476 = vmatprep.subr.mxu0 0.0
    %1477 = vmatpush1.xpose.msra.mxu0 0.0
    %1478 = vmatprep.subr.mxu0 0.0
    %1479 = vmatpush1.xpose.msra.mxu0 0.0
    %1480 = vmatprep.subr.mxu0 0.0
    %1481 = vmatpush1.xpose.msra.mxu0 0.0
    %1482 = vmatprep.subr.mxu0 0.0
    %1483 = vmatpush1.xpose.msra.mxu0 0.0
    %1484 = vmatprep.mubr.f32.mxu0 0.0
    %1485 = vmatmul.mubr.f32.gmra.mrb[0].mxu0 %v1416
    %v1486 = vpop.f32.mrb[0].mxu0
    %v1487 = vadd.f32 %v203, %v1486
    %v1488 = vpop.f32.mrb[0].mxu0
    %1489 = vdwg.mxu0
    %1490 = vrot.lane.b32.xlu0 %v1405, 96
    %v1491 = vpop.permute.xlu0 %1490
    %v1492 = vsel %vm222, %v1405, 0
    %v1494 = vsel %vm222, %v1491, 0
    %1496 = vmatprep.subr.mxu0 0.0
    %1497 = vmatpush1.xpose.msra.mxu0 %v1494
    %1498 = vmatprep.subr.mxu0 0.0
    %1499 = vmatpush1.xpose.msra.mxu0 0.0
    %1500 = vmatprep.subr.mxu0 0.0
    %1501 = vmatpush1.xpose.msra.mxu0 0.0
    %1502 = vmatprep.subr.mxu0 0.0
    %1503 = vmatpush1.xpose.msra.mxu0 0.0
    %1504 = vmatprep.subr.mxu0 0.0
    %1505 = vmatpush1.xpose.msra.mxu0 0.0
    %1506 = vmatprep.subr.mxu0 0.0
    %1507 = vmatpush1.xpose.msra.mxu0 0.0
    %1508 = vmatprep.subr.mxu0 0.0
    %1509 = vmatpush1.xpose.msra.mxu0 0.0
    %1510 = vmatprep.subr.mxu0 0.0
    %1511 = vmatpush1.xpose.msra.mxu0 0.0
    %1512 = vmatprep.subr.mxu0 0.0
    %1513 = vmatpush1.xpose.msra.mxu0 0.0
    %1514 = vmatprep.subr.mxu0 0.0
    %1515 = vmatpush1.xpose.msra.mxu0 0.0
    %1516 = vmatprep.subr.mxu0 0.0
    %1517 = vmatpush1.xpose.msra.mxu0 0.0
    %1518 = vmatprep.subr.mxu0 0.0
    %1519 = vmatpush1.xpose.msra.mxu0 0.0
    %1520 = vmatprep.subr.mxu0 0.0
    %1521 = vmatpush1.xpose.msra.mxu0 0.0
    %1522 = vmatprep.subr.mxu0 0.0
    %1523 = vmatpush1.xpose.msra.mxu0 0.0
    %1524 = vmatprep.subr.mxu0 0.0
    %1525 = vmatpush1.xpose.msra.mxu0 0.0
    %1526 = vmatprep.subr.mxu0 0.0
    %1527 = vmatpush1.xpose.msra.mxu0 0.0
    %1528 = vmatprep.subr.mxu0 0.0
    %1529 = vmatpush1.xpose.msra.mxu0 0.0
    %1530 = vmatprep.subr.mxu0 0.0
    %1531 = vmatpush1.xpose.msra.mxu0 0.0
    %1532 = vmatprep.subr.mxu0 0.0
    %1533 = vmatpush1.xpose.msra.mxu0 0.0
    %1534 = vmatprep.subr.mxu0 0.0
    %1535 = vmatpush1.xpose.msra.mxu0 0.0
    %1536 = vmatprep.subr.mxu0 0.0
    %1537 = vmatpush1.xpose.msra.mxu0 0.0
    %1538 = vmatprep.subr.mxu0 0.0
    %1539 = vmatpush1.xpose.msra.mxu0 0.0
    %1540 = vmatprep.subr.mxu0 0.0
    %1541 = vmatpush1.xpose.msra.mxu0 0.0
    %1542 = vmatprep.subr.mxu0 0.0
    %1543 = vmatpush1.xpose.msra.mxu0 0.0
    %1544 = vmatprep.subr.mxu0 0.0
    %1545 = vmatpush1.xpose.msra.mxu0 0.0
    %1546 = vmatprep.subr.mxu0 0.0
    %1547 = vmatpush1.xpose.msra.mxu0 0.0
    %1548 = vmatprep.subr.mxu0 0.0
    %1549 = vmatpush1.xpose.msra.mxu0 0.0
    %1550 = vmatprep.subr.mxu0 0.0
    %1551 = vmatpush1.xpose.msra.mxu0 0.0
    %1552 = vmatprep.subr.mxu0 0.0
    %1553 = vmatpush1.xpose.msra.mxu0 0.0
    %1554 = vmatprep.subr.mxu0 0.0
    %1555 = vmatpush1.xpose.msra.mxu0 0.0
    %1556 = vmatprep.subr.mxu0 0.0
    %1557 = vmatpush1.xpose.msra.mxu0 0.0
    %1558 = vmatprep.subr.mxu0 0.0
    %1559 = vmatpush1.xpose.msra.mxu0 0.0
    %1560 = vmatprep.mubr.f32.mxu0 0.0
    %1561 = vmatmul.mubr.f32.gmra.mrb[0].mxu0 %v1492
    %v1562 = vpop.f32.mrb[0].mxu0
    %v1563 = vadd.f32 %v207, %v1562
    %v1564 = vpop.f32.mrb[0].mxu0
    %1565 = vdwg.mxu0
    %1566 = vrot.lane.b32.xlu0 %v1411, 96
    %v1567 = vpop.permute.xlu0 %1566
    %v1568 = vsel %vm222, %v1411, 0
    %v1570 = vsel %vm222, %v1567, 0
    %1572 = vmatprep.subr.mxu0 0.0
    %1573 = vmatpush1.xpose.msra.mxu0 %v1570
    %1574 = vmatprep.subr.mxu0 0.0
    %1575 = vmatpush1.xpose.msra.mxu0 0.0
    %1576 = vmatprep.subr.mxu0 0.0
    %1577 = vmatpush1.xpose.msra.mxu0 0.0
    %1578 = vmatprep.subr.mxu0 0.0
    %1579 = vmatpush1.xpose.msra.mxu0 0.0
    %1580 = vmatprep.subr.mxu0 0.0
    %1581 = vmatpush1.xpose.msra.mxu0 0.0
    %1582 = vmatprep.subr.mxu0 0.0
    %1583 = vmatpush1.xpose.msra.mxu0 0.0
    %1584 = vmatprep.subr.mxu0 0.0
    %1585 = vmatpush1.xpose.msra.mxu0 0.0
    %1586 = vmatprep.subr.mxu0 0.0
    %1587 = vmatpush1.xpose.msra.mxu0 0.0
    %1588 = vmatprep.subr.mxu0 0.0
    %1589 = vmatpush1.xpose.msra.mxu0 0.0
    %1590 = vmatprep.subr.mxu0 0.0
    %1591 = vmatpush1.xpose.msra.mxu0 0.0
    %1592 = vmatprep.subr.mxu0 0.0
    %1593 = vmatpush1.xpose.msra.mxu0 0.0
    %1594 = vmatprep.subr.mxu0 0.0
    %1595 = vmatpush1.xpose.msra.mxu0 0.0
    %1596 = vmatprep.subr.mxu0 0.0
    %1597 = vmatpush1.xpose.msra.mxu0 0.0
    %1598 = vmatprep.subr.mxu0 0.0
    %1599 = vmatpush1.xpose.msra.mxu0 0.0
    %1600 = vmatprep.subr.mxu0 0.0
    %1601 = vmatpush1.xpose.msra.mxu0 0.0
    %1602 = vmatprep.subr.mxu0 0.0
    %1603 = vmatpush1.xpose.msra.mxu0 0.0
    %1604 = vmatprep.subr.mxu0 0.0
    %1605 = vmatpush1.xpose.msra.mxu0 0.0
    %1606 = vmatprep.subr.mxu0 0.0
    %1607 = vmatpush1.xpose.msra.mxu0 0.0
    %1608 = vmatprep.subr.mxu0 0.0
    %1609 = vmatpush1.xpose.msra.mxu0 0.0
    %1610 = vmatprep.subr.mxu0 0.0
    %1611 = vmatpush1.xpose.msra.mxu0 0.0
    %1612 = vmatprep.subr.mxu0 0.0
    %1613 = vmatpush1.xpose.msra.mxu0 0.0
    %1614 = vmatprep.subr.mxu0 0.0
    %1615 = vmatpush1.xpose.msra.mxu0 0.0
    %1616 = vmatprep.subr.mxu0 0.0
    %1617 = vmatpush1.xpose.msra.mxu0 0.0
    %1618 = vmatprep.subr.mxu0 0.0
    %1619 = vmatpush1.xpose.msra.mxu0 0.0
    %1620 = vmatprep.subr.mxu0 0.0
    %1621 = vmatpush1.xpose.msra.mxu0 0.0
    %1622 = vmatprep.subr.mxu0 0.0
    %1623 = vmatpush1.xpose.msra.mxu0 0.0
    %1624 = vmatprep.subr.mxu0 0.0
    %1625 = vmatpush1.xpose.msra.mxu0 0.0
    %1626 = vmatprep.subr.mxu0 0.0
    %1627 = vmatpush1.xpose.msra.mxu0 0.0
    %1628 = vmatprep.subr.mxu0 0.0
    %1629 = vmatpush1.xpose.msra.mxu0 0.0
    %1630 = vmatprep.subr.mxu0 0.0
    %1631 = vmatpush1.xpose.msra.mxu0 0.0
    %1632 = vmatprep.subr.mxu0 0.0
    %1633 = vmatpush1.xpose.msra.mxu0 0.0
    %1634 = vmatprep.subr.mxu0 0.0
    %1635 = vmatpush1.xpose.msra.mxu0 0.0
    %1636 = vmatprep.mubr.f32.mxu0 0.0
    %1637 = vmatmul.mubr.f32.gmra.mrb[0].mxu0 %v1568
    %v1638 = vpop.f32.mrb[0].mxu0
    %v1639 = vadd.f32 %v211, %v1638
    %v1640 = vpop.f32.mrb[0].mxu0
    %1641 = vdwg.mxu0
    %1642 = vrot.lane.b32.xlu0 %v1413, 96
    %v1643 = vpop.permute.xlu0 %1642
    %v1644 = vsel %vm222, %v1413, 0
    %v1646 = vsel %vm222, %v1643, 0
    %1648 = vmatprep.subr.mxu0 0.0
    %1649 = vmatpush1.xpose.msra.mxu0 %v1646
    %1650 = vmatprep.subr.mxu0 0.0
    %1651 = vmatpush1.xpose.msra.mxu0 0.0
    %1652 = vmatprep.subr.mxu0 0.0
    %1653 = vmatpush1.xpose.msra.mxu0 0.0
    %1654 = vmatprep.subr.mxu0 0.0
    %1655 = vmatpush1.xpose.msra.mxu0 0.0
    %1656 = vmatprep.subr.mxu0 0.0
    %1657 = vmatpush1.xpose.msra.mxu0 0.0
    %1658 = vmatprep.subr.mxu0 0.0
    %1659 = vmatpush1.xpose.msra.mxu0 0.0
    %1660 = vmatprep.subr.mxu0 0.0
    %1661 = vmatpush1.xpose.msra.mxu0 0.0
    %1662 = vmatprep.subr.mxu0 0.0
    %1663 = vmatpush1.xpose.msra.mxu0 0.0
    %1664 = vmatprep.subr.mxu0 0.0
    %1665 = vmatpush1.xpose.msra.mxu0 0.0
    %1666 = vmatprep.subr.mxu0 0.0
    %1667 = vmatpush1.xpose.msra.mxu0 0.0
    %1668 = vmatprep.subr.mxu0 0.0
    %1669 = vmatpush1.xpose.msra.mxu0 0.0
    %1670 = vmatprep.subr.mxu0 0.0
    %1671 = vmatpush1.xpose.msra.mxu0 0.0
    %1672 = vmatprep.subr.mxu0 0.0
    %1673 = vmatpush1.xpose.msra.mxu0 0.0
    %1674 = vmatprep.subr.mxu0 0.0
    %1675 = vmatpush1.xpose.msra.mxu0 0.0
    %1676 = vmatprep.subr.mxu0 0.0
    %1677 = vmatpush1.xpose.msra.mxu0 0.0
    %1678 = vmatprep.subr.mxu0 0.0
    %1679 = vmatpush1.xpose.msra.mxu0 0.0
    %1680 = vmatprep.subr.mxu0 0.0
    %1681 = vmatpush1.xpose.msra.mxu0 0.0
    %1682 = vmatprep.subr.mxu0 0.0
    %1683 = vmatpush1.xpose.msra.mxu0 0.0
    %1684 = vmatprep.subr.mxu0 0.0
    %1685 = vmatpush1.xpose.msra.mxu0 0.0
    %1686 = vmatprep.subr.mxu0 0.0
    %1687 = vmatpush1.xpose.msra.mxu0 0.0
    %1688 = vmatprep.subr.mxu0 0.0
    %1689 = vmatpush1.xpose.msra.mxu0 0.0
    %1690 = vmatprep.subr.mxu0 0.0
    %1691 = vmatpush1.xpose.msra.mxu0 0.0
    %1692 = vmatprep.subr.mxu0 0.0
    %1693 = vmatpush1.xpose.msra.mxu0 0.0
    %1694 = vmatprep.subr.mxu0 0.0
    %1695 = vmatpush1.xpose.msra.mxu0 0.0
    %1696 = vmatprep.subr.mxu0 0.0
    %1697 = vmatpush1.xpose.msra.mxu0 0.0
    %1698 = vmatprep.subr.mxu0 0.0
    %1699 = vmatpush1.xpose.msra.mxu0 0.0
    %1700 = vmatprep.subr.mxu0 0.0
    %1701 = vmatpush1.xpose.msra.mxu0 0.0
    %1702 = vmatprep.subr.mxu0 0.0
    %1703 = vmatpush1.xpose.msra.mxu0 0.0
    %1704 = vmatprep.subr.mxu0 0.0
    %1705 = vmatpush1.xpose.msra.mxu0 0.0
    %1706 = vmatprep.subr.mxu0 0.0
    %1707 = vmatpush1.xpose.msra.mxu0 0.0
    %1708 = vmatprep.subr.mxu0 0.0
    %1709 = vmatpush1.xpose.msra.mxu0 0.0
    %1710 = vmatprep.subr.mxu0 0.0
    %1711 = vmatpush1.xpose.msra.mxu0 0.0
    %1712 = vmatprep.mubr.f32.mxu0 0.0
    %1713 = vmatmul.mubr.f32.gmra.mrb[0].mxu0 %v1644
    %v1714 = vpop.f32.mrb[0].mxu0
    %v1715 = vadd.f32 %v215, %v1714
    %v1716 = vpop.f32.mrb[0].mxu0
    %1717 = vdwg.mxu0
    %v1718 = vsel %vm525, %v1487, -inf
    %1719 = vmax.xlane.f32.xlu0 %v1718
    %v1720 = vpop.xlane.xlu0 %1719
    %v1721 = vsel %vm525, %v1563, -inf
    %1722 = vmax.xlane.f32.xlu0 %v1721
    %v1723 = vpop.xlane.xlu0 %1722
    %v1724 = vsel %vm525, %v1639, -inf
    %1725 = vmax.xlane.f32.xlu0 %v1724
    %v1726 = vpop.xlane.xlu0 %1725
    %v1727 = vsel %vm525, %v1715, -inf
    %1728 = vmax.xlane.f32.xlu0 %v1727
    %v1729 = vpop.xlane.xlu0 %1728
    %v1730 = vsub.f32 %v1487, %v1720
    %v1731 = vsub.f32 %v1563, %v1723
    %v1732 = vsub.f32 %v1639, %v1726
    %v1733 = vsub.f32 %v1715, %v1729
    %v1734 = vmul.f32 %v1730, 1.442695
    %v1735 = vpow.pop %v1734
    %v1736 = vmul.f32 %v1731, 1.442695
    %v1737 = vpow.pop %v1736
    %v1738 = vmul.f32 %v1732, 1.442695
    %v1739 = vpow.pop %v1738
    %v1740 = vmul.f32 %v1733, 1.442695
    %v1741 = vpow.pop %v1740
    %v1742 = vsel %vm525, %v1735, 0.0
    %1743 = vadd.xlane.f32.xlu0 %v1742
    %v1744 = vpop.xlane.xlu0 %1743
    %v1745 = vsel %vm525, %v1737, 0.0
    %1746 = vadd.xlane.f32.xlu0 %v1745
    %v1747 = vpop.xlane.xlu0 %1746
    %v1748 = vsel %vm525, %v1739, 0.0
    %1749 = vadd.xlane.f32.xlu0 %v1748
    %v1750 = vpop.xlane.xlu0 %1749
    %v1751 = vsel %vm525, %v1741, 0.0
    %1752 = vadd.xlane.f32.xlu0 %v1751
    %v1753 = vpop.xlane.xlu0 %1752
    %v1754 = vrcp.pop %v1744
    %v1755 = vmul.f32 %v1735, %v1754
    %v1756 = vrcp.pop %v1747
    %v1757 = vmul.f32 %v1737, %v1756
    %v1758 = vrcp.pop %v1750
    %v1759 = vmul.f32 %v1739, %v1758
    %v1760 = vrcp.pop %v1753
    %v1761 = vmul.f32 %v1741, %v1760
    %1762 = vrot.lane.b32.xlu0 %v1400, 64
    %v1763 = vpop.permute.xlu0 %1762
    %v1766 = vsel %vm525, %v1755, 0
    %1768 = vmatprep.subr.mxu0 0.0
    %1769 = vmatpush1.msra.mxu0 %v1763
    %1770 = vmatprep.subr.mxu0 0.0
    %1771 = vmatpush1.msra.mxu0 0.0
    %1772 = vmatprep.subr.mxu0 0.0
    %1773 = vmatpush1.msra.mxu0 0.0
    %1774 = vmatprep.subr.mxu0 0.0
    %1775 = vmatpush1.msra.mxu0 0.0
    %1776 = vmatprep.subr.mxu0 0.0
    %1777 = vmatpush1.msra.mxu0 0.0
    %1778 = vmatprep.subr.mxu0 0.0
    %1779 = vmatpush1.msra.mxu0 0.0
    %1780 = vmatprep.subr.mxu0 0.0
    %1781 = vmatpush1.msra.mxu0 0.0
    %1782 = vmatprep.subr.mxu0 0.0
    %1783 = vmatpush1.msra.mxu0 0.0
    %1784 = vmatprep.subr.mxu0 0.0
    %1785 = vmatpush1.msra.mxu0 0.0
    %1786 = vmatprep.subr.mxu0 0.0
    %1787 = vmatpush1.msra.mxu0 0.0
    %1788 = vmatprep.subr.mxu0 0.0
    %1789 = vmatpush1.msra.mxu0 0.0
    %1790 = vmatprep.subr.mxu0 0.0
    %1791 = vmatpush1.msra.mxu0 0.0
    %1792 = vmatprep.subr.mxu0 0.0
    %1793 = vmatpush1.msra.mxu0 0.0
    %1794 = vmatprep.subr.mxu0 0.0
    %1795 = vmatpush1.msra.mxu0 0.0
    %1796 = vmatprep.subr.mxu0 0.0
    %1797 = vmatpush1.msra.mxu0 0.0
    %1798 = vmatprep.subr.mxu0 0.0
    %1799 = vmatpush1.msra.mxu0 0.0
    %1800 = vmatprep.subr.mxu0 0.0
    %1801 = vmatpush1.msra.mxu0 0.0
    %1802 = vmatprep.subr.mxu0 0.0
    %1803 = vmatpush1.msra.mxu0 0.0
    %1804 = vmatprep.subr.mxu0 0.0
    %1805 = vmatpush1.msra.mxu0 0.0
    %1806 = vmatprep.subr.mxu0 0.0
    %1807 = vmatpush1.msra.mxu0 0.0
    %1808 = vmatprep.subr.mxu0 0.0
    %1809 = vmatpush1.msra.mxu0 0.0
    %1810 = vmatprep.subr.mxu0 0.0
    %1811 = vmatpush1.msra.mxu0 0.0
    %1812 = vmatprep.subr.mxu0 0.0
    %1813 = vmatpush1.msra.mxu0 0.0
    %1814 = vmatprep.subr.mxu0 0.0
    %1815 = vmatpush1.msra.mxu0 0.0
    %1816 = vmatprep.subr.mxu0 0.0
    %1817 = vmatpush1.msra.mxu0 0.0
    %1818 = vmatprep.subr.mxu0 0.0
    %1819 = vmatpush1.msra.mxu0 0.0
    %1820 = vmatprep.subr.mxu0 0.0
    %1821 = vmatpush1.msra.mxu0 0.0
    %1822 = vmatprep.subr.mxu0 0.0
    %1823 = vmatpush1.msra.mxu0 0.0
    %1824 = vmatprep.subr.mxu0 0.0
    %1825 = vmatpush1.msra.mxu0 0.0
    %1826 = vmatprep.subr.mxu0 0.0
    %1827 = vmatpush1.msra.mxu0 0.0
    %1828 = vmatprep.subr.mxu0 0.0
    %1829 = vmatpush1.msra.mxu0 0.0
    %1830 = vmatprep.subr.mxu0 0.0
    %1831 = vmatpush1.msra.mxu0 0.0
    %1832 = vmatprep.mubr.f32.mxu0 0.0
    %1833 = vmatmul.mubr.f32.gmra.mrb[0].mxu0 %v1766
    %v1834 = vpop.f32.mrb[0].mxu0
    %v1835 = vadd.f32 0.0, %v1834
    %v1836 = vpop.f32.mrb[0].mxu0
    %1837 = vdwg.mxu0
    %1838 = vrot.lane.b32.xlu0 %v1405, 64
    %v1839 = vpop.permute.xlu0 %1838
    %v1842 = vsel %vm525, %v1757, 0
    %1844 = vmatprep.subr.mxu0 0.0
    %1845 = vmatpush1.msra.mxu0 %v1839
    %1846 = vmatprep.subr.mxu0 0.0
    %1847 = vmatpush1.msra.mxu0 0.0
    %1848 = vmatprep.subr.mxu0 0.0
    %1849 = vmatpush1.msra.mxu0 0.0
    %1850 = vmatprep.subr.mxu0 0.0
    %1851 = vmatpush1.msra.mxu0 0.0
    %1852 = vmatprep.subr.mxu0 0.0
    %1853 = vmatpush1.msra.mxu0 0.0
    %1854 = vmatprep.subr.mxu0 0.0
    %1855 = vmatpush1.msra.mxu0 0.0
    %1856 = vmatprep.subr.mxu0 0.0
    %1857 = vmatpush1.msra.mxu0 0.0
    %1858 = vmatprep.subr.mxu0 0.0
    %1859 = vmatpush1.msra.mxu0 0.0
    %1860 = vmatprep.subr.mxu0 0.0
    %1861 = vmatpush1.msra.mxu0 0.0
    %1862 = vmatprep.subr.mxu0 0.0
    %1863 = vmatpush1.msra.mxu0 0.0
    %1864 = vmatprep.subr.mxu0 0.0
    %1865 = vmatpush1.msra.mxu0 0.0
    %1866 = vmatprep.subr.mxu0 0.0
    %1867 = vmatpush1.msra.mxu0 0.0
    %1868 = vmatprep.subr.mxu0 0.0
    %1869 = vmatpush1.msra.mxu0 0.0
    %1870 = vmatprep.subr.mxu0 0.0
    %1871 = vmatpush1.msra.mxu0 0.0
    %1872 = vmatprep.subr.mxu0 0.0
    %1873 = vmatpush1.msra.mxu0 0.0
    %1874 = vmatprep.subr.mxu0 0.0
    %1875 = vmatpush1.msra.mxu0 0.0
    %1876 = vmatprep.subr.mxu0 0.0
    %1877 = vmatpush1.msra.mxu0 0.0
    %1878 = vmatprep.subr.mxu0 0.0
    %1879 = vmatpush1.msra.mxu0 0.0
    %1880 = vmatprep.subr.mxu0 0.0
    %1881 = vmatpush1.msra.mxu0 0.0
    %1882 = vmatprep.subr.mxu0 0.0
    %1883 = vmatpush1.msra.mxu0 0.0
    %1884 = vmatprep.subr.mxu0 0.0
    %1885 = vmatpush1.msra.mxu0 0.0
    %1886 = vmatprep.subr.mxu0 0.0
    %1887 = vmatpush1.msra.mxu0 0.0
    %1888 = vmatprep.subr.mxu0 0.0
    %1889 = vmatpush1.msra.mxu0 0.0
    %1890 = vmatprep.subr.mxu0 0.0
    %1891 = vmatpush1.msra.mxu0 0.0
    %1892 = vmatprep.subr.mxu0 0.0
    %1893 = vmatpush1.msra.mxu0 0.0
    %1894 = vmatprep.subr.mxu0 0.0
    %1895 = vmatpush1.msra.mxu0 0.0
    %1896 = vmatprep.subr.mxu0 0.0
    %1897 = vmatpush1.msra.mxu0 0.0
    %1898 = vmatprep.subr.mxu0 0.0
    %1899 = vmatpush1.msra.mxu0 0.0
    %1900 = vmatprep.subr.mxu0 0.0
    %1901 = vmatpush1.msra.mxu0 0.0
    %1902 = vmatprep.subr.mxu0 0.0
    %1903 = vmatpush1.msra.mxu0 0.0
    %1904 = vmatprep.subr.mxu0 0.0
    %1905 = vmatpush1.msra.mxu0 0.0
    %1906 = vmatprep.subr.mxu0 0.0
    %1907 = vmatpush1.msra.mxu0 0.0
    %1908 = vmatprep.mubr.f32.mxu0 0.0
    %1909 = vmatmul.mubr.f32.gmra.mrb[0].mxu0 %v1842
    %v1910 = vpop.f32.mrb[0].mxu0
    %v1911 = vadd.f32 0.0, %v1910
    %v1912 = vpop.f32.mrb[0].mxu0
    %1913 = vdwg.mxu0
    %1914 = vrot.lane.b32.xlu0 %v1411, 64
    %v1915 = vpop.permute.xlu0 %1914
    %v1918 = vsel %vm525, %v1759, 0
    %1920 = vmatprep.subr.mxu0 0.0
    %1921 = vmatpush1.msra.mxu0 %v1915
    %1922 = vmatprep.subr.mxu0 0.0
    %1923 = vmatpush1.msra.mxu0 0.0
    %1924 = vmatprep.subr.mxu0 0.0
    %1925 = vmatpush1.msra.mxu0 0.0
    %1926 = vmatprep.subr.mxu0 0.0
    %1927 = vmatpush1.msra.mxu0 0.0
    %1928 = vmatprep.subr.mxu0 0.0
    %1929 = vmatpush1.msra.mxu0 0.0
    %1930 = vmatprep.subr.mxu0 0.0
    %1931 = vmatpush1.msra.mxu0 0.0
    %1932 = vmatprep.subr.mxu0 0.0
    %1933 = vmatpush1.msra.mxu0 0.0
    %1934 = vmatprep.subr.mxu0 0.0
    %1935 = vmatpush1.msra.mxu0 0.0
    %1936 = vmatprep.subr.mxu0 0.0
    %1937 = vmatpush1.msra.mxu0 0.0
    %1938 = vmatprep.subr.mxu0 0.0
    %1939 = vmatpush1.msra.mxu0 0.0
    %1940 = vmatprep.subr.mxu0 0.0
    %1941 = vmatpush1.msra.mxu0 0.0
    %1942 = vmatprep.subr.mxu0 0.0
    %1943 = vmatpush1.msra.mxu0 0.0
    %1944 = vmatprep.subr.mxu0 0.0
    %1945 = vmatpush1.msra.mxu0 0.0
    %1946 = vmatprep.subr.mxu0 0.0
    %1947 = vmatpush1.msra.mxu0 0.0
    %1948 = vmatprep.subr.mxu0 0.0
    %1949 = vmatpush1.msra.mxu0 0.0
    %1950 = vmatprep.subr.mxu0 0.0
    %1951 = vmatpush1.msra.mxu0 0.0
    %1952 = vmatprep.subr.mxu0 0.0
    %1953 = vmatpush1.msra.mxu0 0.0
    %1954 = vmatprep.subr.mxu0 0.0
    %1955 = vmatpush1.msra.mxu0 0.0
    %1956 = vmatprep.subr.mxu0 0.0
    %1957 = vmatpush1.msra.mxu0 0.0
    %1958 = vmatprep.subr.mxu0 0.0
    %1959 = vmatpush1.msra.mxu0 0.0
    %1960 = vmatprep.subr.mxu0 0.0
    %1961 = vmatpush1.msra.mxu0 0.0
    %1962 = vmatprep.subr.mxu0 0.0
    %1963 = vmatpush1.msra.mxu0 0.0
    %1964 = vmatprep.subr.mxu0 0.0
    %1965 = vmatpush1.msra.mxu0 0.0
    %1966 = vmatprep.subr.mxu0 0.0
    %1967 = vmatpush1.msra.mxu0 0.0
    %1968 = vmatprep.subr.mxu0 0.0
    %1969 = vmatpush1.msra.mxu0 0.0
    %1970 = vmatprep.subr.mxu0 0.0
    %1971 = vmatpush1.msra.mxu0 0.0
    %1972 = vmatprep.subr.mxu0 0.0
    %1973 = vmatpush1.msra.mxu0 0.0
    %1974 = vmatprep.subr.mxu0 0.0
    %1975 = vmatpush1.msra.mxu0 0.0
    %1976 = vmatprep.subr.mxu0 0.0
    %1977 = vmatpush1.msra.mxu0 0.0
    %1978 = vmatprep.subr.mxu0 0.0
    %1979 = vmatpush1.msra.mxu0 0.0
    %1980 = vmatprep.subr.mxu0 0.0
    %1981 = vmatpush1.msra.mxu0 0.0
    %1982 = vmatprep.subr.mxu0 0.0
    %1983 = vmatpush1.msra.mxu0 0.0
    %1984 = vmatprep.mubr.f32.mxu0 0.0
    %1985 = vmatmul.mubr.f32.gmra.mrb[0].mxu0 %v1918
    %v1986 = vpop.f32.mrb[0].mxu0
    %v1987 = vadd.f32 0.0, %v1986
    %v1988 = vpop.f32.mrb[0].mxu0
    %1989 = vdwg.mxu0
    %1990 = vrot.lane.b32.xlu0 %v1413, 64
    %v1991 = vpop.permute.xlu0 %1990
    %v1994 = vsel %vm525, %v1761, 0
    %1996 = vmatprep.subr.mxu0 0.0
    %1997 = vmatpush1.msra.mxu0 %v1991
    %1998 = vmatprep.subr.mxu0 0.0
    %1999 = vmatpush1.msra.mxu0 0.0
    %2000 = vmatprep.subr.mxu0 0.0
    %2001 = vmatpush1.msra.mxu0 0.0
    %2002 = vmatprep.subr.mxu0 0.0
    %2003 = vmatpush1.msra.mxu0 0.0
    %2004 = vmatprep.subr.mxu0 0.0
    %2005 = vmatpush1.msra.mxu0 0.0
    %2006 = vmatprep.subr.mxu0 0.0
    %2007 = vmatpush1.msra.mxu0 0.0
    %2008 = vmatprep.subr.mxu0 0.0
    %2009 = vmatpush1.msra.mxu0 0.0
    %2010 = vmatprep.subr.mxu0 0.0
    %2011 = vmatpush1.msra.mxu0 0.0
    %2012 = vmatprep.subr.mxu0 0.0
    %2013 = vmatpush1.msra.mxu0 0.0
    %2014 = vmatprep.subr.mxu0 0.0
    %2015 = vmatpush1.msra.mxu0 0.0
    %2016 = vmatprep.subr.mxu0 0.0
    %2017 = vmatpush1.msra.mxu0 0.0
    %2018 = vmatprep.subr.mxu0 0.0
    %2019 = vmatpush1.msra.mxu0 0.0
    %2020 = vmatprep.subr.mxu0 0.0
    %2021 = vmatpush1.msra.mxu0 0.0
    %2022 = vmatprep.subr.mxu0 0.0
    %2023 = vmatpush1.msra.mxu0 0.0
    %2024 = vmatprep.subr.mxu0 0.0
    %2025 = vmatpush1.msra.mxu0 0.0
    %2026 = vmatprep.subr.mxu0 0.0
    %2027 = vmatpush1.msra.mxu0 0.0
    %2028 = vmatprep.subr.mxu0 0.0
    %2029 = vmatpush1.msra.mxu0 0.0
    %2030 = vmatprep.subr.mxu0 0.0
    %2031 = vmatpush1.msra.mxu0 0.0
    %2032 = vmatprep.subr.mxu0 0.0
    %2033 = vmatpush1.msra.mxu0 0.0
    %2034 = vmatprep.subr.mxu0 0.0
    %2035 = vmatpush1.msra.mxu0 0.0
    %2036 = vmatprep.subr.mxu0 0.0
    %2037 = vmatpush1.msra.mxu0 0.0
    %2038 = vmatprep.subr.mxu0 0.0
    %2039 = vmatpush1.msra.mxu0 0.0
    %2040 = vmatprep.subr.mxu0 0.0
    %2041 = vmatpush1.msra.mxu0 0.0
    %2042 = vmatprep.subr.mxu0 0.0
    %2043 = vmatpush1.msra.mxu0 0.0
    %2044 = vmatprep.subr.mxu0 0.0
    %2045 = vmatpush1.msra.mxu0 0.0
    %2046 = vmatprep.subr.mxu0 0.0
    %2047 = vmatpush1.msra.mxu0 0.0
    %2048 = vmatprep.subr.mxu0 0.0
    %2049 = vmatpush1.msra.mxu0 0.0
    %2050 = vmatprep.subr.mxu0 0.0
    %2051 = vmatpush1.msra.mxu0 0.0
    %2052 = vmatprep.subr.mxu0 0.0
    %2053 = vmatpush1.msra.mxu0 0.0
    %2054 = vmatprep.subr.mxu0 0.0
    %2055 = vmatpush1.msra.mxu0 0.0
    %2056 = vmatprep.subr.mxu0 0.0
    %2057 = vmatpush1.msra.mxu0 0.0
    %2058 = vmatprep.subr.mxu0 0.0
    %2059 = vmatpush1.msra.mxu0 0.0
    %2060 = vmatprep.mubr.f32.mxu0 0.0
    %2061 = vmatmul.mubr.f32.gmra.mrb[0].mxu0 %v1994
    %v2062 = vpop.f32.mrb[0].mxu0
    %v2063 = vadd.f32 0.0, %v2062
    %v2064 = vpop.f32.mrb[0].mxu0
    %2065 = vdwg.mxu0
    %2068 = vrot.lane.b32.xlu0 %v1987, 16
    %v2069 = vpop.permute.xlu0 %2068
    %2070 = vrot.lane.b32.xlu0 %v2063, 16
    %v2071 = vpop.permute.xlu0 %2070
    %v2074 = vsel %vm222, %v1835, %v2069
    %v2075 = vsel %vm222, %v1911, %v2071
    %v2076 = vld [vmem:[%s1317 + $0x8] sm:$0xff]
    %v2077 = vld [vmem:[%s1317 + $0x18] sm:$0xff]
    %v2078 = vld [vmem:[%s1317 + $0x28] sm:$0xff]
    %v2079 = vld [vmem:[%s1317 + $0x38] sm:$0xff]
    %v2080 = vld [vmem:[%s3 + $0xb] sm:$0x1]
    %v2081 = vlaneseq
    %v2082 = vshrl.u32 %v2081, 7
    %v2083 = vsub.s32 0, %v2082
    %v2084 = vrot.slane %v2080, %v2083
    %v2086 = vsel %vm58, %v2074, 0
    %v2089 = vsel %vm58, %v2075, 0
    %2091 = vmatprep.subr.mxu0 0.0
    %2092 = vmatpush1.msra.mxu0 %v2076
    %2093 = vmatprep.subr.mxu0 0.0
    %2094 = vmatpush1.msra.mxu0 %v2077
    %2095 = vmatprep.subr.mxu0 0.0
    %2096 = vmatpush1.msra.mxu0 %v2078
    %2097 = vmatprep.subr.mxu0 0.0
    %2098 = vmatpush1.msra.mxu0 %v2079
    %2099 = vmatprep.subr.mxu0 0.0
    %2100 = vmatpush1.msra.mxu0 0.0
    %2101 = vmatprep.subr.mxu0 0.0
    %2102 = vmatpush1.msra.mxu0 0.0
    %2103 = vmatprep.subr.mxu0 0.0
    %2104 = vmatpush1.msra.mxu0 0.0
    %2105 = vmatprep.subr.mxu0 0.0
    %2106 = vmatpush1.msra.mxu0 0.0
    %2107 = vmatprep.subr.mxu0 0.0
    %2108 = vmatpush1.msra.mxu0 0.0
    %2109 = vmatprep.subr.mxu0 0.0
    %2110 = vmatpush1.msra.mxu0 0.0
    %2111 = vmatprep.subr.mxu0 0.0
    %2112 = vmatpush1.msra.mxu0 0.0
    %2113 = vmatprep.subr.mxu0 0.0
    %2114 = vmatpush1.msra.mxu0 0.0
    %2115 = vmatprep.subr.mxu0 0.0
    %2116 = vmatpush1.msra.mxu0 0.0
    %2117 = vmatprep.subr.mxu0 0.0
    %2118 = vmatpush1.msra.mxu0 0.0
    %2119 = vmatprep.subr.mxu0 0.0
    %2120 = vmatpush1.msra.mxu0 0.0
    %2121 = vmatprep.subr.mxu0 0.0
    %2122 = vmatpush1.msra.mxu0 0.0
    %2123 = vmatprep.subr.mxu0 0.0
    %2124 = vmatpush1.msra.mxu0 0.0
    %2125 = vmatprep.subr.mxu0 0.0
    %2126 = vmatpush1.msra.mxu0 0.0
    %2127 = vmatprep.subr.mxu0 0.0
    %2128 = vmatpush1.msra.mxu0 0.0
    %2129 = vmatprep.subr.mxu0 0.0
    %2130 = vmatpush1.msra.mxu0 0.0
    %2131 = vmatprep.subr.mxu0 0.0
    %2132 = vmatpush1.msra.mxu0 0.0
    %2133 = vmatprep.subr.mxu0 0.0
    %2134 = vmatpush1.msra.mxu0 0.0
    %2135 = vmatprep.subr.mxu0 0.0
    %2136 = vmatpush1.msra.mxu0 0.0
    %2137 = vmatprep.subr.mxu0 0.0
    %2138 = vmatpush1.msra.mxu0 0.0
    %2139 = vmatprep.subr.mxu0 0.0
    %2140 = vmatpush1.msra.mxu0 0.0
    %2141 = vmatprep.subr.mxu0 0.0
    %2142 = vmatpush1.msra.mxu0 0.0
    %2143 = vmatprep.subr.mxu0 0.0
    %2144 = vmatpush1.msra.mxu0 0.0
    %2145 = vmatprep.subr.mxu0 0.0
    %2146 = vmatpush1.msra.mxu0 0.0
    %2147 = vmatprep.subr.mxu0 0.0
    %2148 = vmatpush1.msra.mxu0 0.0
    %2149 = vmatprep.subr.mxu0 0.0
    %2150 = vmatpush1.msra.mxu0 0.0
    %2151 = vmatprep.subr.mxu0 0.0
    %2152 = vmatpush1.msra.mxu0 0.0
    %2153 = vmatprep.subr.mxu0 0.0
    %2154 = vmatpush1.msra.mxu0 0.0
    %2155 = vmatprep.mubr.f32.mxu0 0.0
    %2156 = vmatmul.mubr.f32.gmra.mrb[0].mxu0 %v2086
    %v2157 = vpop.f32.mrb[0].mxu0
    %v2158 = vadd.f32 %v2084, %v2157
    %v2159 = vpop.f32.mrb[0].mxu0
    %2160 = vmatprep.mubr.f32.mxu0 0.0
    %2161 = vmatmul.mubr.f32.gmra.mrb[0].mxu0 %v2089
    %v2162 = vpop.f32.mrb[0].mxu0
    %v2163 = vadd.f32 %v2084, %v2162
    %v2164 = vpop.f32.mrb[0].mxu0
    %2165 = vdwg.mxu0
    %v2166 = vadd.f32 %v1315, %v2158
    %v2167 = vadd.f32 %v1316, %v2163
    %v2168 = vld [vmem:[%s3 + $0xc] sm:$0x1]
    %v2169 = vld [vmem:[%s3 + $0xd] sm:$0x1]
    %v2170 = vsel %vm58, %v2166, 0.0
    %2171 = vadd.xlane.f32.xlu0 %v2170
    %v2172 = vpop.xlane.xlu0 %2171
    %v2173 = vsel %vm58, %v2167, 0.0
    %2174 = vadd.xlane.f32.xlu0 %v2173
    %v2175 = vpop.xlane.xlu0 %2174
    %v2176 = vmul.f32 %v2172, %v65
    %v2177 = vmul.f32 %v2175, %v65
    %v2178 = vmul.f32 %v2166, %v2166
    %v2179 = vmul.f32 %v2167, %v2167
    %v2180 = vsel %vm58, %v2178, 0.0
    %2181 = vadd.xlane.f32.xlu0 %v2180
    %v2182 = vpop.xlane.xlu0 %2181
    %v2183 = vsel %vm58, %v2179, 0.0
    %2184 = vadd.xlane.f32.xlu0 %v2183
    %v2185 = vpop.xlane.xlu0 %2184
    %v2186 = vmul.f32 %v2182, %v65
    %v2187 = vmul.f32 %v2185, %v65
    %v2188 = vmul.f32 %v2176, %v2176
    %v2189 = vmul.f32 %v2177, %v2177
    %v2190 = vsub.f32 %v2186, %v2188
    %v2191 = vsub.f32 %v2187, %v2189
    %v2192 = vmax.f32 %v2190, 0.0
    %v2193 = vmax.f32 %v2191, 0.0
    %v2194 = vsub.f32 %v2166, %v2176
    %v2195 = vsub.f32 %v2167, %v2177
    %v2196 = vadd.f32 %v2192, 1e-12
    %v2197 = vadd.f32 %v2193, 1e-12
    %v2198 = vrsqrt.pop %v2196
    %v2199 = vrsqrt.pop %v2197
    %v2200 = vmul.f32 %v2194, %v2198
    %v2201 = vmul.f32 %v2195, %v2199
    %v2202 = vlaneseq
    %v2203 = vshrl.u32 %v2202, 7
    %v2204 = vsub.s32 0, %v2203
    %v2205 = vrot.slane %v2168, %v2204
    %v2206 = vmul.f32 %v2200, %v2205
    %v2207 = vmul.f32 %v2201, %v2205
    %v2208 = vlaneseq
    %v2209 = vshrl.u32 %v2208, 7
    %v2210 = vsub.s32 0, %v2209
    %v2211 = vrot.slane %v2169, %v2210
    %v2212 = vadd.f32 %v2206, %v2211
    %v2213 = vadd.f32 %v2207, %v2211
    %v2214 = vld [vmem:[%s3 + $0xe] sm:$0x1]
    %v2215 = vlaneseq
    %v2216 = vshrl.u32 %v2215, 7
    %v2217 = vsub.s32 0, %v2216
    %v2218 = vrot.slane %v2214, %v2217
    %2223 = vrot.lane.b32.xlu0 %v2076, 96
    %v2224 = vpop.permute.xlu0 %2223
    %2225 = vrot.lane.b32.xlu0 %v2077, 96
    %v2226 = vpop.permute.xlu0 %2225
    %2227 = vrot.lane.b32.xlu0 %v2078, 96
    %v2228 = vpop.permute.xlu0 %2227
    %2229 = vrot.lane.b32.xlu0 %v2079, 96
    %v2230 = vpop.permute.xlu0 %2229
    %v2236 = vsel %vm58, %v2212, 0
    %v2239 = vsel %vm58, %v2213, 0
    %2241 = vmatprep.subr.mxu0 0.0
    %2242 = vmatpush1.msra.mxu0 %v2224
    %2243 = vmatprep.subr.mxu0 0.0
    %2244 = vmatpush1.msra.mxu0 %v2226
    %2245 = vmatprep.subr.mxu0 0.0
    %2246 = vmatpush1.msra.mxu0 %v2228
    %2247 = vmatprep.subr.mxu0 0.0
    %2248 = vmatpush1.msra.mxu0 %v2230
    %2249 = vmatprep.subr.mxu0 0.0
    %2250 = vmatpush1.msra.mxu0 0.0
    %2251 = vmatprep.subr.mxu0 0.0
    %2252 = vmatpush1.msra.mxu0 0.0
    %2253 = vmatprep.subr.mxu0 0.0
    %2254 = vmatpush1.msra.mxu0 0.0
    %2255 = vmatprep.subr.mxu0 0.0
    %2256 = vmatpush1.msra.mxu0 0.0
    %2257 = vmatprep.subr.mxu0 0.0
    %2258 = vmatpush1.msra.mxu0 0.0
    %2259 = vmatprep.subr.mxu0 0.0
    %2260 = vmatpush1.msra.mxu0 0.0
    %2261 = vmatprep.subr.mxu0 0.0
    %2262 = vmatpush1.msra.mxu0 0.0
    %2263 = vmatprep.subr.mxu0 0.0
    %2264 = vmatpush1.msra.mxu0 0.0
    %2265 = vmatprep.subr.mxu0 0.0
    %2266 = vmatpush1.msra.mxu0 0.0
    %2267 = vmatprep.subr.mxu0 0.0
    %2268 = vmatpush1.msra.mxu0 0.0
    %2269 = vmatprep.subr.mxu0 0.0
    %2270 = vmatpush1.msra.mxu0 0.0
    %2271 = vmatprep.subr.mxu0 0.0
    %2272 = vmatpush1.msra.mxu0 0.0
    %2273 = vmatprep.subr.mxu0 0.0
    %2274 = vmatpush1.msra.mxu0 0.0
    %2275 = vmatprep.subr.mxu0 0.0
    %2276 = vmatpush1.msra.mxu0 0.0
    %2277 = vmatprep.subr.mxu0 0.0
    %2278 = vmatpush1.msra.mxu0 0.0
    %2279 = vmatprep.subr.mxu0 0.0
    %2280 = vmatpush1.msra.mxu0 0.0
    %2281 = vmatprep.subr.mxu0 0.0
    %2282 = vmatpush1.msra.mxu0 0.0
    %2283 = vmatprep.subr.mxu0 0.0
    %2284 = vmatpush1.msra.mxu0 0.0
    %2285 = vmatprep.subr.mxu0 0.0
    %2286 = vmatpush1.msra.mxu0 0.0
    %2287 = vmatprep.subr.mxu0 0.0
    %2288 = vmatpush1.msra.mxu0 0.0
    %2289 = vmatprep.subr.mxu0 0.0
    %2290 = vmatpush1.msra.mxu0 0.0
    %2291 = vmatprep.subr.mxu0 0.0
    %2292 = vmatpush1.msra.mxu0 0.0
    %2293 = vmatprep.subr.mxu0 0.0
    %2294 = vmatpush1.msra.mxu0 0.0
    %2295 = vmatprep.subr.mxu0 0.0
    %2296 = vmatpush1.msra.mxu0 0.0
    %2297 = vmatprep.subr.mxu0 0.0
    %2298 = vmatpush1.msra.mxu0 0.0
    %2299 = vmatprep.subr.mxu0 0.0
    %2300 = vmatpush1.msra.mxu0 0.0
    %2301 = vmatprep.subr.mxu0 0.0
    %2302 = vmatpush1.msra.mxu0 0.0
    %2303 = vmatprep.subr.mxu0 0.0
    %2304 = vmatpush1.msra.mxu0 0.0
    %2305 = vmatprep.mubr.f32.mxu0 0.0
    %2306 = vmatmul.mubr.f32.gmra.mrb[0].mxu0 %v2236
    %v2307 = vpop.f32.mrb[0].mxu0
    %v2308 = vadd.f32 %v2218, %v2307
    %v2309 = vpop.f32.mrb[0].mxu0
    %2310 = vmatprep.mubr.f32.mxu0 0.0
    %2311 = vmatmul.mubr.f32.gmra.mrb[0].mxu0 %v2239
    %v2312 = vpop.f32.mrb[0].mxu0
    %v2313 = vadd.f32 %v2218, %v2312
    %v2314 = vpop.f32.mrb[0].mxu0
    %2315 = vdwg.mxu0
    %v2316 = vmul.f32 %v2308, %v2308
    %v2317 = vmul.f32 %v2313, %v2313
    %v2318 = vmul.f32 %v2308, %v2316
    %v2319 = vmul.f32 %v2313, %v2317
    %v2320 = vmul.f32 %v2318, 0.044715
    %v2321 = vmul.f32 %v2319, 0.044715
    %v2322 = vadd.f32 %v2308, %v2320
    %v2323 = vadd.f32 %v2313, %v2321
    %v2324 = vmul.f32 %v2322, 0.7978846
    %v2325 = vmul.f32 %v2323, 0.7978846
    %v2326 = vtanh.pop %v2324
    %v2327 = vtanh.pop %v2325
    %v2328 = vadd.f32 %v2326, 1.0
    %v2329 = vadd.f32 %v2327, 1.0
    %v2330 = vmul.f32 %v2328, 0.5
    %v2331 = vmul.f32 %v2329, 0.5
    %v2332 = vmul.f32 %v2308, %v2330
    %v2333 = vmul.f32 %v2313, %v2331
    %v2334 = vld [vmem:[%s1317 + $0x8] sm:$0xff]
    %v2335 = vld [vmem:[%s1317 + $0x18] sm:$0xff]
    %v2336 = vld [vmem:[%s1317 + $0x28] sm:$0xff]
    %v2337 = vld [vmem:[%s1317 + $0x38] sm:$0xff]
    %v2338 = vld [vmem:[%s1317 + $0x48] sm:$0xff]
    %v2339 = vld [vmem:[%s1317 + $0x58] sm:$0xff]
    %v2340 = vld [vmem:[%s1317 + $0x68] sm:$0xff]
    %v2341 = vld [vmem:[%s1317 + $0x78] sm:$0xff]
    %v2342 = vld [vmem:[%s3 + $0xf] sm:$0x1]
    %v2343 = vlaneseq
    %v2344 = vshrl.u32 %v2343, 7
    %v2345 = vsub.s32 0, %v2344
    %v2346 = vrot.slane %v2342, %v2345
    %2355 = vrot.lane.b32.xlu0 %v2334, 32
    %v2356 = vpop.permute.xlu0 %2355
    %2357 = vrot.lane.b32.xlu0 %v2335, 32
    %v2358 = vpop.permute.xlu0 %2357
    %2359 = vrot.lane.b32.xlu0 %v2336, 32
    %v2360 = vpop.permute.xlu0 %2359
    %2361 = vrot.lane.b32.xlu0 %v2337, 32
    %v2362 = vpop.permute.xlu0 %2361
    %2363 = vrot.lane.b32.xlu0 %v2338, 32
    %v2364 = vpop.permute.xlu0 %2363
    %2365 = vrot.lane.b32.xlu0 %v2339, 32
    %v2366 = vpop.permute.xlu0 %2365
    %2367 = vrot.lane.b32.xlu0 %v2340, 32
    %v2368 = vpop.permute.xlu0 %2367
    %2369 = vrot.lane.b32.xlu0 %v2341, 32
    %v2370 = vpop.permute.xlu0 %2369
    %v2380 = vsel %vm1187, %v2332, 0
    %v2383 = vsel %vm1187, %v2333, 0
    %2385 = vmatprep.subr.mxu0 0.0
    %2386 = vmatpush1.msra.mxu0 %v2356
    %2387 = vmatprep.subr.mxu0 0.0
    %2388 = vmatpush1.msra.mxu0 %v2358
    %2389 = vmatprep.subr.mxu0 0.0
    %2390 = vmatpush1.msra.mxu0 %v2360
    %2391 = vmatprep.subr.mxu0 0.0
    %2392 = vmatpush1.msra.mxu0 %v2362
    %2393 = vmatprep.subr.mxu0 0.0
    %2394 = vmatpush1.msra.mxu0 %v2364
    %2395 = vmatprep.subr.mxu0 0.0
    %2396 = vmatpush1.msra.mxu0 %v2366
    %2397 = vmatprep.subr.mxu0 0.0
    %2398 = vmatpush1.msra.mxu0 %v2368
    %2399 = vmatprep.subr.mxu0 0.0
    %2400 = vmatpush1.msra.mxu0 %v2370
    %2401 = vmatprep.subr.mxu0 0.0
    %2402 = vmatpush1.msra.mxu0 0.0
    %2403 = vmatprep.subr.mxu0 0.0
    %2404 = vmatpush1.msra.mxu0 0.0
    %2405 = vmatprep.subr.mxu0 0.0
    %2406 = vmatpush1.msra.mxu0 0.0
    %2407 = vmatprep.subr.mxu0 0.0
    %2408 = vmatpush1.msra.mxu0 0.0
    %2409 = vmatprep.subr.mxu0 0.0
    %2410 = vmatpush1.msra.mxu0 0.0
    %2411 = vmatprep.subr.mxu0 0.0
    %2412 = vmatpush1.msra.mxu0 0.0
    %2413 = vmatprep.subr.mxu0 0.0
    %2414 = vmatpush1.msra.mxu0 0.0
    %2415 = vmatprep.subr.mxu0 0.0
    %2416 = vmatpush1.msra.mxu0 0.0
    %2417 = vmatprep.subr.mxu0 0.0
    %2418 = vmatpush1.msra.mxu0 0.0
    %2419 = vmatprep.subr.mxu0 0.0
    %2420 = vmatpush1.msra.mxu0 0.0
    %2421 = vmatprep.subr.mxu0 0.0
    %2422 = vmatpush1.msra.mxu0 0.0
    %2423 = vmatprep.subr.mxu0 0.0
    %2424 = vmatpush1.msra.mxu0 0.0
    %2425 = vmatprep.subr.mxu0 0.0
    %2426 = vmatpush1.msra.mxu0 0.0
    %2427 = vmatprep.subr.mxu0 0.0
    %2428 = vmatpush1.msra.mxu0 0.0
    %2429 = vmatprep.subr.mxu0 0.0
    %2430 = vmatpush1.msra.mxu0 0.0
    %2431 = vmatprep.subr.mxu0 0.0
    %2432 = vmatpush1.msra.mxu0 0.0
    %2433 = vmatprep.subr.mxu0 0.0
    %2434 = vmatpush1.msra.mxu0 0.0
    %2435 = vmatprep.subr.mxu0 0.0
    %2436 = vmatpush1.msra.mxu0 0.0
    %2437 = vmatprep.subr.mxu0 0.0
    %2438 = vmatpush1.msra.mxu0 0.0
    %2439 = vmatprep.subr.mxu0 0.0
    %2440 = vmatpush1.msra.mxu0 0.0
    %2441 = vmatprep.subr.mxu0 0.0
    %2442 = vmatpush1.msra.mxu0 0.0
    %2443 = vmatprep.subr.mxu0 0.0
    %2444 = vmatpush1.msra.mxu0 0.0
    %2445 = vmatprep.subr.mxu0 0.0
    %2446 = vmatpush1.msra.mxu0 0.0
    %2447 = vmatprep.subr.mxu0 0.0
    %2448 = vmatpush1.msra.mxu0 0.0
    %2449 = vmatprep.mubr.f32.mxu0 0.0
    %2450 = vmatmul.mubr.f32.gmra.mrb[0].mxu0 %v2380
    %v2451 = vpop.f32.mrb[0].mxu0
    %v2452 = vadd.f32 %v2346, %v2451
    %v2453 = vpop.f32.mrb[0].mxu0
    %2454 = vmatprep.mubr.f32.mxu0 0.0
    %2455 = vmatmul.mubr.f32.gmra.mrb[0].mxu0 %v2383
    %v2456 = vpop.f32.mrb[0].mxu0
    %v2457 = vadd.f32 %v2346, %v2456
    %v2458 = vpop.f32.mrb[0].mxu0
    %2459 = vdwg.mxu0
    %v2460 = vadd.f32 %v2212, %v2452
    %v2461 = vadd.f32 %v2213, %v2457
    %v2462 = vld [vmem:[%s3 + $0x10] sm:$0x1]
    %v2463 = vld [vmem:[%s3 + $0x11] sm:$0x1]
    %v2464 = vsel %vm58, %v2460, 0.0
    %2465 = vadd.xlane.f32.xlu0 %v2464
    %v2466 = vpop.xlane.xlu0 %2465
    %v2467 = vsel %vm58, %v2461, 0.0
    %2468 = vadd.xlane.f32.xlu0 %v2467
    %v2469 = vpop.xlane.xlu0 %2468
    %v2470 = vmul.f32 %v2466, %v65
    %v2471 = vmul.f32 %v2469, %v65
    %v2472 = vmul.f32 %v2460, %v2460
    %v2473 = vmul.f32 %v2461, %v2461
    %v2474 = vsel %vm58, %v2472, 0.0
    %2475 = vadd.xlane.f32.xlu0 %v2474
    %v2476 = vpop.xlane.xlu0 %2475
    %v2477 = vsel %vm58, %v2473, 0.0
    %2478 = vadd.xlane.f32.xlu0 %v2477
    %v2479 = vpop.xlane.xlu0 %2478
    %v2480 = vmul.f32 %v2476, %v65
    %v2481 = vmul.f32 %v2479, %v65
    %v2482 = vmul.f32 %v2470, %v2470
    %v2483 = vmul.f32 %v2471, %v2471
    %v2484 = vsub.f32 %v2480, %v2482
    %v2485 = vsub.f32 %v2481, %v2483
    %v2486 = vmax.f32 %v2484, 0.0
    %v2487 = vmax.f32 %v2485, 0.0
    %v2488 = vsub.f32 %v2460, %v2470
    %v2489 = vsub.f32 %v2461, %v2471
    %v2490 = vadd.f32 %v2486, 1e-12
    %v2491 = vadd.f32 %v2487, 1e-12
    %v2492 = vrsqrt.pop %v2490
    %v2493 = vrsqrt.pop %v2491
    %v2494 = vmul.f32 %v2488, %v2492
    %v2495 = vmul.f32 %v2489, %v2493
    %v2496 = vlaneseq
    %v2497 = vshrl.u32 %v2496, 7
    %v2498 = vsub.s32 0, %v2497
    %v2499 = vrot.slane %v2462, %v2498
    %v2500 = vmul.f32 %v2494, %v2499
    %v2501 = vmul.f32 %v2495, %v2499
    %v2502 = vlaneseq
    %v2503 = vshrl.u32 %v2502, 7
    %v2504 = vsub.s32 0, %v2503
    %v2505 = vrot.slane %v2463, %v2504
    %v2506 = vadd.f32 %v2500, %v2505
    %v2507 = vadd.f32 %v2501, %v2505
    %v2508 = vld [vmem:[%s4] sm:$0xff]
    %v2509 = vld [vmem:[%s4 + $0x8] sm:$0xff]
    %v2510 = vld [vmem:[%s4 + $0x10] sm:$0xff]
    %v2511 = vld [vmem:[%s4 + $0x18] sm:$0xff]
    %v2512 = vld [vmem:[%s3 + $0x12] sm:$0x1]
    %v2513 = vlaneseq
    %v2514 = vshrl.u32 %v2513, 7
    %v2515 = vsub.s32 0, %v2514
    %v2516 = vrot.slane %v2512, %v2515
    %v2518 = vsel %vm58, %v2506, 0
    %v2521 = vsel %vm58, %v2507, 0
    %2523 = vmatprep.subr.mxu0 0.0
    %2524 = vmatpush1.msra.mxu0 %v2508
    %2525 = vmatprep.subr.mxu0 0.0
    %2526 = vmatpush1.msra.mxu0 %v2509
    %2527 = vmatprep.subr.mxu0 0.0
    %2528 = vmatpush1.msra.mxu0 %v2510
    %2529 = vmatprep.subr.mxu0 0.0
    %2530 = vmatpush1.msra.mxu0 %v2511
    %2531 = vmatprep.subr.mxu0 0.0
    %2532 = vmatpush1.msra.mxu0 0.0
    %2533 = vmatprep.subr.mxu0 0.0
    %2534 = vmatpush1.msra.mxu0 0.0
    %2535 = vmatprep.subr.mxu0 0.0
    %2536 = vmatpush1.msra.mxu0 0.0
    %2537 = vmatprep.subr.mxu0 0.0
    %2538 = vmatpush1.msra.mxu0 0.0
    %2539 = vmatprep.subr.mxu0 0.0
    %2540 = vmatpush1.msra.mxu0 0.0
    %2541 = vmatprep.subr.mxu0 0.0
    %2542 = vmatpush1.msra.mxu0 0.0
    %2543 = vmatprep.subr.mxu0 0.0
    %2544 = vmatpush1.msra.mxu0 0.0
    %2545 = vmatprep.subr.mxu0 0.0
    %2546 = vmatpush1.msra.mxu0 0.0
    %2547 = vmatprep.subr.mxu0 0.0
    %2548 = vmatpush1.msra.mxu0 0.0
    %2549 = vmatprep.subr.mxu0 0.0
    %2550 = vmatpush1.msra.mxu0 0.0
    %2551 = vmatprep.subr.mxu0 0.0
    %2552 = vmatpush1.msra.mxu0 0.0
    %2553 = vmatprep.subr.mxu0 0.0
    %2554 = vmatpush1.msra.mxu0 0.0
    %2555 = vmatprep.subr.mxu0 0.0
    %2556 = vmatpush1.msra.mxu0 0.0
    %2557 = vmatprep.subr.mxu0 0.0
    %2558 = vmatpush1.msra.mxu0 0.0
    %2559 = vmatprep.subr.mxu0 0.0
    %2560 = vmatpush1.msra.mxu0 0.0
    %2561 = vmatprep.subr.mxu0 0.0
    %2562 = vmatpush1.msra.mxu0 0.0
    %2563 = vmatprep.subr.mxu0 0.0
    %2564 = vmatpush1.msra.mxu0 0.0
    %2565 = vmatprep.subr.mxu0 0.0
    %2566 = vmatpush1.msra.mxu0 0.0
    %2567 = vmatprep.subr.mxu0 0.0
    %2568 = vmatpush1.msra.mxu0 0.0
    %2569 = vmatprep.subr.mxu0 0.0
    %2570 = vmatpush1.msra.mxu0 0.0
    %2571 = vmatprep.subr.mxu0 0.0
    %2572 = vmatpush1.msra.mxu0 0.0
    %2573 = vmatprep.subr.mxu0 0.0
    %2574 = vmatpush1.msra.mxu0 0.0
    %2575 = vmatprep.subr.mxu0 0.0
    %2576 = vmatpush1.msra.mxu0 0.0
    %2577 = vmatprep.subr.mxu0 0.0
    %2578 = vmatpush1.msra.mxu0 0.0
    %2579 = vmatprep.subr.mxu0 0.0
    %2580 = vmatpush1.msra.mxu0 0.0
    %2581 = vmatprep.subr.mxu0 0.0
    %2582 = vmatpush1.msra.mxu0 0.0
    %2583 = vmatprep.subr.mxu0 0.0
    %2584 = vmatpush1.msra.mxu0 0.0
    %2585 = vmatprep.subr.mxu0 0.0
    %2586 = vmatpush1.msra.mxu0 0.0
    %2587 = vmatprep.mubr.f32.mxu0 0.0
    %2588 = vmatmul.mubr.f32.gmra.mrb[0].mxu0 %v2518
    %v2589 = vpop.f32.mrb[0].mxu0
    %v2590 = vadd.f32 %v2516, %v2589
    %v2591 = vpop.f32.mrb[0].mxu0
    %2592 = vmatprep.mubr.f32.mxu0 0.0
    %2593 = vmatmul.mubr.f32.gmra.mrb[0].mxu0 %v2521
    %v2594 = vpop.f32.mrb[0].mxu0
    %v2595 = vadd.f32 %v2516, %v2594
    %v2596 = vpop.f32.mrb[0].mxu0
    %2597 = vdwg.mxu0
    %v2598 = vtanh.pop %v2590
    %v2599 = vtanh.pop %v2595
    %v2600 = vld [vmem:[%s4 + $0xa0] sm:$0xf]
    %v2603 = vunpack.c.l.s4 1983009808
    %v2604 = vunpack.c.0.s8 %v2603
    %v2605 = vlaneseq
    %v2606 = vshrl.u32 %v2605, 7
    %v2607 = vsub.s32 %v2604, %v2606
    %v2608 = vrot.slane %v2600, %v2607
    %v2609 = vcombine.high %v2608, %v2608
    %v2611 = vunpack.c.l.s4 1966171168
    %v2612 = vunpack.c.0.s8 %v2611
    %v2613 = vlaneseq
    %v2614 = vshrl.u32 %v2613, 7
    %v2615 = vsub.s32 %v2612, %v2614
    %v2616 = vrot.slane %v2608, %v2615
    %v2617 = vcombine.high %v2616, %v2616
    %v2618 = vlaneseq
    %v2619 = vshrl.u32 %v2618, 7
    %v2620 = vsub.s32 0, %v2619
    %v2621 = vrot.slane %v2616, %v2620
    %v2622 = vlaneseq
    %v2623 = vshrl.u32 %v2622, 7
    %v2624 = vsub.s32 0, %v2623
    %v2625 = vrot.slane %v2617, %v2624
    %v2628 = vmul.f32 %v2598, %v2621
    %v2629 = vmul.f32 %v2599, %v2625
    %v2630 = vsel %vm58, %v2628, 0.0
    %2631 = vadd.xlane.f32.xlu0 %v2630
    %v2632 = vpop.xlane.xlu0 %2631
    %v2633 = vsel %vm58, %v2629, 0.0
    %2634 = vadd.xlane.f32.xlu0 %v2633
    %v2635 = vpop.xlane.xlu0 %2634
    %vm2636 = vcmp.eq.f32.partialorder %v21, 0.0
    %v2639 = vlaneseq
    %v2640 = vand.u32 %v2639, 127
    %v2641 = vlaneseq
    %v2642 = vshrl.u32 %v2641, 7
    %v2643 = vsub.s32 %v2640, %v2642
    %v2644 = vrot.slane %v2632, %v2643
    %v2645 = vlaneseq
    %v2646 = vshrl.u32 %v2645, 7
    %v2647 = vsub.s32 %v2640, %v2646
    %v2648 = vrot.slane %v2635, %v2647
    %vm2649 = vcmask 1041409
    %v2650 = vsel %vm2649, %v2648, %v2644
    %v2652 = vsel %vm2636, -1e+09, %v2650
    %vm2653 = vcmask 58368
    %v2654 = vsel %vm2653, %v2652, -inf
    %2655 = vmax.xlane.f32.xlu0 %v2654
    %v2656 = vpop.xlane.xlu0 %2655
    %v2657 = vsub.f32 %v2652, %v2656
    %v2658 = vmul.f32 %v2657, 1.442695
    %v2659 = vpow.pop %v2658
    %v2660 = vsel %vm2653, %v2659, 0.0
    %2661 = vadd.xlane.f32.xlu0 %v2660
    %v2662 = vpop.xlane.xlu0 %2661
    %v2663 = vrcp.pop %v2662
    %v2664 = vmul.f32 %v2659, %v2663
    %v2665 = vlaneseq
    %v2666 = vshrl.u32 %v2665, 7
    %v2667 = vsub.s32 0, %v2666
    %v2668 = vrot.slane %v2664, %v2667
    %2670 = vbcast.lane.b32.xlu0 %v2668, 256
    %v2671 = vpop.permute.xlu0 %2670
    %v2672 = vlaneseq
    %v2673 = vshrl.u32 %v2672, 7
    %v2674 = vsub.s32 1, %v2673
    %v2675 = vrot.slane %v2664, %v2674
    %2677 = vbcast.lane.b32.xlu0 %v2675, 256
    %v2678 = vpop.permute.xlu0 %2677
    %v2679 = vmul.f32 %v2671, %v2506
    %v2680 = vmul.f32 %v2678, %v2507
    %v2681 = vsel %vm58, %v2679, 0.0
    %v2682 = vrot.slane %v2681, 4
    %v2683 = vadd.f32 %v2681, %v2682
    %v2684 = vrot.slane %v2683, 2
    %v2685 = vadd.f32 %v2683, %v2684
    %v2686 = vrot.slane %v2685, 1
    %v2687 = vadd.f32 %v2685, %v2686
    %v2688 = vsel %vm58, %v2680, 0.0
    %v2689 = vrot.slane %v2688, 4
    %v2690 = vadd.f32 %v2688, %v2689
    %v2691 = vrot.slane %v2690, 2
    %v2692 = vadd.f32 %v2690, %v2691
    %v2693 = vrot.slane %v2692, 1
    %v2694 = vadd.f32 %v2692, %v2693
    %v2696 = vunpack.c.l.s4 1966171168
    %v2697 = vunpack.c.0.s8 %v2696
    %v2698 = vlaneseq
    %v2699 = vshrl.u32 %v2698, 7
    %v2700 = vsub.s32 %v2697, %v2699
    %v2701 = vrot.slane %v2609, %v2700
    %v2702 = vcombine.high %v2701, %v2701
    %v2703 = vlaneseq
    %v2704 = vshrl.u32 %v2703, 7
    %v2705 = vsub.s32 0, %v2704
    %v2706 = vrot.slane %v2701, %v2705
    %v2707 = vlaneseq
    %v2708 = vshrl.u32 %v2707, 7
    %v2709 = vsub.s32 0, %v2708
    %v2710 = vrot.slane %v2702, %v2709
    %v2713 = vmul.f32 %v2598, %v2706
    %v2714 = vmul.f32 %v2599, %v2710
    %v2715 = vsel %vm58, %v2713, 0.0
    %2716 = vadd.xlane.f32.xlu0 %v2715
    %v2717 = vpop.xlane.xlu0 %2716
    %v2718 = vsel %vm58, %v2714, 0.0
    %2719 = vadd.xlane.f32.xlu0 %v2718
    %v2720 = vpop.xlane.xlu0 %2719
    %v2723 = vlaneseq
    %v2724 = vshrl.u32 %v2723, 7
    %v2725 = vsub.s32 %v2640, %v2724
    %v2726 = vrot.slane %v2717, %v2725
    %v2727 = vlaneseq
    %v2728 = vshrl.u32 %v2727, 7
    %v2729 = vsub.s32 %v2640, %v2728
    %v2730 = vrot.slane %v2720, %v2729
    %v2731 = vsel %vm2649, %v2730, %v2726
    %v2733 = vsel %vm2636, -1e+09, %v2731
    %v2734 = vsel %vm2653, %v2733, -inf
    %2735 = vmax.xlane.f32.xlu0 %v2734
    %v2736 = vpop.xlane.xlu0 %2735
    %v2737 = vsub.f32 %v2733, %v2736
    %v2738 = vmul.f32 %v2737, 1.442695
    %v2739 = vpow.pop %v2738
    %v2740 = vsel %vm2653, %v2739, 0.0
    %2741 = vadd.xlane.f32.xlu0 %v2740
    %v2742 = vpop.xlane.xlu0 %2741
    %v2743 = vrcp.pop %v2742
    %v2744 = vmul.f32 %v2739, %v2743
    %v2745 = vlaneseq
    %v2746 = vshrl.u32 %v2745, 7
    %v2747 = vsub.s32 0, %v2746
    %v2748 = vrot.slane %v2744, %v2747
    %2750 = vbcast.lane.b32.xlu0 %v2748, 256
    %v2751 = vpop.permute.xlu0 %2750
    %v2752 = vlaneseq
    %v2753 = vshrl.u32 %v2752, 7
    %v2754 = vsub.s32 1, %v2753
    %v2755 = vrot.slane %v2744, %v2754
    %2757 = vbcast.lane.b32.xlu0 %v2755, 256
    %v2758 = vpop.permute.xlu0 %2757
    %v2759 = vmul.f32 %v2751, %v2506
    %v2760 = vmul.f32 %v2758, %v2507
    %v2761 = vsel %vm58, %v2759, 0.0
    %v2762 = vrot.slane %v2761, 4
    %v2763 = vadd.f32 %v2761, %v2762
    %v2764 = vrot.slane %v2763, 2
    %v2765 = vadd.f32 %v2763, %v2764
    %v2766 = vrot.slane %v2765, 1
    %v2767 = vadd.f32 %v2765, %v2766
    %v2768 = vsel %vm58, %v2760, 0.0
    %v2769 = vrot.slane %v2768, 4
    %v2770 = vadd.f32 %v2768, %v2769
    %v2771 = vrot.slane %v2770, 2
    %v2772 = vadd.f32 %v2770, %v2771
    %v2773 = vrot.slane %v2772, 1
    %v2774 = vadd.f32 %v2772, %v2773
    %v2777 = vsel %vm2649, %v2694, %v2687
    %v2781 = vsel %vm2649, %v2774, %v2767
    %2782 = vrot.lane.b32.xlu0 %v2781, 32
    %v2783 = vpop.permute.xlu0 %2782
    %v2785 = vsel %vm58, %v2777, %v2783
    %v2786 = vld [vmem:[%s4 + $0x20] sm:$0xff]
    %v2787 = vld [vmem:[%s4 + $0x28] sm:$0xff]
    %v2788 = vld [vmem:[%s4 + $0x30] sm:$0xff]
    %v2789 = vld [vmem:[%s4 + $0x38] sm:$0xff]
    %v2790 = vld [vmem:[%s4 + $0x40] sm:$0xff]
    %v2791 = vld [vmem:[%s4 + $0x48] sm:$0xff]
    %v2792 = vld [vmem:[%s4 + $0x50] sm:$0xff]
    %v2793 = vld [vmem:[%s4 + $0x58] sm:$0xff]
    %v2794 = vld [vmem:[%s3 + $0x13] sm:$0x1]
    %v2795 = vlaneseq
    %v2796 = vshrl.u32 %v2795, 7
    %v2797 = vsub.s32 0, %v2796
    %v2798 = vrot.slane %v2794, %v2797
    %v2800 = vsel %vm1187, %v2785, 0
    %2802 = vmatprep.subr.mxu0 0.0
    %2803 = vmatpush1.msra.mxu0 %v2786
    %2804 = vmatprep.subr.mxu0 0.0
    %2805 = vmatpush1.msra.mxu0 %v2787
    %2806 = vmatprep.subr.mxu0 0.0
    %2807 = vmatpush1.msra.mxu0 %v2788
    %2808 = vmatprep.subr.mxu0 0.0
    %2809 = vmatpush1.msra.mxu0 %v2789
    %2810 = vmatprep.subr.mxu0 0.0
    %2811 = vmatpush1.msra.mxu0 %v2790
    %2812 = vmatprep.subr.mxu0 0.0
    %2813 = vmatpush1.msra.mxu0 %v2791
    %2814 = vmatprep.subr.mxu0 0.0
    %2815 = vmatpush1.msra.mxu0 %v2792
    %2816 = vmatprep.subr.mxu0 0.0
    %2817 = vmatpush1.msra.mxu0 %v2793
    %2818 = vmatprep.subr.mxu0 0.0
    %2819 = vmatpush1.msra.mxu0 0.0
    %2820 = vmatprep.subr.mxu0 0.0
    %2821 = vmatpush1.msra.mxu0 0.0
    %2822 = vmatprep.subr.mxu0 0.0
    %2823 = vmatpush1.msra.mxu0 0.0
    %2824 = vmatprep.subr.mxu0 0.0
    %2825 = vmatpush1.msra.mxu0 0.0
    %2826 = vmatprep.subr.mxu0 0.0
    %2827 = vmatpush1.msra.mxu0 0.0
    %2828 = vmatprep.subr.mxu0 0.0
    %2829 = vmatpush1.msra.mxu0 0.0
    %2830 = vmatprep.subr.mxu0 0.0
    %2831 = vmatpush1.msra.mxu0 0.0
    %2832 = vmatprep.subr.mxu0 0.0
    %2833 = vmatpush1.msra.mxu0 0.0
    %2834 = vmatprep.subr.mxu0 0.0
    %2835 = vmatpush1.msra.mxu0 0.0
    %2836 = vmatprep.subr.mxu0 0.0
    %2837 = vmatpush1.msra.mxu0 0.0
    %2838 = vmatprep.subr.mxu0 0.0
    %2839 = vmatpush1.msra.mxu0 0.0
    %2840 = vmatprep.subr.mxu0 0.0
    %2841 = vmatpush1.msra.mxu0 0.0
    %2842 = vmatprep.subr.mxu0 0.0
    %2843 = vmatpush1.msra.mxu0 0.0
    %2844 = vmatprep.subr.mxu0 0.0
    %2845 = vmatpush1.msra.mxu0 0.0
    %2846 = vmatprep.subr.mxu0 0.0
    %2847 = vmatpush1.msra.mxu0 0.0
    %2848 = vmatprep.subr.mxu0 0.0
    %2849 = vmatpush1.msra.mxu0 0.0
    %2850 = vmatprep.subr.mxu0 0.0
    %2851 = vmatpush1.msra.mxu0 0.0
    %2852 = vmatprep.subr.mxu0 0.0
    %2853 = vmatpush1.msra.mxu0 0.0
    %2854 = vmatprep.subr.mxu0 0.0
    %2855 = vmatpush1.msra.mxu0 0.0
    %2856 = vmatprep.subr.mxu0 0.0
    %2857 = vmatpush1.msra.mxu0 0.0
    %2858 = vmatprep.subr.mxu0 0.0
    %2859 = vmatpush1.msra.mxu0 0.0
    %2860 = vmatprep.subr.mxu0 0.0
    %2861 = vmatpush1.msra.mxu0 0.0
    %2862 = vmatprep.subr.mxu0 0.0
    %2863 = vmatpush1.msra.mxu0 0.0
    %2864 = vmatprep.subr.mxu0 0.0
    %2865 = vmatpush1.msra.mxu0 0.0
    %2866 = vmatprep.mubr.f32.mxu0 0.0
    %2867 = vmatmul.mubr.f32.gmra.mrb[0].mxu0 %v2800
    %v2868 = vpop.f32.mrb[0].mxu0
    %v2869 = vadd.f32 %v2798, %v2868
    %v2870 = vpop.f32.mrb[0].mxu0
    %2871 = vdwg.mxu0
    %v2872 = vmax.f32 %v2869, 0.0
    %v2873 = vld [vmem:[%s4 + $0x60] sm:$0xff]
    %v2874 = vld [vmem:[%s4 + $0x68] sm:$0xff]
    %v2875 = vld [vmem:[%s4 + $0x70] sm:$0xff]
    %v2876 = vld [vmem:[%s4 + $0x78] sm:$0xff]
    %v2877 = vld [vmem:[%s3 + $0x14] sm:$0x1]
    %v2878 = vlaneseq
    %v2879 = vshrl.u32 %v2878, 7
    %v2880 = vsub.s32 0, %v2879
    %v2881 = vrot.slane %v2877, %v2880
    %v2883 = vsel %vm58, %v2872, 0
    %2885 = vmatprep.subr.mxu0 0.0
    %2886 = vmatpush1.msra.mxu0 %v2873
    %2887 = vmatprep.subr.mxu0 0.0
    %2888 = vmatpush1.msra.mxu0 %v2874
    %2889 = vmatprep.subr.mxu0 0.0
    %2890 = vmatpush1.msra.mxu0 %v2875
    %2891 = vmatprep.subr.mxu0 0.0
    %2892 = vmatpush1.msra.mxu0 %v2876
    %2893 = vmatprep.subr.mxu0 0.0
    %2894 = vmatpush1.msra.mxu0 0.0
    %2895 = vmatprep.subr.mxu0 0.0
    %2896 = vmatpush1.msra.mxu0 0.0
    %2897 = vmatprep.subr.mxu0 0.0
    %2898 = vmatpush1.msra.mxu0 0.0
    %2899 = vmatprep.subr.mxu0 0.0
    %2900 = vmatpush1.msra.mxu0 0.0
    %2901 = vmatprep.subr.mxu0 0.0
    %2902 = vmatpush1.msra.mxu0 0.0
    %2903 = vmatprep.subr.mxu0 0.0
    %2904 = vmatpush1.msra.mxu0 0.0
    %2905 = vmatprep.subr.mxu0 0.0
    %2906 = vmatpush1.msra.mxu0 0.0
    %2907 = vmatprep.subr.mxu0 0.0
    %2908 = vmatpush1.msra.mxu0 0.0
    %2909 = vmatprep.subr.mxu0 0.0
    %2910 = vmatpush1.msra.mxu0 0.0
    %2911 = vmatprep.subr.mxu0 0.0
    %2912 = vmatpush1.msra.mxu0 0.0
    %2913 = vmatprep.subr.mxu0 0.0
    %2914 = vmatpush1.msra.mxu0 0.0
    %2915 = vmatprep.subr.mxu0 0.0
    %2916 = vmatpush1.msra.mxu0 0.0
    %2917 = vmatprep.subr.mxu0 0.0
    %2918 = vmatpush1.msra.mxu0 0.0
    %2919 = vmatprep.subr.mxu0 0.0
    %2920 = vmatpush1.msra.mxu0 0.0
    %2921 = vmatprep.subr.mxu0 0.0
    %2922 = vmatpush1.msra.mxu0 0.0
    %2923 = vmatprep.subr.mxu0 0.0
    %2924 = vmatpush1.msra.mxu0 0.0
    %2925 = vmatprep.subr.mxu0 0.0
    %2926 = vmatpush1.msra.mxu0 0.0
    %2927 = vmatprep.subr.mxu0 0.0
    %2928 = vmatpush1.msra.mxu0 0.0
    %2929 = vmatprep.subr.mxu0 0.0
    %2930 = vmatpush1.msra.mxu0 0.0
    %2931 = vmatprep.subr.mxu0 0.0
    %2932 = vmatpush1.msra.mxu0 0.0
    %2933 = vmatprep.subr.mxu0 0.0
    %2934 = vmatpush1.msra.mxu0 0.0
    %2935 = vmatprep.subr.mxu0 0.0
    %2936 = vmatpush1.msra.mxu0 0.0
    %2937 = vmatprep.subr.mxu0 0.0
    %2938 = vmatpush1.msra.mxu0 0.0
    %2939 = vmatprep.subr.mxu0 0.0
    %2940 = vmatpush1.msra.mxu0 0.0
    %2941 = vmatprep.subr.mxu0 0.0
    %2942 = vmatpush1.msra.mxu0 0.0
    %2943 = vmatprep.subr.mxu0 0.0
    %2944 = vmatpush1.msra.mxu0 0.0
    %2945 = vmatprep.subr.mxu0 0.0
    %2946 = vmatpush1.msra.mxu0 0.0
    %2947 = vmatprep.subr.mxu0 0.0
    %2948 = vmatpush1.msra.mxu0 0.0
    %2949 = vmatprep.mubr.f32.mxu0 0.0
    %2950 = vmatmul.mubr.f32.gmra.mrb[0].mxu0 %v2883
    %v2951 = vpop.f32.mrb[0].mxu0
    %v2952 = vadd.f32 %v2881, %v2951
    %v2953 = vpop.f32.mrb[0].mxu0
    %2954 = vdwg.mxu0
    %v2955 = vtanh.pop %v2952
    %v2956 = vld [vmem:[%s4 + $0x80] sm:$0xff]
    %v2957 = vld [vmem:[%s4 + $0x88] sm:$0xff]
    %v2958 = vld [vmem:[%s4 + $0x90] sm:$0xff]
    %v2959 = vld [vmem:[%s4 + $0x98] sm:$0xff]
    %v2960 = vld [vmem:[%s3 + $0x15] sm:$0x1]
    %v2961 = vlaneseq
    %v2962 = vshrl.u32 %v2961, 7
    %v2963 = vsub.s32 0, %v2962
    %v2964 = vrot.slane %v2960, %v2963
    %v2966 = vsel %vm58, %v2955, 0
    %2968 = vmatprep.subr.mxu0 0.0
    %2969 = vmatpush1.msra.mxu0 %v2956
    %2970 = vmatprep.subr.mxu0 0.0
    %2971 = vmatpush1.msra.mxu0 %v2957
    %2972 = vmatprep.subr.mxu0 0.0
    %2973 = vmatpush1.msra.mxu0 %v2958
    %2974 = vmatprep.subr.mxu0 0.0
    %2975 = vmatpush1.msra.mxu0 %v2959
    %2976 = vmatprep.subr.mxu0 0.0
    %2977 = vmatpush1.msra.mxu0 0.0
    %2978 = vmatprep.subr.mxu0 0.0
    %2979 = vmatpush1.msra.mxu0 0.0
    %2980 = vmatprep.subr.mxu0 0.0
    %2981 = vmatpush1.msra.mxu0 0.0
    %2982 = vmatprep.subr.mxu0 0.0
    %2983 = vmatpush1.msra.mxu0 0.0
    %2984 = vmatprep.subr.mxu0 0.0
    %2985 = vmatpush1.msra.mxu0 0.0
    %2986 = vmatprep.subr.mxu0 0.0
    %2987 = vmatpush1.msra.mxu0 0.0
    %2988 = vmatprep.subr.mxu0 0.0
    %2989 = vmatpush1.msra.mxu0 0.0
    %2990 = vmatprep.subr.mxu0 0.0
    %2991 = vmatpush1.msra.mxu0 0.0
    %2992 = vmatprep.subr.mxu0 0.0
    %2993 = vmatpush1.msra.mxu0 0.0
    %2994 = vmatprep.subr.mxu0 0.0
    %2995 = vmatpush1.msra.mxu0 0.0
    %2996 = vmatprep.subr.mxu0 0.0
    %2997 = vmatpush1.msra.mxu0 0.0
    %2998 = vmatprep.subr.mxu0 0.0
    %2999 = vmatpush1.msra.mxu0 0.0
    %3000 = vmatprep.subr.mxu0 0.0
    %3001 = vmatpush1.msra.mxu0 0.0
    %3002 = vmatprep.subr.mxu0 0.0
    %3003 = vmatpush1.msra.mxu0 0.0
    %3004 = vmatprep.subr.mxu0 0.0
    %3005 = vmatpush1.msra.mxu0 0.0
    %3006 = vmatprep.subr.mxu0 0.0
    %3007 = vmatpush1.msra.mxu0 0.0
    %3008 = vmatprep.subr.mxu0 0.0
    %3009 = vmatpush1.msra.mxu0 0.0
    %3010 = vmatprep.subr.mxu0 0.0
    %3011 = vmatpush1.msra.mxu0 0.0
    %3012 = vmatprep.subr.mxu0 0.0
    %3013 = vmatpush1.msra.mxu0 0.0
    %3014 = vmatprep.subr.mxu0 0.0
    %3015 = vmatpush1.msra.mxu0 0.0
    %3016 = vmatprep.subr.mxu0 0.0
    %3017 = vmatpush1.msra.mxu0 0.0
    %3018 = vmatprep.subr.mxu0 0.0
    %3019 = vmatpush1.msra.mxu0 0.0
    %3020 = vmatprep.subr.mxu0 0.0
    %3021 = vmatpush1.msra.mxu0 0.0
    %3022 = vmatprep.subr.mxu0 0.0
    %3023 = vmatpush1.msra.mxu0 0.0
    %3024 = vmatprep.subr.mxu0 0.0
    %3025 = vmatpush1.msra.mxu0 0.0
    %3026 = vmatprep.subr.mxu0 0.0
    %3027 = vmatpush1.msra.mxu0 0.0
    %3028 = vmatprep.subr.mxu0 0.0
    %3029 = vmatpush1.msra.mxu0 0.0
    %3030 = vmatprep.subr.mxu0 0.0
    %3031 = vmatpush1.msra.mxu0 0.0
    %3032 = vmatprep.mubr.f32.mxu0 0.0
    %3033 = vmatmul.mubr.f32.gmra.mrb[0].mxu0 %v2966
    %v3034 = vpop.f32.mrb[0].mxu0
    %v3035 = vadd.f32 %v2964, %v3034
    %v3036 = vpop.f32.mrb[0].mxu0
    %3037 = vdwg.mxu0
    %vm3038 = vcmask 254976
    %3039 = vst.msk [vmem:[#allocation2] sm:$0x3] %vm3038, %v3035
    // Predicated region
    $region22: #{bert_for_absc.1} parent=1 // pred_check
      _
    $region23: #{bert_for_absc.1} parent=1 // pred_check_branch
      %3041 = sbr.rel (0) target = $region25
    $region24: #{bert_for_absc.1} parent=1 // pred_region
      %s3043 = ssub.s32 32, 32
      %3044 = vsyncadd [#allocation3], %s3043
      %s3046 = sshll.u32 [#allocation2], 4
      %s3047 = int_to_ptr.vmem [resolvable:$true] %s3046
      %3049 = dma.vmem_to_hbm [thread:$0]  %s3047, 32, %s5, [#allocation3]
    $region25: #{bert_for_absc.1} parent=1 // pred_fallthru
      _
    // Predicated region
    $region26: #{bert_for_absc.1} parent=1 // pred_check
      _
    $region27: #{bert_for_absc.1} parent=1 // pred_check_branch
      %3051 = sbr.rel (0) target = $region29
    $region28: #{bert_for_absc.1} parent=1 // pred_region
      %3052 = dma.done [#allocation3], 32
    $region29: #{bert_for_absc.1} parent=1 // pred_fallthru
      _
    %3053 = vsyncpa [#allocation3], 1

</llo_original>
